<compile_context>
chip_gen: v7x
topology: tpu7x:2x2x1
jax: 0.10.0
libtpu: 0.0.40
codegen_flags: <defaults>
</compile_context>

<pallas_src>
import jax
import jax.numpy as jnp
from jax.experimental import pallas as pl
from jax.experimental.pallas import tpu as pltpu

BN_EPS = 1e-5
_LANES = 128
_HIGHEST = jax.lax.Precision.HIGHEST


def _sigmoid(z):
    return 1.0 / (1.0 + jnp.exp(-z))


# ----------------------------------------------------------------------------
# Parameter slab packing: one (rows, 128) f32 slab, 8-row-aligned regions.
# ----------------------------------------------------------------------------
def _round8(n):
    return -(-n // 8) * 8


def pack_param_slab(flat, num_stage):
    (w1w, w1b, bw1, bb1, bw2, bb2, w2w, w2b, w6w, w6b,
     w4w, w4b, wsw, wsb, mult) = flat[:15]
    # only the LAST stage's output is consumed by the PyTorch forward
    sw1, sb1, sw2, sb2 = flat[15 + 4 * (num_stage - 1): 15 + 4 * num_stage]
    entries = [
        ("w1", w1w), ("b1", w1b),
        ("w3_1", bw1), ("b3_1", bb1), ("w3_2", bw2), ("b3_2", bb2),
        # w2 and ws share the same contraction input -> one fused head matmul
        ("w2ws", jnp.concatenate([w2w, wsw], axis=1)),
        ("b2ws", jnp.concatenate([w2b, wsb], axis=1)),
        ("w6", w6w.T), ("b6", w6b),      # w6 stored as a (1, L) row (VPU proj)
        ("w4", w4w), ("b4", w4b),
        ("mult", mult),
        ("s_w1", sw1), ("s_b1", sb1), ("s_w2", sw2), ("s_b2", sb2),
    ]
    offsets, blocks, row = {}, [], 0
    for name, a in entries:
        r, c = a.shape
        assert c <= _LANES, f"{name}: {c} lanes > {_LANES}"
        rp = _round8(r)
        blk = jnp.zeros((rp, _LANES), jnp.float32).at[:r, :c].set(
            a.astype(jnp.float32))
        offsets[name] = (row, r, c)
        blocks.append(blk)
        row += rp
    return jnp.concatenate(blocks, axis=0), offsets


# ----------------------------------------------------------------------------
# The single fused kernel (gridless, everything VMEM-resident)
# ----------------------------------------------------------------------------
def _make_forward_kernel(offsets, num_3d, linear_size, scale_range,
                         unnorm_op, batch):
    L = linear_size

    def kernel(x_ref, p_ref, o_ref):
        def P(name):
            r0, r, c = offsets[name]
            return p_ref[r0:r0 + r, 0:c]          # static slice -> view load

        def lin(a, w, b):
            return jnp.dot(a, w, preferred_element_type=jnp.float32,
                           precision=_HIGHEST) + b

        def lin_relu(a, w, b):
            return jnp.maximum(lin(a, w, b), 0.0)

        def block(a, w1, b1, w2, b2):
            # Linear block: relu(bn(w1 a)) -> relu(bn(w2 .)); dropout=identity
            yx = lin_relu(a, w1, b1)
            y = lin_relu(yx, w2, b2)
            return a + y, yx, y

        x = x_ref[...]

        # trunk: w1 -> (folded bn1) -> relu -> dropout(identity)
        y1 = lin_relu(x, P("w1"), P("b1"))

        # the SAME self.w3 block is applied twice: load once, pre-broadcast bias
        bw1, bw2 = P("w3_1"), P("w3_2")
        bb1 = jnp.broadcast_to(P("b3_1"), (batch, L))
        bb2 = jnp.broadcast_to(P("b3_2"), (batch, L))
        y2, x1, x2 = block(y1, bw1, bb1, bw2, bb2)
        y3, x4, x5 = block(y2, bw1, bb1, bw2, bb2)

        # fused [w2 | ws] head (49 output lanes)
        w2ws, b2ws = P("w2ws"), P("b2ws")
        z3 = jnp.dot(y3, w2ws, preferred_element_type=jnp.float32,
                     precision=_HIGHEST) + b2ws
        new_out = z3[:, :num_3d]

        y = lin(new_out, P("w4"), P("b4"))

        # PyTorch: `for i: y6,_,_ = stage[i](y)` with y unchanged -> only the
        # last stage contributes; compute only it.
        y6, _, _ = block(y, P("s_w1"), P("s_b1"), P("s_w2"), P("s_b2"))

        # fused 5-branch attention gating:
        #   proj_i = branch_i @ w6 + b6  (VPU multiply + lane reduce, no MXU)
        #   dist_i = ||branch_i - y6||_F (whole-tensor Frobenius, one scalar)
        #   gate_i = 1 - sigmoid(proj_i * dist_i)
        branches = jnp.stack([y1, x1, x2, x4, x5], axis=0)        # (5, B, L)
        w6row, b6 = P("w6"), P("b6")                              # (1,L), (1,1)
        proj = jnp.sum(branches * w6row, axis=-1, keepdims=True) + b6  # (5,B,1)
        d = branches - y6
        d2 = jnp.sum(d * d, axis=2, keepdims=True)                # (5, B, 1)
        dist = jnp.sqrt(jnp.sum(d2, axis=1, keepdims=True))       # (5, 1, 1)
        gate = 1.0 - _sigmoid(proj * dist)                        # (5, B, 1)
        gb = gate * branches
        acc = gb[0] + gb[1] + gb[2] + gb[3] + gb[4]               # (B, L)

        yf = y6 + acc
        zf = jnp.dot(yf, w2ws, preferred_element_type=jnp.float32,
                     precision=_HIGHEST) + b2ws
        out = zf[:, :num_3d]
        if unnorm_op:
            out = out * P("mult")
        scale = scale_range * _sigmoid(zf[:, num_3d:num_3d + 1])

        # single lane-padded output slab -> one writeback DMA
        o_ref[...] = jnp.zeros(o_ref.shape, o_ref.dtype)
        o_ref[0, :, :num_3d] = out
        o_ref[1, :, :num_3d] = new_out
        o_ref[2, :, :1] = scale

    return kernel


# ----------------------------------------------------------------------------
# Gridless pallas_call wrapper (2 input DMAs, 1 output DMA, all VMEM resident)
# ----------------------------------------------------------------------------
def build_forward(offsets, num_3d, linear_size, scale_range, unnorm_op, batch):
    kernel = _make_forward_kernel(offsets, num_3d, linear_size, scale_range,
                                  unnorm_op, batch)
    vmem = pltpu.MemorySpace.VMEM

    @jax.jit
    def forward(x, param_slab):
        o = pl.pallas_call(
            kernel,
            out_shape=jax.ShapeDtypeStruct((3, batch, _LANES), jnp.float32),
            in_specs=[pl.BlockSpec(memory_space=vmem),
                      pl.BlockSpec(memory_space=vmem)],
            out_specs=pl.BlockSpec(memory_space=vmem),
        )(x, param_slab)
        out = o[0, :, :num_3d]
        new_out = o[1, :, :num_3d]
        scale = o[2, :, :1]
        return out, scale, new_out

    return forward


# ----------------------------------------------------------------------------
# Parameter construction (PyTorch-default-like init) with eval-mode BN folding
# ----------------------------------------------------------------------------
def init_linear(key, fan_in, fan_out):
    k1, k2 = jax.random.split(key)
    bound = 1.0 / float(fan_in) ** 0.5
    w = jax.random.uniform(k1, (fan_in, fan_out), jnp.float32, -bound, bound)
    b = jax.random.uniform(k2, (1, fan_out), jnp.float32, -bound, bound)
    return w, b


def init_bn(features):
    return (jnp.ones((1, features), jnp.float32),    # gamma
            jnp.zeros((1, features), jnp.float32),   # beta
            jnp.zeros((1, features), jnp.float32),   # running mean
            jnp.ones((1, features), jnp.float32))    # running var


def fold_bn(w, b, gamma, beta, mean, var):
    s = gamma / jnp.sqrt(var + BN_EPS)
    return w * s, (b - mean) * s + beta


def init_linear_bn_folded(key, fan_in, fan_out):
    w, b = init_linear(key, fan_in, fan_out)
    return fold_bn(w, b, *init_bn(fan_out))


def init_block_folded(key, linear_size):
    k1, k2 = jax.random.split(key)
    w1, b1 = init_linear_bn_folded(k1, linear_size, linear_size)
    w2, b2 = init_linear_bn_folded(k2, linear_size, linear_size)
    return (w1, b1, w2, b2)


def init_model(key, num_2d, num_3d, linear_size, num_stage, unnorm_init):
    keys = jax.random.split(key, 6 + num_stage)
    w1w, w1b = init_linear_bn_folded(keys[0], num_2d, linear_size)
    block3 = init_block_folded(keys[1], linear_size)
    w2w, w2b = init_linear(keys[2], linear_size, num_3d)
    w6w, w6b = init_linear(keys[3], linear_size, 1)
    w4w, w4b = init_linear(keys[4], num_3d, linear_size)
    wsw, wsb = init_linear(keys[5], linear_size, 1)
    mult = jnp.full((1, num_3d), unnorm_init, jnp.float32)
    # NOTE: self.p is never used in the PyTorch forward() — omitted.
    flat = [w1w, w1b, *block3, w2w, w2b, w6w, w6b, w4w, w4b, wsw, wsb, mult]
    for i in range(num_stage):
        flat.extend(init_block_folded(keys[6 + i], linear_size))
    return flat


# ----------------------------------------------------------------------------
# Pure-JAX reference of the same eval-mode graph (for the correctness check)
# ----------------------------------------------------------------------------
def reference_forward(x, flat, num_stage, scale_range, unnorm_op):
    (w1w, w1b, bw1, bb1, bw2, bb2, w2w, w2b, w6w, w6b,
     w4w, w4b, wsw, wsb, mult) = flat[:15]
    stages = flat[15:]

    def lin(a, w, b):
        return jnp.dot(a, w, precision=_HIGHEST) + b

    def lin_relu(a, w, b):
        return jnp.maximum(lin(a, w, b), 0.0)

    def block(a, w1, b1, w2, b2):
        yx = lin_relu(a, w1, b1)
        y = lin_relu(yx, w2, b2)
        return a + y, yx, y

    y1 = lin_relu(x, w1w, w1b)
    y2, x1, x2 = block(y1, bw1, bb1, bw2, bb2)
    y3, x4, x5 = block(y2, bw1, bb1, bw2, bb2)
    new_out = lin(y3, w2w, w2b)
    projs = [lin(t, w6w, w6b) for t in (y1, x1, x2, x4, x5)]
    y = lin(new_out, w4w, w4b)
    y6 = y
    for i in range(num_stage):          # same un-chained loop as the PyTorch code
        y6, _, _ = block(y, *stages[4 * i:4 * i + 4])
    acc = jnp.zeros_like(y6)
    for t, p_ in zip((y1, x1, x2, x4, x5), projs):
        dist = jnp.sqrt(jnp.sum((t - y6) ** 2))
        acc = acc + (1.0 - jax.nn.sigmoid(p_ * dist)) * t
    yf = y6 + acc
    out = lin(yf, w2w, w2b)
    if unnorm_op:
        out = out * mult
    scale = scale_range * jax.nn.sigmoid(lin(yf, wsw, wsb))
    return out, scale, new_out


# ----------------------------------------------------------------------------
if __name__ == "__main__":
    num_2d_coords = 32     # input_size
    num_3d_coords = 48     # output_size
    linear_size = 64
    num_stage = 2
    scale_range = 2.0
    unnorm_op = True
    unnorm_init = 1.0
    batch = 8              # sublane-aligned (f32 vreg is 8 x 128)

    key = jax.random.PRNGKey(0)
    k_param, k_x = jax.random.split(key)

    flat_params = init_model(k_param, num_2d_coords, num_3d_coords,
                             linear_size, num_stage, unnorm_init)
    param_slab, offsets = pack_param_slab(flat_params, num_stage)
    x = jax.random.normal(k_x, (batch, num_2d_coords), jnp.float32)

    forward = build_forward(offsets, num_3d_coords, linear_size,
                            scale_range, unnorm_op, batch)
    out, scale, new_out = forward(x, param_slab)
    jax.block_until_ready((out, scale, new_out))

    assert out.shape == (batch, num_3d_coords)
    assert scale.shape == (batch, 1)
    assert new_out.shape == (batch, num_3d_coords)

    # correctness vs a pure-JAX/XLA reference of the same eval-mode graph
    r_out, r_scale, r_new = reference_forward(
        x, flat_params, num_stage, scale_range, unnorm_op)
    err = max(float(jnp.max(jnp.abs(a - b)))
              for a, b in zip((out, scale, new_out), (r_out, r_scale, r_new)))
    assert err < 5e-3, f"kernel/reference mismatch: max abs err = {err}"

    print("KERNEL_OK")
</pallas_src>

<mosaic_0001>
module attributes {stable_mosaic.version = 11 : i64} {
  func.func @kernel(%arg0: memref<8x32xf32, #tpu.memory_space<vmem>>, %arg1: memref<480x128xf32, #tpu.memory_space<vmem>>, %arg2: memref<3x8x128xf32, #tpu.memory_space<vmem>>) attributes {dimension_semantics = [], scalar_prefetch = 0 : i64, scratch_operands = 0 : i64, tpu.core_type = #tpu.core_type<tc>} {
    %c0 = arith.constant 0 : index
    %c0_0 = arith.constant 0 : index
    %0 = vector.load %arg0[%c0, %c0_0] : memref<8x32xf32, #tpu.memory_space<vmem>>, vector<8x32xf32>
    %c0_1 = arith.constant 0 : index
    %c0_2 = arith.constant 0 : index
    %1 = vector.load %arg1[%c0_1, %c0_2] : memref<480x128xf32, #tpu.memory_space<vmem>>, vector<32x64xf32>
    %c32 = arith.constant 32 : index
    %c0_3 = arith.constant 0 : index
    %2 = vector.load %arg1[%c32, %c0_3] : memref<480x128xf32, #tpu.memory_space<vmem>>, vector<1x64xf32>
    %cst = arith.constant dense<0.000000e+00> : vector<8x64xf32>
    %3 = tpu.matmul %0, %1, %cst {dimension_numbers = #tpu.dot_dimension_numbers<[1], [0], [0], [1], [0, 0, 1, 1], [], []>, precision = #tpu.contract_precision<fp32>} : vector<8x32xf32>, vector<32x64xf32>, vector<8x64xf32> -> vector<8x64xf32>
    %4 = vector.broadcast %2 : vector<1x64xf32> to vector<8x64xf32>
    %5 = arith.addf %3, %4 : vector<8x64xf32>
    %cst_4 = arith.constant 0.000000e+00 : f32
    %6 = vector.broadcast %cst_4 : f32 to vector<8x64xf32>
    %7 = arith.maximumf %5, %6 : vector<8x64xf32>
    %c40 = arith.constant 40 : index
    %c0_5 = arith.constant 0 : index
    %8 = vector.load %arg1[%c40, %c0_5] : memref<480x128xf32, #tpu.memory_space<vmem>>, vector<64x64xf32>
    %c112 = arith.constant 112 : index
    %c0_6 = arith.constant 0 : index
    %9 = vector.load %arg1[%c112, %c0_6] : memref<480x128xf32, #tpu.memory_space<vmem>>, vector<64x64xf32>
    %c104 = arith.constant 104 : index
    %c0_7 = arith.constant 0 : index
    %10 = vector.load %arg1[%c104, %c0_7] : memref<480x128xf32, #tpu.memory_space<vmem>>, vector<1x64xf32>
    %11 = vector.shape_cast %10 : vector<1x64xf32> to vector<1x64xf32>
    %12 = vector.broadcast %11 : vector<1x64xf32> to vector<8x64xf32>
    %c176 = arith.constant 176 : index
    %c0_8 = arith.constant 0 : index
    %13 = vector.load %arg1[%c176, %c0_8] : memref<480x128xf32, #tpu.memory_space<vmem>>, vector<1x64xf32>
    %14 = vector.shape_cast %13 : vector<1x64xf32> to vector<1x64xf32>
    %15 = vector.broadcast %14 : vector<1x64xf32> to vector<8x64xf32>
    %cst_9 = arith.constant dense<0.000000e+00> : vector<8x64xf32>
    %16 = tpu.matmul %7, %8, %cst_9 {dimension_numbers = #tpu.dot_dimension_numbers<[1], [0], [0], [1], [0, 0, 1, 1], [], []>, precision = #tpu.contract_precision<fp32>} : vector<8x64xf32>, vector<64x64xf32>, vector<8x64xf32> -> vector<8x64xf32>
    %17 = arith.addf %16, %12 : vector<8x64xf32>
    %cst_10 = arith.constant 0.000000e+00 : f32
    %18 = vector.broadcast %cst_10 : f32 to vector<8x64xf32>
    %19 = arith.maximumf %17, %18 : vector<8x64xf32>
    %cst_11 = arith.constant dense<0.000000e+00> : vector<8x64xf32>
    %20 = tpu.matmul %19, %9, %cst_11 {dimension_numbers = #tpu.dot_dimension_numbers<[1], [0], [0], [1], [0, 0, 1, 1], [], []>, precision = #tpu.contract_precision<fp32>} : vector<8x64xf32>, vector<64x64xf32>, vector<8x64xf32> -> vector<8x64xf32>
    %21 = arith.addf %20, %15 : vector<8x64xf32>
    %cst_12 = arith.constant 0.000000e+00 : f32
    %22 = vector.broadcast %cst_12 : f32 to vector<8x64xf32>
    %23 = arith.maximumf %21, %22 : vector<8x64xf32>
    %24 = arith.addf %7, %23 : vector<8x64xf32>
    %cst_13 = arith.constant dense<0.000000e+00> : vector<8x64xf32>
    %25 = tpu.matmul %24, %8, %cst_13 {dimension_numbers = #tpu.dot_dimension_numbers<[1], [0], [0], [1], [0, 0, 1, 1], [], []>, precision = #tpu.contract_precision<fp32>} : vector<8x64xf32>, vector<64x64xf32>, vector<8x64xf32> -> vector<8x64xf32>
    %26 = arith.addf %25, %12 : vector<8x64xf32>
    %cst_14 = arith.constant 0.000000e+00 : f32
    %27 = vector.broadcast %cst_14 : f32 to vector<8x64xf32>
    %28 = arith.maximumf %26, %27 : vector<8x64xf32>
    %cst_15 = arith.constant dense<0.000000e+00> : vector<8x64xf32>
    %29 = tpu.matmul %28, %9, %cst_15 {dimension_numbers = #tpu.dot_dimension_numbers<[1], [0], [0], [1], [0, 0, 1, 1], [], []>, precision = #tpu.contract_precision<fp32>} : vector<8x64xf32>, vector<64x64xf32>, vector<8x64xf32> -> vector<8x64xf32>
    %30 = arith.addf %29, %15 : vector<8x64xf32>
    %cst_16 = arith.constant 0.000000e+00 : f32
    %31 = vector.broadcast %cst_16 : f32 to vector<8x64xf32>
    %32 = arith.maximumf %30, %31 : vector<8x64xf32>
    %33 = arith.addf %24, %32 : vector<8x64xf32>
    %c184 = arith.constant 184 : index
    %c0_17 = arith.constant 0 : index
    %34 = vector.load %arg1[%c184, %c0_17] : memref<480x128xf32, #tpu.memory_space<vmem>>, vector<64x49xf32>
    %c248 = arith.constant 248 : index
    %c0_18 = arith.constant 0 : index
    %35 = vector.load %arg1[%c248, %c0_18] : memref<480x128xf32, #tpu.memory_space<vmem>>, vector<1x49xf32>
    %cst_19 = arith.constant dense<0.000000e+00> : vector<8x49xf32>
    %36 = tpu.matmul %33, %34, %cst_19 {dimension_numbers = #tpu.dot_dimension_numbers<[1], [0], [0], [1], [0, 0, 1, 1], [], []>, precision = #tpu.contract_precision<fp32>} : vector<8x64xf32>, vector<64x49xf32>, vector<8x49xf32> -> vector<8x49xf32>
    %37 = vector.broadcast %35 : vector<1x49xf32> to vector<8x49xf32>
    %38 = arith.addf %36, %37 : vector<8x49xf32>
    %39 = vector.extract_strided_slice %38 {offsets = [0, 0], sizes = [8, 48], strides = [1, 1]} : vector<8x49xf32> to vector<8x48xf32>
    %c272 = arith.constant 272 : index
    %c0_20 = arith.constant 0 : index
    %40 = vector.load %arg1[%c272, %c0_20] : memref<480x128xf32, #tpu.memory_space<vmem>>, vector<48x64xf32>
    %c320 = arith.constant 320 : index
    %c0_21 = arith.constant 0 : index
    %41 = vector.load %arg1[%c320, %c0_21] : memref<480x128xf32, #tpu.memory_space<vmem>>, vector<1x64xf32>
    %cst_22 = arith.constant dense<0.000000e+00> : vector<8x64xf32>
    %42 = tpu.matmul %39, %40, %cst_22 {dimension_numbers = #tpu.dot_dimension_numbers<[1], [0], [0], [1], [0, 0, 1, 1], [], []>, precision = #tpu.contract_precision<fp32>} : vector<8x48xf32>, vector<48x64xf32>, vector<8x64xf32> -> vector<8x64xf32>
    %43 = vector.broadcast %41 : vector<1x64xf32> to vector<8x64xf32>
    %44 = arith.addf %42, %43 : vector<8x64xf32>
    %c336 = arith.constant 336 : index
    %c0_23 = arith.constant 0 : index
    %45 = vector.load %arg1[%c336, %c0_23] : memref<480x128xf32, #tpu.memory_space<vmem>>, vector<64x64xf32>
    %c400 = arith.constant 400 : index
    %c0_24 = arith.constant 0 : index
    %46 = vector.load %arg1[%c400, %c0_24] : memref<480x128xf32, #tpu.memory_space<vmem>>, vector<1x64xf32>
    %c408 = arith.constant 408 : index
    %c0_25 = arith.constant 0 : index
    %47 = vector.load %arg1[%c408, %c0_25] : memref<480x128xf32, #tpu.memory_space<vmem>>, vector<64x64xf32>
    %c472 = arith.constant 472 : index
    %c0_26 = arith.constant 0 : index
    %48 = vector.load %arg1[%c472, %c0_26] : memref<480x128xf32, #tpu.memory_space<vmem>>, vector<1x64xf32>
    %cst_27 = arith.constant dense<0.000000e+00> : vector<8x64xf32>
    %49 = tpu.matmul %44, %45, %cst_27 {dimension_numbers = #tpu.dot_dimension_numbers<[1], [0], [0], [1], [0, 0, 1, 1], [], []>, precision = #tpu.contract_precision<fp32>} : vector<8x64xf32>, vector<64x64xf32>, vector<8x64xf32> -> vector<8x64xf32>
    %50 = vector.broadcast %46 : vector<1x64xf32> to vector<8x64xf32>
    %51 = arith.addf %49, %50 : vector<8x64xf32>
    %cst_28 = arith.constant 0.000000e+00 : f32
    %52 = vector.broadcast %cst_28 : f32 to vector<8x64xf32>
    %53 = arith.maximumf %51, %52 : vector<8x64xf32>
    %cst_29 = arith.constant dense<0.000000e+00> : vector<8x64xf32>
    %54 = tpu.matmul %53, %47, %cst_29 {dimension_numbers = #tpu.dot_dimension_numbers<[1], [0], [0], [1], [0, 0, 1, 1], [], []>, precision = #tpu.contract_precision<fp32>} : vector<8x64xf32>, vector<64x64xf32>, vector<8x64xf32> -> vector<8x64xf32>
    %55 = vector.broadcast %48 : vector<1x64xf32> to vector<8x64xf32>
    %56 = arith.addf %54, %55 : vector<8x64xf32>
    %cst_30 = arith.constant 0.000000e+00 : f32
    %57 = vector.broadcast %cst_30 : f32 to vector<8x64xf32>
    %58 = arith.maximumf %56, %57 : vector<8x64xf32>
    %59 = arith.addf %44, %58 : vector<8x64xf32>
    %60 = vector.shape_cast %7 : vector<8x64xf32> to vector<1x8x64xf32>
    %61 = vector.shape_cast %19 : vector<8x64xf32> to vector<1x8x64xf32>
    %62 = vector.shape_cast %23 : vector<8x64xf32> to vector<1x8x64xf32>
    %63 = vector.shape_cast %28 : vector<8x64xf32> to vector<1x8x64xf32>
    %64 = vector.shape_cast %32 : vector<8x64xf32> to vector<1x8x64xf32>
    %65 = tpu.concatenate %60, %61, %62, %63, %64 in 0 : vector<1x8x64xf32>, vector<1x8x64xf32>, vector<1x8x64xf32>, vector<1x8x64xf32>, vector<1x8x64xf32> -> vector<5x8x64xf32>
    %c256 = arith.constant 256 : index
    %c0_31 = arith.constant 0 : index
    %66 = vector.load %arg1[%c256, %c0_31] : memref<480x128xf32, #tpu.memory_space<vmem>>, vector<1x64xf32>
    %c264 = arith.constant 264 : index
    %c0_32 = arith.constant 0 : index
    %67 = vector.load %arg1[%c264, %c0_32] : memref<480x128xf32, #tpu.memory_space<vmem>>, vector<1x1xf32>
    %68 = vector.shape_cast %66 : vector<1x64xf32> to vector<1x1x64xf32>
    %69 = vector.broadcast %68 : vector<1x1x64xf32> to vector<5x8x64xf32>
    %70 = arith.mulf %65, %69 : vector<5x8x64xf32>
    %cst_33 = arith.constant dense<0.000000e+00> : vector<5x8xf32>
    %71 = vector.multi_reduction <add>, %70, %cst_33 [2] : vector<5x8x64xf32> to vector<5x8xf32>
    %72 = vector.shape_cast %71 : vector<5x8xf32> to vector<5x8x1xf32>
    %73 = vector.shape_cast %67 : vector<1x1xf32> to vector<1x1x1xf32>
    %74 = vector.broadcast %73 : vector<1x1x1xf32> to vector<5x8x1xf32>
    %75 = arith.addf %72, %74 : vector<5x8x1xf32>
    %76 = vector.shape_cast %59 : vector<8x64xf32> to vector<1x8x64xf32>
    %77 = vector.broadcast %76 : vector<1x8x64xf32> to vector<5x8x64xf32>
    %78 = arith.subf %65, %77 : vector<5x8x64xf32>
    %79 = arith.mulf %78, %78 : vector<5x8x64xf32>
    %cst_34 = arith.constant dense<0.000000e+00> : vector<5x8xf32>
    %80 = vector.multi_reduction <add>, %79, %cst_34 [2] : vector<5x8x64xf32> to vector<5x8xf32>
    %81 = vector.shape_cast %80 : vector<5x8xf32> to vector<5x8x1xf32>
    %cst_35 = arith.constant dense<0.000000e+00> : vector<5x1xf32>
    %82 = vector.multi_reduction <add>, %81, %cst_35 [1] : vector<5x8x1xf32> to vector<5x1xf32>
    %83 = vector.shape_cast %82 : vector<5x1xf32> to vector<5x1x1xf32>
    %84 = math.sqrt %83 : vector<5x1x1xf32>
    %85 = vector.broadcast %84 : vector<5x1x1xf32> to vector<5x8x1xf32>
    %86 = arith.mulf %75, %85 : vector<5x8x1xf32>
    %cst_36 = arith.constant 0.000000e+00 : f32
    %87 = vector.broadcast %cst_36 : f32 to vector<5x8x1xf32>
    %88 = arith.subf %87, %86 : vector<5x8x1xf32>
    %89 = math.exp %88 : vector<5x8x1xf32>
    %cst_37 = arith.constant 1.000000e+00 : f32
    %90 = vector.broadcast %cst_37 : f32 to vector<5x8x1xf32>
    %91 = arith.addf %90, %89 : vector<5x8x1xf32>
    %cst_38 = arith.constant 1.000000e+00 : f32
    %92 = vector.broadcast %cst_38 : f32 to vector<5x8x1xf32>
    %93 = arith.divf %92, %91 : vector<5x8x1xf32>
    %cst_39 = arith.constant 1.000000e+00 : f32
    %94 = vector.broadcast %cst_39 : f32 to vector<5x8x1xf32>
    %95 = arith.subf %94, %93 : vector<5x8x1xf32>
    %96 = vector.broadcast %95 : vector<5x8x1xf32> to vector<5x8x64xf32>
    %97 = arith.mulf %96, %65 : vector<5x8x64xf32>
    %98 = vector.extract_strided_slice %97 {offsets = [0, 0, 0], sizes = [1, 8, 64], strides = [1, 1, 1]} : vector<5x8x64xf32> to vector<1x8x64xf32>
    %99 = vector.shape_cast %98 : vector<1x8x64xf32> to vector<8x64xf32>
    %100 = vector.extract_strided_slice %97 {offsets = [1, 0, 0], sizes = [1, 8, 64], strides = [1, 1, 1]} : vector<5x8x64xf32> to vector<1x8x64xf32>
    %101 = vector.shape_cast %100 : vector<1x8x64xf32> to vector<8x64xf32>
    %102 = arith.addf %99, %101 : vector<8x64xf32>
    %103 = vector.extract_strided_slice %97 {offsets = [2, 0, 0], sizes = [1, 8, 64], strides = [1, 1, 1]} : vector<5x8x64xf32> to vector<1x8x64xf32>
    %104 = vector.shape_cast %103 : vector<1x8x64xf32> to vector<8x64xf32>
    %105 = arith.addf %102, %104 : vector<8x64xf32>
    %106 = vector.extract_strided_slice %97 {offsets = [3, 0, 0], sizes = [1, 8, 64], strides = [1, 1, 1]} : vector<5x8x64xf32> to vector<1x8x64xf32>
    %107 = vector.shape_cast %106 : vector<1x8x64xf32> to vector<8x64xf32>
    %108 = arith.addf %105, %107 : vector<8x64xf32>
    %109 = vector.extract_strided_slice %97 {offsets = [4, 0, 0], sizes = [1, 8, 64], strides = [1, 1, 1]} : vector<5x8x64xf32> to vector<1x8x64xf32>
    %110 = vector.shape_cast %109 : vector<1x8x64xf32> to vector<8x64xf32>
    %111 = arith.addf %108, %110 : vector<8x64xf32>
    %112 = arith.addf %59, %111 : vector<8x64xf32>
    %cst_40 = arith.constant dense<0.000000e+00> : vector<8x49xf32>
    %113 = tpu.matmul %112, %34, %cst_40 {dimension_numbers = #tpu.dot_dimension_numbers<[1], [0], [0], [1], [0, 0, 1, 1], [], []>, precision = #tpu.contract_precision<fp32>} : vector<8x64xf32>, vector<64x49xf32>, vector<8x49xf32> -> vector<8x49xf32>
    %114 = vector.broadcast %35 : vector<1x49xf32> to vector<8x49xf32>
    %115 = arith.addf %113, %114 : vector<8x49xf32>
    %116 = vector.extract_strided_slice %115 {offsets = [0, 0], sizes = [8, 48], strides = [1, 1]} : vector<8x49xf32> to vector<8x48xf32>
    %c328 = arith.constant 328 : index
    %c0_41 = arith.constant 0 : index
    %117 = vector.load %arg1[%c328, %c0_41] : memref<480x128xf32, #tpu.memory_space<vmem>>, vector<1x48xf32>
    %118 = vector.broadcast %117 : vector<1x48xf32> to vector<8x48xf32>
    %119 = arith.mulf %116, %118 : vector<8x48xf32>
    %120 = vector.extract_strided_slice %115 {offsets = [0, 48], sizes = [8, 1], strides = [1, 1]} : vector<8x49xf32> to vector<8x1xf32>
    %cst_42 = arith.constant 0.000000e+00 : f32
    %121 = vector.broadcast %cst_42 : f32 to vector<8x1xf32>
    %122 = arith.subf %121, %120 : vector<8x1xf32>
    %123 = math.exp %122 : vector<8x1xf32>
    %cst_43 = arith.constant 1.000000e+00 : f32
    %124 = vector.broadcast %cst_43 : f32 to vector<8x1xf32>
    %125 = arith.addf %124, %123 : vector<8x1xf32>
    %cst_44 = arith.constant 1.000000e+00 : f32
    %126 = vector.broadcast %cst_44 : f32 to vector<8x1xf32>
    %127 = arith.divf %126, %125 : vector<8x1xf32>
    %cst_45 = arith.constant 2.000000e+00 : f32
    %128 = vector.broadcast %cst_45 : f32 to vector<8x1xf32>
    %129 = arith.mulf %128, %127 : vector<8x1xf32>
    %cst_46 = arith.constant 0.000000e+00 : f32
    %130 = vector.broadcast %cst_46 : f32 to vector<3x8x128xf32>
    %c0_47 = arith.constant 0 : index
    %c0_48 = arith.constant 0 : index
    %c0_49 = arith.constant 0 : index
    %131 = vector.load %arg2[%c0_47, %c0_48, %c0_49] : memref<3x8x128xf32, #tpu.memory_space<vmem>>, vector<3x8x128xf32>
    tpu.vector_store %arg2[%c0_47, %c0_48, %c0_49], %130 {strides = array<i32>} : memref<3x8x128xf32, #tpu.memory_space<vmem>>, vector<3x8x128xf32>,
    %c0_50 = arith.constant 0 : index
    %c0_51 = arith.constant 0 : index
    %c0_52 = arith.constant 0 : index
    %132 = vector.load %arg2[%c0_50, %c0_51, %c0_52] : memref<3x8x128xf32, #tpu.memory_space<vmem>>, vector<1x8x48xf32>
    %133 = vector.shape_cast %132 : vector<1x8x48xf32> to vector<8x48xf32>
    %134 = vector.shape_cast %119 : vector<8x48xf32> to vector<1x8x48xf32>
    tpu.vector_store %arg2[%c0_50, %c0_51, %c0_52], %134 {strides = array<i32>} : memref<3x8x128xf32, #tpu.memory_space<vmem>>, vector<1x8x48xf32>,
    %c1 = arith.constant 1 : index
    %c0_53 = arith.constant 0 : index
    %c0_54 = arith.constant 0 : index
    %135 = vector.load %arg2[%c1, %c0_53, %c0_54] : memref<3x8x128xf32, #tpu.memory_space<vmem>>, vector<1x8x48xf32>
    %136 = vector.shape_cast %135 : vector<1x8x48xf32> to vector<8x48xf32>
    %137 = vector.shape_cast %39 : vector<8x48xf32> to vector<1x8x48xf32>
    tpu.vector_store %arg2[%c1, %c0_53, %c0_54], %137 {strides = array<i32>} : memref<3x8x128xf32, #tpu.memory_space<vmem>>, vector<1x8x48xf32>,
    %c2 = arith.constant 2 : index
    %c0_55 = arith.constant 0 : index
    %c0_56 = arith.constant 0 : index
    %138 = vector.load %arg2[%c2, %c0_55, %c0_56] : memref<3x8x128xf32, #tpu.memory_space<vmem>>, vector<1x8x1xf32>
    %139 = vector.shape_cast %138 : vector<1x8x1xf32> to vector<8x1xf32>
    %140 = vector.shape_cast %129 : vector<8x1xf32> to vector<1x8x1xf32>
    tpu.vector_store %arg2[%c2, %c0_55, %c0_56], %140 {strides = array<i32>} : memref<3x8x128xf32, #tpu.memory_space<vmem>>, vector<1x8x1xf32>,
    return
  }
}

</mosaic_0001>

<llo_original>
// kernel: forward.1
$region0: #{forward.1}
  #allocation0 [shape = 'u32[]', space=smem, size = 0x4, offset = 0x4, fixed_abs, tag = 'smem constant byte address 0x4 - core index']
  #allocation1 [shape = 'u32[144,128]{1,0:T(1,128)}', space=vmem, size = 0x12000, scoped, tag = 'internal scratch']
  %s0 = inlined_call_operand.hbm [shape: f32[8,32], index: 0, kind: input, shape index: {}]
  %s1 = inlined_call_operand.hbm [shape: f32[480,128], index: 1, kind: input, shape index: {}]
  %s2 = inlined_call_operand.vmem [shape: f32[3,8,128], index: 2, kind: output, shape index: {}]
  %s3 = sld [smem:[#allocation0]]
  $region26: #{forward.1} parent=0
    _
  %s5 = ssub.s32 1, %s3
  %s6 = scalar_select 0, %s5, %s3
  $region1: #{forward.1} parent=0
    #allocation2 [shape = 'u8[4096]{0}', space=vmem, size = 0x1000, scoped, tag = 'input window, operand 0, single buffered']
    #allocation3 [shape = 's32[1]{0}', space=sflag, size = 0x4, scoped, tag = 'scoped memory for forward.1']
    #allocation4 [shape = 'u8[245760]{0}', space=vmem, size = 0x3c000, scoped, tag = 'input window, operand 1, single buffered']
    #allocation5 [shape = 's32[1]{0}', space=sflag, size = 0x4, scoped, tag = 'scoped memory for forward.1']
    %7 = vsyncpa [#allocation3], 0
    %8 = vsyncpa [#allocation5], 0
    // Predicated region
    $region2: #{forward.1} parent=1 // pred_check
      _
    $region3: #{forward.1} parent=1 // pred_check_branch
      %10 = sbr.rel (0) target = $region5
    $region4: #{forward.1} parent=1 // pred_region
      %s12 = ssub.s32 128, 128
      %13 = vsyncadd [#allocation3], %s12
      %s15 = sshll.u32 [#allocation2], 4
      %s16 = int_to_ptr.vmem [resolvable:$true] %s15
      %18 = dma.hbm_to_vmem [thread:$0]  %s0, 128, %s16, [#allocation3]
    $region5: #{forward.1} parent=1 // pred_fallthru
      _
    // Predicated region
    $region6: #{forward.1} parent=1 // pred_check
      _
    $region7: #{forward.1} parent=1 // pred_check_branch
      %20 = sbr.rel (0) target = $region9
    $region8: #{forward.1} parent=1 // pred_region
      %s22 = ssub.s32 7680, 7680
      %23 = vsyncadd [#allocation5], %s22
      %s24 = sshll.u32 [#allocation4], 4
      %s25 = int_to_ptr.vmem [resolvable:$true] %s24
      %30 = dma.hbm_to_vmem [thread:$0]  %s1, 7680, %s25, [#allocation5], 128, 128, 8
    $region9: #{forward.1} parent=1 // pred_fallthru
      _
    // Predicated region
    $region10: #{forward.1} parent=1 // pred_check
      _
    $region11: #{forward.1} parent=1 // pred_check_branch
      %32 = sbr.rel (0) target = $region13
    $region12: #{forward.1} parent=1 // pred_region
      %33 = dma.done [#allocation3], 128
    $region13: #{forward.1} parent=1 // pred_fallthru
      _
    // Predicated region
    $region14: #{forward.1} parent=1 // pred_check
      _
    $region15: #{forward.1} parent=1 // pred_check_branch
      %35 = sbr.rel (0) target = $region17
    $region16: #{forward.1} parent=1 // pred_region
      %36 = dma.done [#allocation5], 7680
    $region17: #{forward.1} parent=1 // pred_fallthru
      _
    %v37 = vld [vmem:[#allocation2] sm:$0xff]
    %v38 = vld [vmem:[#allocation4] sm:$0xff]
    %v39 = vld [vmem:[#allocation4 + $0x8] sm:$0xff]
    %v40 = vld [vmem:[#allocation4 + $0x10] sm:$0xff]
    %v41 = vld [vmem:[#allocation4 + $0x18] sm:$0xff]
    %v42 = vld [vmem:[#allocation4 + $0x20] sm:$0x1]
    %v43 = vlaneseq
    %v44 = vshrl.u32 %v43, 7
    %v45 = vsub.s32 0, %v44
    %v46 = vrot.slane %v42, %v45
    %vm47 = vcmask 261120
    %v49 = vsel %vm47, %v37, 0
    %51 = vmatprep.subr.mxu0 0.0
    %v52 = vand.u32 %v38, 4294901760
    %53 = vmatpush1.msra.mxu0 %v52
    %54 = vmatprep.subr.mxu0 0.0
    %v55 = vand.u32 %v39, 4294901760
    %56 = vmatpush1.msra.mxu0 %v55
    %57 = vmatprep.subr.mxu0 0.0
    %v58 = vand.u32 %v40, 4294901760
    %59 = vmatpush1.msra.mxu0 %v58
    %60 = vmatprep.subr.mxu0 0.0
    %v61 = vand.u32 %v41, 4294901760
    %62 = vmatpush1.msra.mxu0 %v61
    %63 = vmatprep.subr.mxu0 0.0
    %64 = vmatpush1.msra.mxu0 0.0
    %65 = vmatprep.subr.mxu0 0.0
    %66 = vmatpush1.msra.mxu0 0.0
    %67 = vmatprep.subr.mxu0 0.0
    %68 = vmatpush1.msra.mxu0 0.0
    %69 = vmatprep.subr.mxu0 0.0
    %70 = vmatpush1.msra.mxu0 0.0
    %71 = vmatprep.subr.mxu0 0.0
    %72 = vmatpush1.msra.mxu0 0.0
    %73 = vmatprep.subr.mxu0 0.0
    %74 = vmatpush1.msra.mxu0 0.0
    %75 = vmatprep.subr.mxu0 0.0
    %76 = vmatpush1.msra.mxu0 0.0
    %77 = vmatprep.subr.mxu0 0.0
    %78 = vmatpush1.msra.mxu0 0.0
    %79 = vmatprep.subr.mxu0 0.0
    %80 = vmatpush1.msra.mxu0 0.0
    %81 = vmatprep.subr.mxu0 0.0
    %82 = vmatpush1.msra.mxu0 0.0
    %83 = vmatprep.subr.mxu0 0.0
    %84 = vmatpush1.msra.mxu0 0.0
    %85 = vmatprep.subr.mxu0 0.0
    %86 = vmatpush1.msra.mxu0 0.0
    %87 = vmatprep.subr.mxu0 0.0
    %88 = vmatpush1.msra.mxu0 0.0
    %89 = vmatprep.subr.mxu0 0.0
    %90 = vmatpush1.msra.mxu0 0.0
    %91 = vmatprep.subr.mxu0 0.0
    %92 = vmatpush1.msra.mxu0 0.0
    %93 = vmatprep.subr.mxu0 0.0
    %94 = vmatpush1.msra.mxu0 0.0
    %95 = vmatprep.subr.mxu0 0.0
    %96 = vmatpush1.msra.mxu0 0.0
    %97 = vmatprep.subr.mxu0 0.0
    %98 = vmatpush1.msra.mxu0 0.0
    %99 = vmatprep.subr.mxu0 0.0
    %100 = vmatpush1.msra.mxu0 0.0
    %101 = vmatprep.subr.mxu0 0.0
    %102 = vmatpush1.msra.mxu0 0.0
    %103 = vmatprep.subr.mxu0 0.0
    %104 = vmatpush1.msra.mxu0 0.0
    %105 = vmatprep.subr.mxu0 0.0
    %106 = vmatpush1.msra.mxu0 0.0
    %107 = vmatprep.subr.mxu0 0.0
    %108 = vmatpush1.msra.mxu0 0.0
    %109 = vmatprep.subr.mxu0 0.0
    %110 = vmatpush1.msra.mxu0 0.0
    %111 = vmatprep.subr.mxu0 0.0
    %112 = vmatpush1.msra.mxu0 0.0
    %113 = vmatprep.subr.mxu0 0.0
    %114 = vmatpush1.msra.mxu0 0.0
    %115 = vmatprep.subr.mxu0 0.0
    %116 = vmatpush1.msra.mxu0 0.0
    %117 = vmatprep.subr.mxu0 0.0
    %118 = vmatpush1.msra.mxu0 0.0
    %119 = vmatprep.mubr.f32.mxu0 0.0
    %v120 = vand.u32 %v49, 4294901760
    %v121 = vsub.f32 %v49, %v120
    %v122 = vand.u32 %v121, 4294901760
    %v123 = vsub.f32 %v121, %v122
    %v124 = vand.u32 %v123, 4294901760
    %125 = vmatmul.mubr.f32.gmra.mrb[0].mxu0 %v124
    %v126 = vpop.f32.mrb[0].mxu0
    %v127 = vadd.f32 %v46, %v126
    %v128 = vpop.f32.mrb[0].mxu0
    %129 = vdwg.mxu0
    %130 = vmatprep.subr.mxu0 0.0
    %v131 = vand.u32 %v38, 4294901760
    %v132 = vsub.f32 %v38, %v131
    %v133 = vand.u32 %v132, 4294901760
    %v134 = vsub.f32 %v132, %v133
    %v135 = vand.u32 %v134, 4294901760
    %136 = vmatpush1.msra.mxu0 %v135
    %137 = vmatprep.subr.mxu0 0.0
    %v138 = vand.u32 %v39, 4294901760
    %v139 = vsub.f32 %v39, %v138
    %v140 = vand.u32 %v139, 4294901760
    %v141 = vsub.f32 %v139, %v140
    %v142 = vand.u32 %v141, 4294901760
    %143 = vmatpush1.msra.mxu0 %v142
    %144 = vmatprep.subr.mxu0 0.0
    %v145 = vand.u32 %v40, 4294901760
    %v146 = vsub.f32 %v40, %v145
    %v147 = vand.u32 %v146, 4294901760
    %v148 = vsub.f32 %v146, %v147
    %v149 = vand.u32 %v148, 4294901760
    %150 = vmatpush1.msra.mxu0 %v149
    %151 = vmatprep.subr.mxu0 0.0
    %v152 = vand.u32 %v41, 4294901760
    %v153 = vsub.f32 %v41, %v152
    %v154 = vand.u32 %v153, 4294901760
    %v155 = vsub.f32 %v153, %v154
    %v156 = vand.u32 %v155, 4294901760
    %157 = vmatpush1.msra.mxu0 %v156
    %158 = vmatprep.subr.mxu0 0.0
    %159 = vmatpush1.msra.mxu0 0.0
    %160 = vmatprep.subr.mxu0 0.0
    %161 = vmatpush1.msra.mxu0 0.0
    %162 = vmatprep.subr.mxu0 0.0
    %163 = vmatpush1.msra.mxu0 0.0
    %164 = vmatprep.subr.mxu0 0.0
    %165 = vmatpush1.msra.mxu0 0.0
    %166 = vmatprep.subr.mxu0 0.0
    %167 = vmatpush1.msra.mxu0 0.0
    %168 = vmatprep.subr.mxu0 0.0
    %169 = vmatpush1.msra.mxu0 0.0
    %170 = vmatprep.subr.mxu0 0.0
    %171 = vmatpush1.msra.mxu0 0.0
    %172 = vmatprep.subr.mxu0 0.0
    %173 = vmatpush1.msra.mxu0 0.0
    %174 = vmatprep.subr.mxu0 0.0
    %175 = vmatpush1.msra.mxu0 0.0
    %176 = vmatprep.subr.mxu0 0.0
    %177 = vmatpush1.msra.mxu0 0.0
    %178 = vmatprep.subr.mxu0 0.0
    %179 = vmatpush1.msra.mxu0 0.0
    %180 = vmatprep.subr.mxu0 0.0
    %181 = vmatpush1.msra.mxu0 0.0
    %182 = vmatprep.subr.mxu0 0.0
    %183 = vmatpush1.msra.mxu0 0.0
    %184 = vmatprep.subr.mxu0 0.0
    %185 = vmatpush1.msra.mxu0 0.0
    %186 = vmatprep.subr.mxu0 0.0
    %187 = vmatpush1.msra.mxu0 0.0
    %188 = vmatprep.subr.mxu0 0.0
    %189 = vmatpush1.msra.mxu0 0.0
    %190 = vmatprep.subr.mxu0 0.0
    %191 = vmatpush1.msra.mxu0 0.0
    %192 = vmatprep.subr.mxu0 0.0
    %193 = vmatpush1.msra.mxu0 0.0
    %194 = vmatprep.subr.mxu0 0.0
    %195 = vmatpush1.msra.mxu0 0.0
    %196 = vmatprep.subr.mxu0 0.0
    %197 = vmatpush1.msra.mxu0 0.0
    %198 = vmatprep.subr.mxu0 0.0
    %199 = vmatpush1.msra.mxu0 0.0
    %200 = vmatprep.subr.mxu0 0.0
    %201 = vmatpush1.msra.mxu0 0.0
    %202 = vmatprep.subr.mxu0 0.0
    %203 = vmatpush1.msra.mxu0 0.0
    %204 = vmatprep.subr.mxu0 0.0
    %205 = vmatpush1.msra.mxu0 0.0
    %206 = vmatprep.subr.mxu0 0.0
    %207 = vmatpush1.msra.mxu0 0.0
    %208 = vmatprep.subr.mxu0 0.0
    %209 = vmatpush1.msra.mxu0 0.0
    %210 = vmatprep.subr.mxu0 0.0
    %211 = vmatpush1.msra.mxu0 0.0
    %212 = vmatprep.subr.mxu0 0.0
    %213 = vmatpush1.msra.mxu0 0.0
    %214 = vmatprep.mubr.f32.mxu0 0.0
    %v215 = vand.u32 %v49, 4294901760
    %216 = vmatmul.mubr.f32.gmra.mrb[0].mxu0 %v215
    %v217 = vpop.f32.mrb[0].mxu0
    %v218 = vadd.f32 %v127, %v217
    %v219 = vpop.f32.mrb[0].mxu0
    %220 = vdwg.mxu0
    %221 = vmatprep.subr.mxu0 0.0
    %v222 = vand.u32 %v38, 4294901760
    %v223 = vsub.f32 %v38, %v222
    %224 = vmatpush1.msra.mxu0 %v223
    %225 = vmatprep.subr.mxu0 0.0
    %v226 = vand.u32 %v39, 4294901760
    %v227 = vsub.f32 %v39, %v226
    %228 = vmatpush1.msra.mxu0 %v227
    %229 = vmatprep.subr.mxu0 0.0
    %v230 = vand.u32 %v40, 4294901760
    %v231 = vsub.f32 %v40, %v230
    %232 = vmatpush1.msra.mxu0 %v231
    %233 = vmatprep.subr.mxu0 0.0
    %v234 = vand.u32 %v41, 4294901760
    %v235 = vsub.f32 %v41, %v234
    %236 = vmatpush1.msra.mxu0 %v235
    %237 = vmatprep.subr.mxu0 0.0
    %238 = vmatpush1.msra.mxu0 0.0
    %239 = vmatprep.subr.mxu0 0.0
    %240 = vmatpush1.msra.mxu0 0.0
    %241 = vmatprep.subr.mxu0 0.0
    %242 = vmatpush1.msra.mxu0 0.0
    %243 = vmatprep.subr.mxu0 0.0
    %244 = vmatpush1.msra.mxu0 0.0
    %245 = vmatprep.subr.mxu0 0.0
    %246 = vmatpush1.msra.mxu0 0.0
    %247 = vmatprep.subr.mxu0 0.0
    %248 = vmatpush1.msra.mxu0 0.0
    %249 = vmatprep.subr.mxu0 0.0
    %250 = vmatpush1.msra.mxu0 0.0
    %251 = vmatprep.subr.mxu0 0.0
    %252 = vmatpush1.msra.mxu0 0.0
    %253 = vmatprep.subr.mxu0 0.0
    %254 = vmatpush1.msra.mxu0 0.0
    %255 = vmatprep.subr.mxu0 0.0
    %256 = vmatpush1.msra.mxu0 0.0
    %257 = vmatprep.subr.mxu0 0.0
    %258 = vmatpush1.msra.mxu0 0.0
    %259 = vmatprep.subr.mxu0 0.0
    %260 = vmatpush1.msra.mxu0 0.0
    %261 = vmatprep.subr.mxu0 0.0
    %262 = vmatpush1.msra.mxu0 0.0
    %263 = vmatprep.subr.mxu0 0.0
    %264 = vmatpush1.msra.mxu0 0.0
    %265 = vmatprep.subr.mxu0 0.0
    %266 = vmatpush1.msra.mxu0 0.0
    %267 = vmatprep.subr.mxu0 0.0
    %268 = vmatpush1.msra.mxu0 0.0
    %269 = vmatprep.subr.mxu0 0.0
    %270 = vmatpush1.msra.mxu0 0.0
    %271 = vmatprep.subr.mxu0 0.0
    %272 = vmatpush1.msra.mxu0 0.0
    %273 = vmatprep.subr.mxu0 0.0
    %274 = vmatpush1.msra.mxu0 0.0
    %275 = vmatprep.subr.mxu0 0.0
    %276 = vmatpush1.msra.mxu0 0.0
    %277 = vmatprep.subr.mxu0 0.0
    %278 = vmatpush1.msra.mxu0 0.0
    %279 = vmatprep.subr.mxu0 0.0
    %280 = vmatpush1.msra.mxu0 0.0
    %281 = vmatprep.subr.mxu0 0.0
    %282 = vmatpush1.msra.mxu0 0.0
    %283 = vmatprep.subr.mxu0 0.0
    %284 = vmatpush1.msra.mxu0 0.0
    %285 = vmatprep.subr.mxu0 0.0
    %286 = vmatpush1.msra.mxu0 0.0
    %287 = vmatprep.subr.mxu0 0.0
    %288 = vmatpush1.msra.mxu0 0.0
    %289 = vmatprep.subr.mxu0 0.0
    %290 = vmatpush1.msra.mxu0 0.0
    %291 = vmatprep.subr.mxu0 0.0
    %292 = vmatpush1.msra.mxu0 0.0
    %293 = vmatprep.mubr.f32.mxu0 0.0
    %v294 = vand.u32 %v49, 4294901760
    %v295 = vsub.f32 %v49, %v294
    %296 = vmatmul.mubr.f32.gmra.mrb[0].mxu0 %v295
    %v297 = vpop.f32.mrb[0].mxu0
    %v298 = vadd.f32 %v218, %v297
    %v299 = vpop.f32.mrb[0].mxu0
    %300 = vdwg.mxu0
    %301 = vmatprep.subr.mxu0 0.0
    %v302 = vand.u32 %v38, 4294901760
    %303 = vmatpush1.msra.mxu0 %v302
    %304 = vmatprep.subr.mxu0 0.0
    %v305 = vand.u32 %v39, 4294901760
    %306 = vmatpush1.msra.mxu0 %v305
    %307 = vmatprep.subr.mxu0 0.0
    %v308 = vand.u32 %v40, 4294901760
    %309 = vmatpush1.msra.mxu0 %v308
    %310 = vmatprep.subr.mxu0 0.0
    %v311 = vand.u32 %v41, 4294901760
    %312 = vmatpush1.msra.mxu0 %v311
    %313 = vmatprep.subr.mxu0 0.0
    %314 = vmatpush1.msra.mxu0 0.0
    %315 = vmatprep.subr.mxu0 0.0
    %316 = vmatpush1.msra.mxu0 0.0
    %317 = vmatprep.subr.mxu0 0.0
    %318 = vmatpush1.msra.mxu0 0.0
    %319 = vmatprep.subr.mxu0 0.0
    %320 = vmatpush1.msra.mxu0 0.0
    %321 = vmatprep.subr.mxu0 0.0
    %322 = vmatpush1.msra.mxu0 0.0
    %323 = vmatprep.subr.mxu0 0.0
    %324 = vmatpush1.msra.mxu0 0.0
    %325 = vmatprep.subr.mxu0 0.0
    %326 = vmatpush1.msra.mxu0 0.0
    %327 = vmatprep.subr.mxu0 0.0
    %328 = vmatpush1.msra.mxu0 0.0
    %329 = vmatprep.subr.mxu0 0.0
    %330 = vmatpush1.msra.mxu0 0.0
    %331 = vmatprep.subr.mxu0 0.0
    %332 = vmatpush1.msra.mxu0 0.0
    %333 = vmatprep.subr.mxu0 0.0
    %334 = vmatpush1.msra.mxu0 0.0
    %335 = vmatprep.subr.mxu0 0.0
    %336 = vmatpush1.msra.mxu0 0.0
    %337 = vmatprep.subr.mxu0 0.0
    %338 = vmatpush1.msra.mxu0 0.0
    %339 = vmatprep.subr.mxu0 0.0
    %340 = vmatpush1.msra.mxu0 0.0
    %341 = vmatprep.subr.mxu0 0.0
    %342 = vmatpush1.msra.mxu0 0.0
    %343 = vmatprep.subr.mxu0 0.0
    %344 = vmatpush1.msra.mxu0 0.0
    %345 = vmatprep.subr.mxu0 0.0
    %346 = vmatpush1.msra.mxu0 0.0
    %347 = vmatprep.subr.mxu0 0.0
    %348 = vmatpush1.msra.mxu0 0.0
    %349 = vmatprep.subr.mxu0 0.0
    %350 = vmatpush1.msra.mxu0 0.0
    %351 = vmatprep.subr.mxu0 0.0
    %352 = vmatpush1.msra.mxu0 0.0
    %353 = vmatprep.subr.mxu0 0.0
    %354 = vmatpush1.msra.mxu0 0.0
    %355 = vmatprep.subr.mxu0 0.0
    %356 = vmatpush1.msra.mxu0 0.0
    %357 = vmatprep.subr.mxu0 0.0
    %358 = vmatpush1.msra.mxu0 0.0
    %359 = vmatprep.subr.mxu0 0.0
    %360 = vmatpush1.msra.mxu0 0.0
    %361 = vmatprep.subr.mxu0 0.0
    %362 = vmatpush1.msra.mxu0 0.0
    %363 = vmatprep.subr.mxu0 0.0
    %364 = vmatpush1.msra.mxu0 0.0
    %365 = vmatprep.subr.mxu0 0.0
    %366 = vmatpush1.msra.mxu0 0.0
    %367 = vmatprep.subr.mxu0 0.0
    %368 = vmatpush1.msra.mxu0 0.0
    %369 = vmatprep.mubr.f32.mxu0 0.0
    %v370 = vand.u32 %v49, 4294901760
    %v371 = vsub.f32 %v49, %v370
    %v372 = vand.u32 %v371, 4294901760
    %373 = vmatmul.mubr.f32.gmra.mrb[0].mxu0 %v372
    %v374 = vpop.f32.mrb[0].mxu0
    %v375 = vadd.f32 %v298, %v374
    %v376 = vpop.f32.mrb[0].mxu0
    %377 = vdwg.mxu0
    %378 = vmatprep.subr.mxu0 0.0
    %v379 = vand.u32 %v38, 4294901760
    %v380 = vsub.f32 %v38, %v379
    %v381 = vand.u32 %v380, 4294901760
    %382 = vmatpush1.msra.mxu0 %v381
    %383 = vmatprep.subr.mxu0 0.0
    %v384 = vand.u32 %v39, 4294901760
    %v385 = vsub.f32 %v39, %v384
    %v386 = vand.u32 %v385, 4294901760
    %387 = vmatpush1.msra.mxu0 %v386
    %388 = vmatprep.subr.mxu0 0.0
    %v389 = vand.u32 %v40, 4294901760
    %v390 = vsub.f32 %v40, %v389
    %v391 = vand.u32 %v390, 4294901760
    %392 = vmatpush1.msra.mxu0 %v391
    %393 = vmatprep.subr.mxu0 0.0
    %v394 = vand.u32 %v41, 4294901760
    %v395 = vsub.f32 %v41, %v394
    %v396 = vand.u32 %v395, 4294901760
    %397 = vmatpush1.msra.mxu0 %v396
    %398 = vmatprep.subr.mxu0 0.0
    %399 = vmatpush1.msra.mxu0 0.0
    %400 = vmatprep.subr.mxu0 0.0
    %401 = vmatpush1.msra.mxu0 0.0
    %402 = vmatprep.subr.mxu0 0.0
    %403 = vmatpush1.msra.mxu0 0.0
    %404 = vmatprep.subr.mxu0 0.0
    %405 = vmatpush1.msra.mxu0 0.0
    %406 = vmatprep.subr.mxu0 0.0
    %407 = vmatpush1.msra.mxu0 0.0
    %408 = vmatprep.subr.mxu0 0.0
    %409 = vmatpush1.msra.mxu0 0.0
    %410 = vmatprep.subr.mxu0 0.0
    %411 = vmatpush1.msra.mxu0 0.0
    %412 = vmatprep.subr.mxu0 0.0
    %413 = vmatpush1.msra.mxu0 0.0
    %414 = vmatprep.subr.mxu0 0.0
    %415 = vmatpush1.msra.mxu0 0.0
    %416 = vmatprep.subr.mxu0 0.0
    %417 = vmatpush1.msra.mxu0 0.0
    %418 = vmatprep.subr.mxu0 0.0
    %419 = vmatpush1.msra.mxu0 0.0
    %420 = vmatprep.subr.mxu0 0.0
    %421 = vmatpush1.msra.mxu0 0.0
    %422 = vmatprep.subr.mxu0 0.0
    %423 = vmatpush1.msra.mxu0 0.0
    %424 = vmatprep.subr.mxu0 0.0
    %425 = vmatpush1.msra.mxu0 0.0
    %426 = vmatprep.subr.mxu0 0.0
    %427 = vmatpush1.msra.mxu0 0.0
    %428 = vmatprep.subr.mxu0 0.0
    %429 = vmatpush1.msra.mxu0 0.0
    %430 = vmatprep.subr.mxu0 0.0
    %431 = vmatpush1.msra.mxu0 0.0
    %432 = vmatprep.subr.mxu0 0.0
    %433 = vmatpush1.msra.mxu0 0.0
    %434 = vmatprep.subr.mxu0 0.0
    %435 = vmatpush1.msra.mxu0 0.0
    %436 = vmatprep.subr.mxu0 0.0
    %437 = vmatpush1.msra.mxu0 0.0
    %438 = vmatprep.subr.mxu0 0.0
    %439 = vmatpush1.msra.mxu0 0.0
    %440 = vmatprep.subr.mxu0 0.0
    %441 = vmatpush1.msra.mxu0 0.0
    %442 = vmatprep.subr.mxu0 0.0
    %443 = vmatpush1.msra.mxu0 0.0
    %444 = vmatprep.subr.mxu0 0.0
    %445 = vmatpush1.msra.mxu0 0.0
    %446 = vmatprep.subr.mxu0 0.0
    %447 = vmatpush1.msra.mxu0 0.0
    %448 = vmatprep.subr.mxu0 0.0
    %449 = vmatpush1.msra.mxu0 0.0
    %450 = vmatprep.subr.mxu0 0.0
    %451 = vmatpush1.msra.mxu0 0.0
    %452 = vmatprep.subr.mxu0 0.0
    %453 = vmatpush1.msra.mxu0 0.0
    %454 = vmatprep.mubr.f32.mxu0 0.0
    %v455 = vand.u32 %v49, 4294901760
    %456 = vmatmul.mubr.f32.gmra.mrb[0].mxu0 %v455
    %v457 = vpop.f32.mrb[0].mxu0
    %v458 = vadd.f32 %v375, %v457
    %v459 = vpop.f32.mrb[0].mxu0
    %460 = vdwg.mxu0
    %461 = vmatprep.subr.mxu0 0.0
    %v462 = vand.u32 %v38, 4294901760
    %463 = vmatpush1.msra.mxu0 %v462
    %464 = vmatprep.subr.mxu0 0.0
    %v465 = vand.u32 %v39, 4294901760
    %466 = vmatpush1.msra.mxu0 %v465
    %467 = vmatprep.subr.mxu0 0.0
    %v468 = vand.u32 %v40, 4294901760
    %469 = vmatpush1.msra.mxu0 %v468
    %470 = vmatprep.subr.mxu0 0.0
    %v471 = vand.u32 %v41, 4294901760
    %472 = vmatpush1.msra.mxu0 %v471
    %473 = vmatprep.subr.mxu0 0.0
    %474 = vmatpush1.msra.mxu0 0.0
    %475 = vmatprep.subr.mxu0 0.0
    %476 = vmatpush1.msra.mxu0 0.0
    %477 = vmatprep.subr.mxu0 0.0
    %478 = vmatpush1.msra.mxu0 0.0
    %479 = vmatprep.subr.mxu0 0.0
    %480 = vmatpush1.msra.mxu0 0.0
    %481 = vmatprep.subr.mxu0 0.0
    %482 = vmatpush1.msra.mxu0 0.0
    %483 = vmatprep.subr.mxu0 0.0
    %484 = vmatpush1.msra.mxu0 0.0
    %485 = vmatprep.subr.mxu0 0.0
    %486 = vmatpush1.msra.mxu0 0.0
    %487 = vmatprep.subr.mxu0 0.0
    %488 = vmatpush1.msra.mxu0 0.0
    %489 = vmatprep.subr.mxu0 0.0
    %490 = vmatpush1.msra.mxu0 0.0
    %491 = vmatprep.subr.mxu0 0.0
    %492 = vmatpush1.msra.mxu0 0.0
    %493 = vmatprep.subr.mxu0 0.0
    %494 = vmatpush1.msra.mxu0 0.0
    %495 = vmatprep.subr.mxu0 0.0
    %496 = vmatpush1.msra.mxu0 0.0
    %497 = vmatprep.subr.mxu0 0.0
    %498 = vmatpush1.msra.mxu0 0.0
    %499 = vmatprep.subr.mxu0 0.0
    %500 = vmatpush1.msra.mxu0 0.0
    %501 = vmatprep.subr.mxu0 0.0
    %502 = vmatpush1.msra.mxu0 0.0
    %503 = vmatprep.subr.mxu0 0.0
    %504 = vmatpush1.msra.mxu0 0.0
    %505 = vmatprep.subr.mxu0 0.0
    %506 = vmatpush1.msra.mxu0 0.0
    %507 = vmatprep.subr.mxu0 0.0
    %508 = vmatpush1.msra.mxu0 0.0
    %509 = vmatprep.subr.mxu0 0.0
    %510 = vmatpush1.msra.mxu0 0.0
    %511 = vmatprep.subr.mxu0 0.0
    %512 = vmatpush1.msra.mxu0 0.0
    %513 = vmatprep.subr.mxu0 0.0
    %514 = vmatpush1.msra.mxu0 0.0
    %515 = vmatprep.subr.mxu0 0.0
    %516 = vmatpush1.msra.mxu0 0.0
    %517 = vmatprep.subr.mxu0 0.0
    %518 = vmatpush1.msra.mxu0 0.0
    %519 = vmatprep.subr.mxu0 0.0
    %520 = vmatpush1.msra.mxu0 0.0
    %521 = vmatprep.subr.mxu0 0.0
    %522 = vmatpush1.msra.mxu0 0.0
    %523 = vmatprep.subr.mxu0 0.0
    %524 = vmatpush1.msra.mxu0 0.0
    %525 = vmatprep.subr.mxu0 0.0
    %526 = vmatpush1.msra.mxu0 0.0
    %527 = vmatprep.subr.mxu0 0.0
    %528 = vmatpush1.msra.mxu0 0.0
    %529 = vmatprep.mubr.f32.mxu0 0.0
    %v530 = vand.u32 %v49, 4294901760
    %531 = vmatmul.mubr.f32.gmra.mrb[0].mxu0 %v530
    %v532 = vpop.f32.mrb[0].mxu0
    %v533 = vadd.f32 %v458, %v532
    %v534 = vpop.f32.mrb[0].mxu0
    %535 = vdwg.mxu0
    %v536 = vmax.f32 %v533, 0.0
    %v537 = vld [vmem:[#allocation4 + $0x28] sm:$0xff]
    %v538 = vld [vmem:[#allocation4 + $0x30] sm:$0xff]
    %v539 = vld [vmem:[#allocation4 + $0x38] sm:$0xff]
    %v540 = vld [vmem:[#allocation4 + $0x40] sm:$0xff]
    %v541 = vld [vmem:[#allocation4 + $0x48] sm:$0xff]
    %v542 = vld [vmem:[#allocation4 + $0x50] sm:$0xff]
    %v543 = vld [vmem:[#allocation4 + $0x58] sm:$0xff]
    %v544 = vld [vmem:[#allocation4 + $0x60] sm:$0xff]
    %v545 = vld [vmem:[#allocation4 + $0x70] sm:$0xff]
    %v546 = vld [vmem:[#allocation4 + $0x78] sm:$0xff]
    %v547 = vld [vmem:[#allocation4 + $0x80] sm:$0xff]
    %v548 = vld [vmem:[#allocation4 + $0x88] sm:$0xff]
    %v549 = vld [vmem:[#allocation4 + $0x90] sm:$0xff]
    %v550 = vld [vmem:[#allocation4 + $0x98] sm:$0xff]
    %v551 = vld [vmem:[#allocation4 + $0xa0] sm:$0xff]
    %v552 = vld [vmem:[#allocation4 + $0xa8] sm:$0xff]
    %v553 = vld [vmem:[#allocation4 + $0x68] sm:$0x1]
    %v554 = vlaneseq
    %v555 = vshrl.u32 %v554, 7
    %v556 = vsub.s32 0, %v555
    %v557 = vrot.slane %v553, %v556
    %v558 = vld [vmem:[#allocation4 + $0xb0] sm:$0x1]
    %v559 = vlaneseq
    %v560 = vshrl.u32 %v559, 7
    %v561 = vsub.s32 0, %v560
    %v562 = vrot.slane %v558, %v561
    %vm563 = vcmask 523264
    %v565 = vsel %vm563, %v536, 0
    %567 = vmatprep.subr.mxu0 0.0
    %v568 = vand.u32 %v537, 4294901760
    %569 = vmatpush1.msra.mxu0 %v568
    %570 = vmatprep.subr.mxu0 0.0
    %v571 = vand.u32 %v538, 4294901760
    %572 = vmatpush1.msra.mxu0 %v571
    %573 = vmatprep.subr.mxu0 0.0
    %v574 = vand.u32 %v539, 4294901760
    %575 = vmatpush1.msra.mxu0 %v574
    %576 = vmatprep.subr.mxu0 0.0
    %v577 = vand.u32 %v540, 4294901760
    %578 = vmatpush1.msra.mxu0 %v577
    %579 = vmatprep.subr.mxu0 0.0
    %v580 = vand.u32 %v541, 4294901760
    %581 = vmatpush1.msra.mxu0 %v580
    %582 = vmatprep.subr.mxu0 0.0
    %v583 = vand.u32 %v542, 4294901760
    %584 = vmatpush1.msra.mxu0 %v583
    %585 = vmatprep.subr.mxu0 0.0
    %v586 = vand.u32 %v543, 4294901760
    %587 = vmatpush1.msra.mxu0 %v586
    %588 = vmatprep.subr.mxu0 0.0
    %v589 = vand.u32 %v544, 4294901760
    %590 = vmatpush1.msra.mxu0 %v589
    %591 = vmatprep.subr.mxu0 0.0
    %592 = vmatpush1.msra.mxu0 0.0
    %593 = vmatprep.subr.mxu0 0.0
    %594 = vmatpush1.msra.mxu0 0.0
    %595 = vmatprep.subr.mxu0 0.0
    %596 = vmatpush1.msra.mxu0 0.0
    %597 = vmatprep.subr.mxu0 0.0
    %598 = vmatpush1.msra.mxu0 0.0
    %599 = vmatprep.subr.mxu0 0.0
    %600 = vmatpush1.msra.mxu0 0.0
    %601 = vmatprep.subr.mxu0 0.0
    %602 = vmatpush1.msra.mxu0 0.0
    %603 = vmatprep.subr.mxu0 0.0
    %604 = vmatpush1.msra.mxu0 0.0
    %605 = vmatprep.subr.mxu0 0.0
    %606 = vmatpush1.msra.mxu0 0.0
    %607 = vmatprep.subr.mxu0 0.0
    %608 = vmatpush1.msra.mxu0 0.0
    %609 = vmatprep.subr.mxu0 0.0
    %610 = vmatpush1.msra.mxu0 0.0
    %611 = vmatprep.subr.mxu0 0.0
    %612 = vmatpush1.msra.mxu0 0.0
    %613 = vmatprep.subr.mxu0 0.0
    %614 = vmatpush1.msra.mxu0 0.0
    %615 = vmatprep.subr.mxu0 0.0
    %616 = vmatpush1.msra.mxu0 0.0
    %617 = vmatprep.subr.mxu0 0.0
    %618 = vmatpush1.msra.mxu0 0.0
    %619 = vmatprep.subr.mxu0 0.0
    %620 = vmatpush1.msra.mxu0 0.0
    %621 = vmatprep.subr.mxu0 0.0
    %622 = vmatpush1.msra.mxu0 0.0
    %623 = vmatprep.subr.mxu0 0.0
    %624 = vmatpush1.msra.mxu0 0.0
    %625 = vmatprep.subr.mxu0 0.0
    %626 = vmatpush1.msra.mxu0 0.0
    %627 = vmatprep.subr.mxu0 0.0
    %628 = vmatpush1.msra.mxu0 0.0
    %629 = vmatprep.subr.mxu0 0.0
    %630 = vmatpush1.msra.mxu0 0.0
    %631 = vmatprep.subr.mxu0 0.0
    %632 = vmatpush1.msra.mxu0 0.0
    %633 = vmatprep.subr.mxu0 0.0
    %634 = vmatpush1.msra.mxu0 0.0
    %635 = vmatprep.subr.mxu0 0.0
    %636 = vmatpush1.msra.mxu0 0.0
    %637 = vmatprep.subr.mxu0 0.0
    %638 = vmatpush1.msra.mxu0 0.0
    %639 = vmatprep.mubr.f32.mxu0 0.0
    %v640 = vand.u32 %v565, 4294901760
    %v641 = vsub.f32 %v565, %v640
    %v642 = vand.u32 %v641, 4294901760
    %v643 = vsub.f32 %v641, %v642
    %v644 = vand.u32 %v643, 4294901760
    %645 = vmatmul.mubr.f32.gmra.mrb[0].mxu0 %v644
    %v646 = vpop.f32.mrb[0].mxu0
    %v647 = vadd.f32 %v557, %v646
    %v648 = vpop.f32.mrb[0].mxu0
    %649 = vdwg.mxu0
    %650 = vmatprep.subr.mxu0 0.0
    %v651 = vand.u32 %v537, 4294901760
    %v652 = vsub.f32 %v537, %v651
    %v653 = vand.u32 %v652, 4294901760
    %v654 = vsub.f32 %v652, %v653
    %v655 = vand.u32 %v654, 4294901760
    %656 = vmatpush1.msra.mxu0 %v655
    %657 = vmatprep.subr.mxu0 0.0
    %v658 = vand.u32 %v538, 4294901760
    %v659 = vsub.f32 %v538, %v658
    %v660 = vand.u32 %v659, 4294901760
    %v661 = vsub.f32 %v659, %v660
    %v662 = vand.u32 %v661, 4294901760
    %663 = vmatpush1.msra.mxu0 %v662
    %664 = vmatprep.subr.mxu0 0.0
    %v665 = vand.u32 %v539, 4294901760
    %v666 = vsub.f32 %v539, %v665
    %v667 = vand.u32 %v666, 4294901760
    %v668 = vsub.f32 %v666, %v667
    %v669 = vand.u32 %v668, 4294901760
    %670 = vmatpush1.msra.mxu0 %v669
    %671 = vmatprep.subr.mxu0 0.0
    %v672 = vand.u32 %v540, 4294901760
    %v673 = vsub.f32 %v540, %v672
    %v674 = vand.u32 %v673, 4294901760
    %v675 = vsub.f32 %v673, %v674
    %v676 = vand.u32 %v675, 4294901760
    %677 = vmatpush1.msra.mxu0 %v676
    %678 = vmatprep.subr.mxu0 0.0
    %v679 = vand.u32 %v541, 4294901760
    %v680 = vsub.f32 %v541, %v679
    %v681 = vand.u32 %v680, 4294901760
    %v682 = vsub.f32 %v680, %v681
    %v683 = vand.u32 %v682, 4294901760
    %684 = vmatpush1.msra.mxu0 %v683
    %685 = vmatprep.subr.mxu0 0.0
    %v686 = vand.u32 %v542, 4294901760
    %v687 = vsub.f32 %v542, %v686
    %v688 = vand.u32 %v687, 4294901760
    %v689 = vsub.f32 %v687, %v688
    %v690 = vand.u32 %v689, 4294901760
    %691 = vmatpush1.msra.mxu0 %v690
    %692 = vmatprep.subr.mxu0 0.0
    %v693 = vand.u32 %v543, 4294901760
    %v694 = vsub.f32 %v543, %v693
    %v695 = vand.u32 %v694, 4294901760
    %v696 = vsub.f32 %v694, %v695
    %v697 = vand.u32 %v696, 4294901760
    %698 = vmatpush1.msra.mxu0 %v697
    %699 = vmatprep.subr.mxu0 0.0
    %v700 = vand.u32 %v544, 4294901760
    %v701 = vsub.f32 %v544, %v700
    %v702 = vand.u32 %v701, 4294901760
    %v703 = vsub.f32 %v701, %v702
    %v704 = vand.u32 %v703, 4294901760
    %705 = vmatpush1.msra.mxu0 %v704
    %706 = vmatprep.subr.mxu0 0.0
    %707 = vmatpush1.msra.mxu0 0.0
    %708 = vmatprep.subr.mxu0 0.0
    %709 = vmatpush1.msra.mxu0 0.0
    %710 = vmatprep.subr.mxu0 0.0
    %711 = vmatpush1.msra.mxu0 0.0
    %712 = vmatprep.subr.mxu0 0.0
    %713 = vmatpush1.msra.mxu0 0.0
    %714 = vmatprep.subr.mxu0 0.0
    %715 = vmatpush1.msra.mxu0 0.0
    %716 = vmatprep.subr.mxu0 0.0
    %717 = vmatpush1.msra.mxu0 0.0
    %718 = vmatprep.subr.mxu0 0.0
    %719 = vmatpush1.msra.mxu0 0.0
    %720 = vmatprep.subr.mxu0 0.0
    %721 = vmatpush1.msra.mxu0 0.0
    %722 = vmatprep.subr.mxu0 0.0
    %723 = vmatpush1.msra.mxu0 0.0
    %724 = vmatprep.subr.mxu0 0.0
    %725 = vmatpush1.msra.mxu0 0.0
    %726 = vmatprep.subr.mxu0 0.0
    %727 = vmatpush1.msra.mxu0 0.0
    %728 = vmatprep.subr.mxu0 0.0
    %729 = vmatpush1.msra.mxu0 0.0
    %730 = vmatprep.subr.mxu0 0.0
    %731 = vmatpush1.msra.mxu0 0.0
    %732 = vmatprep.subr.mxu0 0.0
    %733 = vmatpush1.msra.mxu0 0.0
    %734 = vmatprep.subr.mxu0 0.0
    %735 = vmatpush1.msra.mxu0 0.0
    %736 = vmatprep.subr.mxu0 0.0
    %737 = vmatpush1.msra.mxu0 0.0
    %738 = vmatprep.subr.mxu0 0.0
    %739 = vmatpush1.msra.mxu0 0.0
    %740 = vmatprep.subr.mxu0 0.0
    %741 = vmatpush1.msra.mxu0 0.0
    %742 = vmatprep.subr.mxu0 0.0
    %743 = vmatpush1.msra.mxu0 0.0
    %744 = vmatprep.subr.mxu0 0.0
    %745 = vmatpush1.msra.mxu0 0.0
    %746 = vmatprep.subr.mxu0 0.0
    %747 = vmatpush1.msra.mxu0 0.0
    %748 = vmatprep.subr.mxu0 0.0
    %749 = vmatpush1.msra.mxu0 0.0
    %750 = vmatprep.subr.mxu0 0.0
    %751 = vmatpush1.msra.mxu0 0.0
    %752 = vmatprep.subr.mxu0 0.0
    %753 = vmatpush1.msra.mxu0 0.0
    %754 = vmatprep.mubr.f32.mxu0 0.0
    %v755 = vand.u32 %v565, 4294901760
    %756 = vmatmul.mubr.f32.gmra.mrb[0].mxu0 %v755
    %v757 = vpop.f32.mrb[0].mxu0
    %v758 = vadd.f32 %v647, %v757
    %v759 = vpop.f32.mrb[0].mxu0
    %760 = vdwg.mxu0
    %761 = vmatprep.subr.mxu0 0.0
    %v762 = vand.u32 %v537, 4294901760
    %v763 = vsub.f32 %v537, %v762
    %764 = vmatpush1.msra.mxu0 %v763
    %765 = vmatprep.subr.mxu0 0.0
    %v766 = vand.u32 %v538, 4294901760
    %v767 = vsub.f32 %v538, %v766
    %768 = vmatpush1.msra.mxu0 %v767
    %769 = vmatprep.subr.mxu0 0.0
    %v770 = vand.u32 %v539, 4294901760
    %v771 = vsub.f32 %v539, %v770
    %772 = vmatpush1.msra.mxu0 %v771
    %773 = vmatprep.subr.mxu0 0.0
    %v774 = vand.u32 %v540, 4294901760
    %v775 = vsub.f32 %v540, %v774
    %776 = vmatpush1.msra.mxu0 %v775
    %777 = vmatprep.subr.mxu0 0.0
    %v778 = vand.u32 %v541, 4294901760
    %v779 = vsub.f32 %v541, %v778
    %780 = vmatpush1.msra.mxu0 %v779
    %781 = vmatprep.subr.mxu0 0.0
    %v782 = vand.u32 %v542, 4294901760
    %v783 = vsub.f32 %v542, %v782
    %784 = vmatpush1.msra.mxu0 %v783
    %785 = vmatprep.subr.mxu0 0.0
    %v786 = vand.u32 %v543, 4294901760
    %v787 = vsub.f32 %v543, %v786
    %788 = vmatpush1.msra.mxu0 %v787
    %789 = vmatprep.subr.mxu0 0.0
    %v790 = vand.u32 %v544, 4294901760
    %v791 = vsub.f32 %v544, %v790
    %792 = vmatpush1.msra.mxu0 %v791
    %793 = vmatprep.subr.mxu0 0.0
    %794 = vmatpush1.msra.mxu0 0.0
    %795 = vmatprep.subr.mxu0 0.0
    %796 = vmatpush1.msra.mxu0 0.0
    %797 = vmatprep.subr.mxu0 0.0
    %798 = vmatpush1.msra.mxu0 0.0
    %799 = vmatprep.subr.mxu0 0.0
    %800 = vmatpush1.msra.mxu0 0.0
    %801 = vmatprep.subr.mxu0 0.0
    %802 = vmatpush1.msra.mxu0 0.0
    %803 = vmatprep.subr.mxu0 0.0
    %804 = vmatpush1.msra.mxu0 0.0
    %805 = vmatprep.subr.mxu0 0.0
    %806 = vmatpush1.msra.mxu0 0.0
    %807 = vmatprep.subr.mxu0 0.0
    %808 = vmatpush1.msra.mxu0 0.0
    %809 = vmatprep.subr.mxu0 0.0
    %810 = vmatpush1.msra.mxu0 0.0
    %811 = vmatprep.subr.mxu0 0.0
    %812 = vmatpush1.msra.mxu0 0.0
    %813 = vmatprep.subr.mxu0 0.0
    %814 = vmatpush1.msra.mxu0 0.0
    %815 = vmatprep.subr.mxu0 0.0
    %816 = vmatpush1.msra.mxu0 0.0
    %817 = vmatprep.subr.mxu0 0.0
    %818 = vmatpush1.msra.mxu0 0.0
    %819 = vmatprep.subr.mxu0 0.0
    %820 = vmatpush1.msra.mxu0 0.0
    %821 = vmatprep.subr.mxu0 0.0
    %822 = vmatpush1.msra.mxu0 0.0
    %823 = vmatprep.subr.mxu0 0.0
    %824 = vmatpush1.msra.mxu0 0.0
    %825 = vmatprep.subr.mxu0 0.0
    %826 = vmatpush1.msra.mxu0 0.0
    %827 = vmatprep.subr.mxu0 0.0
    %828 = vmatpush1.msra.mxu0 0.0
    %829 = vmatprep.subr.mxu0 0.0
    %830 = vmatpush1.msra.mxu0 0.0
    %831 = vmatprep.subr.mxu0 0.0
    %832 = vmatpush1.msra.mxu0 0.0
    %833 = vmatprep.subr.mxu0 0.0
    %834 = vmatpush1.msra.mxu0 0.0
    %835 = vmatprep.subr.mxu0 0.0
    %836 = vmatpush1.msra.mxu0 0.0
    %837 = vmatprep.subr.mxu0 0.0
    %838 = vmatpush1.msra.mxu0 0.0
    %839 = vmatprep.subr.mxu0 0.0
    %840 = vmatpush1.msra.mxu0 0.0
    %841 = vmatprep.mubr.f32.mxu0 0.0
    %v842 = vand.u32 %v565, 4294901760
    %v843 = vsub.f32 %v565, %v842
    %844 = vmatmul.mubr.f32.gmra.mrb[0].mxu0 %v843
    %v845 = vpop.f32.mrb[0].mxu0
    %v846 = vadd.f32 %v758, %v845
    %v847 = vpop.f32.mrb[0].mxu0
    %848 = vdwg.mxu0
    %849 = vmatprep.subr.mxu0 0.0
    %v850 = vand.u32 %v537, 4294901760
    %851 = vmatpush1.msra.mxu0 %v850
    %852 = vmatprep.subr.mxu0 0.0
    %v853 = vand.u32 %v538, 4294901760
    %854 = vmatpush1.msra.mxu0 %v853
    %855 = vmatprep.subr.mxu0 0.0
    %v856 = vand.u32 %v539, 4294901760
    %857 = vmatpush1.msra.mxu0 %v856
    %858 = vmatprep.subr.mxu0 0.0
    %v859 = vand.u32 %v540, 4294901760
    %860 = vmatpush1.msra.mxu0 %v859
    %861 = vmatprep.subr.mxu0 0.0
    %v862 = vand.u32 %v541, 4294901760
    %863 = vmatpush1.msra.mxu0 %v862
    %864 = vmatprep.subr.mxu0 0.0
    %v865 = vand.u32 %v542, 4294901760
    %866 = vmatpush1.msra.mxu0 %v865
    %867 = vmatprep.subr.mxu0 0.0
    %v868 = vand.u32 %v543, 4294901760
    %869 = vmatpush1.msra.mxu0 %v868
    %870 = vmatprep.subr.mxu0 0.0
    %v871 = vand.u32 %v544, 4294901760
    %872 = vmatpush1.msra.mxu0 %v871
    %873 = vmatprep.subr.mxu0 0.0
    %874 = vmatpush1.msra.mxu0 0.0
    %875 = vmatprep.subr.mxu0 0.0
    %876 = vmatpush1.msra.mxu0 0.0
    %877 = vmatprep.subr.mxu0 0.0
    %878 = vmatpush1.msra.mxu0 0.0
    %879 = vmatprep.subr.mxu0 0.0
    %880 = vmatpush1.msra.mxu0 0.0
    %881 = vmatprep.subr.mxu0 0.0
    %882 = vmatpush1.msra.mxu0 0.0
    %883 = vmatprep.subr.mxu0 0.0
    %884 = vmatpush1.msra.mxu0 0.0
    %885 = vmatprep.subr.mxu0 0.0
    %886 = vmatpush1.msra.mxu0 0.0
    %887 = vmatprep.subr.mxu0 0.0
    %888 = vmatpush1.msra.mxu0 0.0
    %889 = vmatprep.subr.mxu0 0.0
    %890 = vmatpush1.msra.mxu0 0.0
    %891 = vmatprep.subr.mxu0 0.0
    %892 = vmatpush1.msra.mxu0 0.0
    %893 = vmatprep.subr.mxu0 0.0
    %894 = vmatpush1.msra.mxu0 0.0
    %895 = vmatprep.subr.mxu0 0.0
    %896 = vmatpush1.msra.mxu0 0.0
    %897 = vmatprep.subr.mxu0 0.0
    %898 = vmatpush1.msra.mxu0 0.0
    %899 = vmatprep.subr.mxu0 0.0
    %900 = vmatpush1.msra.mxu0 0.0
    %901 = vmatprep.subr.mxu0 0.0
    %902 = vmatpush1.msra.mxu0 0.0
    %903 = vmatprep.subr.mxu0 0.0
    %904 = vmatpush1.msra.mxu0 0.0
    %905 = vmatprep.subr.mxu0 0.0
    %906 = vmatpush1.msra.mxu0 0.0
    %907 = vmatprep.subr.mxu0 0.0
    %908 = vmatpush1.msra.mxu0 0.0
    %909 = vmatprep.subr.mxu0 0.0
    %910 = vmatpush1.msra.mxu0 0.0
    %911 = vmatprep.subr.mxu0 0.0
    %912 = vmatpush1.msra.mxu0 0.0
    %913 = vmatprep.subr.mxu0 0.0
    %914 = vmatpush1.msra.mxu0 0.0
    %915 = vmatprep.subr.mxu0 0.0
    %916 = vmatpush1.msra.mxu0 0.0
    %917 = vmatprep.subr.mxu0 0.0
    %918 = vmatpush1.msra.mxu0 0.0
    %919 = vmatprep.subr.mxu0 0.0
    %920 = vmatpush1.msra.mxu0 0.0
    %921 = vmatprep.mubr.f32.mxu0 0.0
    %v922 = vand.u32 %v565, 4294901760
    %v923 = vsub.f32 %v565, %v922
    %v924 = vand.u32 %v923, 4294901760
    %925 = vmatmul.mubr.f32.gmra.mrb[0].mxu0 %v924
    %v926 = vpop.f32.mrb[0].mxu0
    %v927 = vadd.f32 %v846, %v926
    %v928 = vpop.f32.mrb[0].mxu0
    %929 = vdwg.mxu0
    %930 = vmatprep.subr.mxu0 0.0
    %v931 = vand.u32 %v537, 4294901760
    %v932 = vsub.f32 %v537, %v931
    %v933 = vand.u32 %v932, 4294901760
    %934 = vmatpush1.msra.mxu0 %v933
    %935 = vmatprep.subr.mxu0 0.0
    %v936 = vand.u32 %v538, 4294901760
    %v937 = vsub.f32 %v538, %v936
    %v938 = vand.u32 %v937, 4294901760
    %939 = vmatpush1.msra.mxu0 %v938
    %940 = vmatprep.subr.mxu0 0.0
    %v941 = vand.u32 %v539, 4294901760
    %v942 = vsub.f32 %v539, %v941
    %v943 = vand.u32 %v942, 4294901760
    %944 = vmatpush1.msra.mxu0 %v943
    %945 = vmatprep.subr.mxu0 0.0
    %v946 = vand.u32 %v540, 4294901760
    %v947 = vsub.f32 %v540, %v946
    %v948 = vand.u32 %v947, 4294901760
    %949 = vmatpush1.msra.mxu0 %v948
    %950 = vmatprep.subr.mxu0 0.0
    %v951 = vand.u32 %v541, 4294901760
    %v952 = vsub.f32 %v541, %v951
    %v953 = vand.u32 %v952, 4294901760
    %954 = vmatpush1.msra.mxu0 %v953
    %955 = vmatprep.subr.mxu0 0.0
    %v956 = vand.u32 %v542, 4294901760
    %v957 = vsub.f32 %v542, %v956
    %v958 = vand.u32 %v957, 4294901760
    %959 = vmatpush1.msra.mxu0 %v958
    %960 = vmatprep.subr.mxu0 0.0
    %v961 = vand.u32 %v543, 4294901760
    %v962 = vsub.f32 %v543, %v961
    %v963 = vand.u32 %v962, 4294901760
    %964 = vmatpush1.msra.mxu0 %v963
    %965 = vmatprep.subr.mxu0 0.0
    %v966 = vand.u32 %v544, 4294901760
    %v967 = vsub.f32 %v544, %v966
    %v968 = vand.u32 %v967, 4294901760
    %969 = vmatpush1.msra.mxu0 %v968
    %970 = vmatprep.subr.mxu0 0.0
    %971 = vmatpush1.msra.mxu0 0.0
    %972 = vmatprep.subr.mxu0 0.0
    %973 = vmatpush1.msra.mxu0 0.0
    %974 = vmatprep.subr.mxu0 0.0
    %975 = vmatpush1.msra.mxu0 0.0
    %976 = vmatprep.subr.mxu0 0.0
    %977 = vmatpush1.msra.mxu0 0.0
    %978 = vmatprep.subr.mxu0 0.0
    %979 = vmatpush1.msra.mxu0 0.0
    %980 = vmatprep.subr.mxu0 0.0
    %981 = vmatpush1.msra.mxu0 0.0
    %982 = vmatprep.subr.mxu0 0.0
    %983 = vmatpush1.msra.mxu0 0.0
    %984 = vmatprep.subr.mxu0 0.0
    %985 = vmatpush1.msra.mxu0 0.0
    %986 = vmatprep.subr.mxu0 0.0
    %987 = vmatpush1.msra.mxu0 0.0
    %988 = vmatprep.subr.mxu0 0.0
    %989 = vmatpush1.msra.mxu0 0.0
    %990 = vmatprep.subr.mxu0 0.0
    %991 = vmatpush1.msra.mxu0 0.0
    %992 = vmatprep.subr.mxu0 0.0
    %993 = vmatpush1.msra.mxu0 0.0
    %994 = vmatprep.subr.mxu0 0.0
    %995 = vmatpush1.msra.mxu0 0.0
    %996 = vmatprep.subr.mxu0 0.0
    %997 = vmatpush1.msra.mxu0 0.0
    %998 = vmatprep.subr.mxu0 0.0
    %999 = vmatpush1.msra.mxu0 0.0
    %1000 = vmatprep.subr.mxu0 0.0
    %1001 = vmatpush1.msra.mxu0 0.0
    %1002 = vmatprep.subr.mxu0 0.0
    %1003 = vmatpush1.msra.mxu0 0.0
    %1004 = vmatprep.subr.mxu0 0.0
    %1005 = vmatpush1.msra.mxu0 0.0
    %1006 = vmatprep.subr.mxu0 0.0
    %1007 = vmatpush1.msra.mxu0 0.0
    %1008 = vmatprep.subr.mxu0 0.0
    %1009 = vmatpush1.msra.mxu0 0.0
    %1010 = vmatprep.subr.mxu0 0.0
    %1011 = vmatpush1.msra.mxu0 0.0
    %1012 = vmatprep.subr.mxu0 0.0
    %1013 = vmatpush1.msra.mxu0 0.0
    %1014 = vmatprep.subr.mxu0 0.0
    %1015 = vmatpush1.msra.mxu0 0.0
    %1016 = vmatprep.subr.mxu0 0.0
    %1017 = vmatpush1.msra.mxu0 0.0
    %1018 = vmatprep.mubr.f32.mxu0 0.0
    %v1019 = vand.u32 %v565, 4294901760
    %1020 = vmatmul.mubr.f32.gmra.mrb[0].mxu0 %v1019
    %v1021 = vpop.f32.mrb[0].mxu0
    %v1022 = vadd.f32 %v927, %v1021
    %v1023 = vpop.f32.mrb[0].mxu0
    %1024 = vdwg.mxu0
    %1025 = vmatprep.subr.mxu0 0.0
    %v1026 = vand.u32 %v537, 4294901760
    %1027 = vmatpush1.msra.mxu0 %v1026
    %1028 = vmatprep.subr.mxu0 0.0
    %v1029 = vand.u32 %v538, 4294901760
    %1030 = vmatpush1.msra.mxu0 %v1029
    %1031 = vmatprep.subr.mxu0 0.0
    %v1032 = vand.u32 %v539, 4294901760
    %1033 = vmatpush1.msra.mxu0 %v1032
    %1034 = vmatprep.subr.mxu0 0.0
    %v1035 = vand.u32 %v540, 4294901760
    %1036 = vmatpush1.msra.mxu0 %v1035
    %1037 = vmatprep.subr.mxu0 0.0
    %v1038 = vand.u32 %v541, 4294901760
    %1039 = vmatpush1.msra.mxu0 %v1038
    %1040 = vmatprep.subr.mxu0 0.0
    %v1041 = vand.u32 %v542, 4294901760
    %1042 = vmatpush1.msra.mxu0 %v1041
    %1043 = vmatprep.subr.mxu0 0.0
    %v1044 = vand.u32 %v543, 4294901760
    %1045 = vmatpush1.msra.mxu0 %v1044
    %1046 = vmatprep.subr.mxu0 0.0
    %v1047 = vand.u32 %v544, 4294901760
    %1048 = vmatpush1.msra.mxu0 %v1047
    %1049 = vmatprep.subr.mxu0 0.0
    %1050 = vmatpush1.msra.mxu0 0.0
    %1051 = vmatprep.subr.mxu0 0.0
    %1052 = vmatpush1.msra.mxu0 0.0
    %1053 = vmatprep.subr.mxu0 0.0
    %1054 = vmatpush1.msra.mxu0 0.0
    %1055 = vmatprep.subr.mxu0 0.0
    %1056 = vmatpush1.msra.mxu0 0.0
    %1057 = vmatprep.subr.mxu0 0.0
    %1058 = vmatpush1.msra.mxu0 0.0
    %1059 = vmatprep.subr.mxu0 0.0
    %1060 = vmatpush1.msra.mxu0 0.0
    %1061 = vmatprep.subr.mxu0 0.0
    %1062 = vmatpush1.msra.mxu0 0.0
    %1063 = vmatprep.subr.mxu0 0.0
    %1064 = vmatpush1.msra.mxu0 0.0
    %1065 = vmatprep.subr.mxu0 0.0
    %1066 = vmatpush1.msra.mxu0 0.0
    %1067 = vmatprep.subr.mxu0 0.0
    %1068 = vmatpush1.msra.mxu0 0.0
    %1069 = vmatprep.subr.mxu0 0.0
    %1070 = vmatpush1.msra.mxu0 0.0
    %1071 = vmatprep.subr.mxu0 0.0
    %1072 = vmatpush1.msra.mxu0 0.0
    %1073 = vmatprep.subr.mxu0 0.0
    %1074 = vmatpush1.msra.mxu0 0.0
    %1075 = vmatprep.subr.mxu0 0.0
    %1076 = vmatpush1.msra.mxu0 0.0
    %1077 = vmatprep.subr.mxu0 0.0
    %1078 = vmatpush1.msra.mxu0 0.0
    %1079 = vmatprep.subr.mxu0 0.0
    %1080 = vmatpush1.msra.mxu0 0.0
    %1081 = vmatprep.subr.mxu0 0.0
    %1082 = vmatpush1.msra.mxu0 0.0
    %1083 = vmatprep.subr.mxu0 0.0
    %1084 = vmatpush1.msra.mxu0 0.0
    %1085 = vmatprep.subr.mxu0 0.0
    %1086 = vmatpush1.msra.mxu0 0.0
    %1087 = vmatprep.subr.mxu0 0.0
    %1088 = vmatpush1.msra.mxu0 0.0
    %1089 = vmatprep.subr.mxu0 0.0
    %1090 = vmatpush1.msra.mxu0 0.0
    %1091 = vmatprep.subr.mxu0 0.0
    %1092 = vmatpush1.msra.mxu0 0.0
    %1093 = vmatprep.subr.mxu0 0.0
    %1094 = vmatpush1.msra.mxu0 0.0
    %1095 = vmatprep.subr.mxu0 0.0
    %1096 = vmatpush1.msra.mxu0 0.0
    %1097 = vmatprep.mubr.f32.mxu0 0.0
    %v1098 = vand.u32 %v565, 4294901760
    %1099 = vmatmul.mubr.f32.gmra.mrb[0].mxu0 %v1098
    %v1100 = vpop.f32.mrb[0].mxu0
    %v1101 = vadd.f32 %v1022, %v1100
    %v1102 = vpop.f32.mrb[0].mxu0
    %1103 = vdwg.mxu0
    %v1104 = vmax.f32 %v1101, 0.0
    %v1106 = vsel %vm563, %v1104, 0
    %1108 = vmatprep.subr.mxu0 0.0
    %v1109 = vand.u32 %v545, 4294901760
    %1110 = vmatpush1.msra.mxu0 %v1109
    %1111 = vmatprep.subr.mxu0 0.0
    %v1112 = vand.u32 %v546, 4294901760
    %1113 = vmatpush1.msra.mxu0 %v1112
    %1114 = vmatprep.subr.mxu0 0.0
    %v1115 = vand.u32 %v547, 4294901760
    %1116 = vmatpush1.msra.mxu0 %v1115
    %1117 = vmatprep.subr.mxu0 0.0
    %v1118 = vand.u32 %v548, 4294901760
    %1119 = vmatpush1.msra.mxu0 %v1118
    %1120 = vmatprep.subr.mxu0 0.0
    %v1121 = vand.u32 %v549, 4294901760
    %1122 = vmatpush1.msra.mxu0 %v1121
    %1123 = vmatprep.subr.mxu0 0.0
    %v1124 = vand.u32 %v550, 4294901760
    %1125 = vmatpush1.msra.mxu0 %v1124
    %1126 = vmatprep.subr.mxu0 0.0
    %v1127 = vand.u32 %v551, 4294901760
    %1128 = vmatpush1.msra.mxu0 %v1127
    %1129 = vmatprep.subr.mxu0 0.0
    %v1130 = vand.u32 %v552, 4294901760
    %1131 = vmatpush1.msra.mxu0 %v1130
    %1132 = vmatprep.subr.mxu0 0.0
    %1133 = vmatpush1.msra.mxu0 0.0
    %1134 = vmatprep.subr.mxu0 0.0
    %1135 = vmatpush1.msra.mxu0 0.0
    %1136 = vmatprep.subr.mxu0 0.0
    %1137 = vmatpush1.msra.mxu0 0.0
    %1138 = vmatprep.subr.mxu0 0.0
    %1139 = vmatpush1.msra.mxu0 0.0
    %1140 = vmatprep.subr.mxu0 0.0
    %1141 = vmatpush1.msra.mxu0 0.0
    %1142 = vmatprep.subr.mxu0 0.0
    %1143 = vmatpush1.msra.mxu0 0.0
    %1144 = vmatprep.subr.mxu0 0.0
    %1145 = vmatpush1.msra.mxu0 0.0
    %1146 = vmatprep.subr.mxu0 0.0
    %1147 = vmatpush1.msra.mxu0 0.0
    %1148 = vmatprep.subr.mxu0 0.0
    %1149 = vmatpush1.msra.mxu0 0.0
    %1150 = vmatprep.subr.mxu0 0.0
    %1151 = vmatpush1.msra.mxu0 0.0
    %1152 = vmatprep.subr.mxu0 0.0
    %1153 = vmatpush1.msra.mxu0 0.0
    %1154 = vmatprep.subr.mxu0 0.0
    %1155 = vmatpush1.msra.mxu0 0.0
    %1156 = vmatprep.subr.mxu0 0.0
    %1157 = vmatpush1.msra.mxu0 0.0
    %1158 = vmatprep.subr.mxu0 0.0
    %1159 = vmatpush1.msra.mxu0 0.0
    %1160 = vmatprep.subr.mxu0 0.0
    %1161 = vmatpush1.msra.mxu0 0.0
    %1162 = vmatprep.subr.mxu0 0.0
    %1163 = vmatpush1.msra.mxu0 0.0
    %1164 = vmatprep.subr.mxu0 0.0
    %1165 = vmatpush1.msra.mxu0 0.0
    %1166 = vmatprep.subr.mxu0 0.0
    %1167 = vmatpush1.msra.mxu0 0.0
    %1168 = vmatprep.subr.mxu0 0.0
    %1169 = vmatpush1.msra.mxu0 0.0
    %1170 = vmatprep.subr.mxu0 0.0
    %1171 = vmatpush1.msra.mxu0 0.0
    %1172 = vmatprep.subr.mxu0 0.0
    %1173 = vmatpush1.msra.mxu0 0.0
    %1174 = vmatprep.subr.mxu0 0.0
    %1175 = vmatpush1.msra.mxu0 0.0
    %1176 = vmatprep.subr.mxu0 0.0
    %1177 = vmatpush1.msra.mxu0 0.0
    %1178 = vmatprep.subr.mxu0 0.0
    %1179 = vmatpush1.msra.mxu0 0.0
    %1180 = vmatprep.mubr.f32.mxu0 0.0
    %v1181 = vand.u32 %v1106, 4294901760
    %v1182 = vsub.f32 %v1106, %v1181
    %v1183 = vand.u32 %v1182, 4294901760
    %v1184 = vsub.f32 %v1182, %v1183
    %v1185 = vand.u32 %v1184, 4294901760
    %1186 = vmatmul.mubr.f32.gmra.mrb[0].mxu0 %v1185
    %v1187 = vpop.f32.mrb[0].mxu0
    %v1188 = vadd.f32 %v562, %v1187
    %v1189 = vpop.f32.mrb[0].mxu0
    %1190 = vdwg.mxu0
    %1191 = vmatprep.subr.mxu0 0.0
    %v1192 = vand.u32 %v545, 4294901760
    %v1193 = vsub.f32 %v545, %v1192
    %v1194 = vand.u32 %v1193, 4294901760
    %v1195 = vsub.f32 %v1193, %v1194
    %v1196 = vand.u32 %v1195, 4294901760
    %1197 = vmatpush1.msra.mxu0 %v1196
    %1198 = vmatprep.subr.mxu0 0.0
    %v1199 = vand.u32 %v546, 4294901760
    %v1200 = vsub.f32 %v546, %v1199
    %v1201 = vand.u32 %v1200, 4294901760
    %v1202 = vsub.f32 %v1200, %v1201
    %v1203 = vand.u32 %v1202, 4294901760
    %1204 = vmatpush1.msra.mxu0 %v1203
    %1205 = vmatprep.subr.mxu0 0.0
    %v1206 = vand.u32 %v547, 4294901760
    %v1207 = vsub.f32 %v547, %v1206
    %v1208 = vand.u32 %v1207, 4294901760
    %v1209 = vsub.f32 %v1207, %v1208
    %v1210 = vand.u32 %v1209, 4294901760
    %1211 = vmatpush1.msra.mxu0 %v1210
    %1212 = vmatprep.subr.mxu0 0.0
    %v1213 = vand.u32 %v548, 4294901760
    %v1214 = vsub.f32 %v548, %v1213
    %v1215 = vand.u32 %v1214, 4294901760
    %v1216 = vsub.f32 %v1214, %v1215
    %v1217 = vand.u32 %v1216, 4294901760
    %1218 = vmatpush1.msra.mxu0 %v1217
    %1219 = vmatprep.subr.mxu0 0.0
    %v1220 = vand.u32 %v549, 4294901760
    %v1221 = vsub.f32 %v549, %v1220
    %v1222 = vand.u32 %v1221, 4294901760
    %v1223 = vsub.f32 %v1221, %v1222
    %v1224 = vand.u32 %v1223, 4294901760
    %1225 = vmatpush1.msra.mxu0 %v1224
    %1226 = vmatprep.subr.mxu0 0.0
    %v1227 = vand.u32 %v550, 4294901760
    %v1228 = vsub.f32 %v550, %v1227
    %v1229 = vand.u32 %v1228, 4294901760
    %v1230 = vsub.f32 %v1228, %v1229
    %v1231 = vand.u32 %v1230, 4294901760
    %1232 = vmatpush1.msra.mxu0 %v1231
    %1233 = vmatprep.subr.mxu0 0.0
    %v1234 = vand.u32 %v551, 4294901760
    %v1235 = vsub.f32 %v551, %v1234
    %v1236 = vand.u32 %v1235, 4294901760
    %v1237 = vsub.f32 %v1235, %v1236
    %v1238 = vand.u32 %v1237, 4294901760
    %1239 = vmatpush1.msra.mxu0 %v1238
    %1240 = vmatprep.subr.mxu0 0.0
    %v1241 = vand.u32 %v552, 4294901760
    %v1242 = vsub.f32 %v552, %v1241
    %v1243 = vand.u32 %v1242, 4294901760
    %v1244 = vsub.f32 %v1242, %v1243
    %v1245 = vand.u32 %v1244, 4294901760
    %1246 = vmatpush1.msra.mxu0 %v1245
    %1247 = vmatprep.subr.mxu0 0.0
    %1248 = vmatpush1.msra.mxu0 0.0
    %1249 = vmatprep.subr.mxu0 0.0
    %1250 = vmatpush1.msra.mxu0 0.0
    %1251 = vmatprep.subr.mxu0 0.0
    %1252 = vmatpush1.msra.mxu0 0.0
    %1253 = vmatprep.subr.mxu0 0.0
    %1254 = vmatpush1.msra.mxu0 0.0
    %1255 = vmatprep.subr.mxu0 0.0
    %1256 = vmatpush1.msra.mxu0 0.0
    %1257 = vmatprep.subr.mxu0 0.0
    %1258 = vmatpush1.msra.mxu0 0.0
    %1259 = vmatprep.subr.mxu0 0.0
    %1260 = vmatpush1.msra.mxu0 0.0
    %1261 = vmatprep.subr.mxu0 0.0
    %1262 = vmatpush1.msra.mxu0 0.0
    %1263 = vmatprep.subr.mxu0 0.0
    %1264 = vmatpush1.msra.mxu0 0.0
    %1265 = vmatprep.subr.mxu0 0.0
    %1266 = vmatpush1.msra.mxu0 0.0
    %1267 = vmatprep.subr.mxu0 0.0
    %1268 = vmatpush1.msra.mxu0 0.0
    %1269 = vmatprep.subr.mxu0 0.0
    %1270 = vmatpush1.msra.mxu0 0.0
    %1271 = vmatprep.subr.mxu0 0.0
    %1272 = vmatpush1.msra.mxu0 0.0
    %1273 = vmatprep.subr.mxu0 0.0
    %1274 = vmatpush1.msra.mxu0 0.0
    %1275 = vmatprep.subr.mxu0 0.0
    %1276 = vmatpush1.msra.mxu0 0.0
    %1277 = vmatprep.subr.mxu0 0.0
    %1278 = vmatpush1.msra.mxu0 0.0
    %1279 = vmatprep.subr.mxu0 0.0
    %1280 = vmatpush1.msra.mxu0 0.0
    %1281 = vmatprep.subr.mxu0 0.0
    %1282 = vmatpush1.msra.mxu0 0.0
    %1283 = vmatprep.subr.mxu0 0.0
    %1284 = vmatpush1.msra.mxu0 0.0
    %1285 = vmatprep.subr.mxu0 0.0
    %1286 = vmatpush1.msra.mxu0 0.0
    %1287 = vmatprep.subr.mxu0 0.0
    %1288 = vmatpush1.msra.mxu0 0.0
    %1289 = vmatprep.subr.mxu0 0.0
    %1290 = vmatpush1.msra.mxu0 0.0
    %1291 = vmatprep.subr.mxu0 0.0
    %1292 = vmatpush1.msra.mxu0 0.0
    %1293 = vmatprep.subr.mxu0 0.0
    %1294 = vmatpush1.msra.mxu0 0.0
    %1295 = vmatprep.mubr.f32.mxu0 0.0
    %v1296 = vand.u32 %v1106, 4294901760
    %1297 = vmatmul.mubr.f32.gmra.mrb[0].mxu0 %v1296
    %v1298 = vpop.f32.mrb[0].mxu0
    %v1299 = vadd.f32 %v1188, %v1298
    %v1300 = vpop.f32.mrb[0].mxu0
    %1301 = vdwg.mxu0
    %1302 = vmatprep.subr.mxu0 0.0
    %v1303 = vand.u32 %v545, 4294901760
    %v1304 = vsub.f32 %v545, %v1303
    %1305 = vmatpush1.msra.mxu0 %v1304
    %1306 = vmatprep.subr.mxu0 0.0
    %v1307 = vand.u32 %v546, 4294901760
    %v1308 = vsub.f32 %v546, %v1307
    %1309 = vmatpush1.msra.mxu0 %v1308
    %1310 = vmatprep.subr.mxu0 0.0
    %v1311 = vand.u32 %v547, 4294901760
    %v1312 = vsub.f32 %v547, %v1311
    %1313 = vmatpush1.msra.mxu0 %v1312
    %1314 = vmatprep.subr.mxu0 0.0
    %v1315 = vand.u32 %v548, 4294901760
    %v1316 = vsub.f32 %v548, %v1315
    %1317 = vmatpush1.msra.mxu0 %v1316
    %1318 = vmatprep.subr.mxu0 0.0
    %v1319 = vand.u32 %v549, 4294901760
    %v1320 = vsub.f32 %v549, %v1319
    %1321 = vmatpush1.msra.mxu0 %v1320
    %1322 = vmatprep.subr.mxu0 0.0
    %v1323 = vand.u32 %v550, 4294901760
    %v1324 = vsub.f32 %v550, %v1323
    %1325 = vmatpush1.msra.mxu0 %v1324
    %1326 = vmatprep.subr.mxu0 0.0
    %v1327 = vand.u32 %v551, 4294901760
    %v1328 = vsub.f32 %v551, %v1327
    %1329 = vmatpush1.msra.mxu0 %v1328
    %1330 = vmatprep.subr.mxu0 0.0
    %v1331 = vand.u32 %v552, 4294901760
    %v1332 = vsub.f32 %v552, %v1331
    %1333 = vmatpush1.msra.mxu0 %v1332
    %1334 = vmatprep.subr.mxu0 0.0
    %1335 = vmatpush1.msra.mxu0 0.0
    %1336 = vmatprep.subr.mxu0 0.0
    %1337 = vmatpush1.msra.mxu0 0.0
    %1338 = vmatprep.subr.mxu0 0.0
    %1339 = vmatpush1.msra.mxu0 0.0
    %1340 = vmatprep.subr.mxu0 0.0
    %1341 = vmatpush1.msra.mxu0 0.0
    %1342 = vmatprep.subr.mxu0 0.0
    %1343 = vmatpush1.msra.mxu0 0.0
    %1344 = vmatprep.subr.mxu0 0.0
    %1345 = vmatpush1.msra.mxu0 0.0
    %1346 = vmatprep.subr.mxu0 0.0
    %1347 = vmatpush1.msra.mxu0 0.0
    %1348 = vmatprep.subr.mxu0 0.0
    %1349 = vmatpush1.msra.mxu0 0.0
    %1350 = vmatprep.subr.mxu0 0.0
    %1351 = vmatpush1.msra.mxu0 0.0
    %1352 = vmatprep.subr.mxu0 0.0
    %1353 = vmatpush1.msra.mxu0 0.0
    %1354 = vmatprep.subr.mxu0 0.0
    %1355 = vmatpush1.msra.mxu0 0.0
    %1356 = vmatprep.subr.mxu0 0.0
    %1357 = vmatpush1.msra.mxu0 0.0
    %1358 = vmatprep.subr.mxu0 0.0
    %1359 = vmatpush1.msra.mxu0 0.0
    %1360 = vmatprep.subr.mxu0 0.0
    %1361 = vmatpush1.msra.mxu0 0.0
    %1362 = vmatprep.subr.mxu0 0.0
    %1363 = vmatpush1.msra.mxu0 0.0
    %1364 = vmatprep.subr.mxu0 0.0
    %1365 = vmatpush1.msra.mxu0 0.0
    %1366 = vmatprep.subr.mxu0 0.0
    %1367 = vmatpush1.msra.mxu0 0.0
    %1368 = vmatprep.subr.mxu0 0.0
    %1369 = vmatpush1.msra.mxu0 0.0
    %1370 = vmatprep.subr.mxu0 0.0
    %1371 = vmatpush1.msra.mxu0 0.0
    %1372 = vmatprep.subr.mxu0 0.0
    %1373 = vmatpush1.msra.mxu0 0.0
    %1374 = vmatprep.subr.mxu0 0.0
    %1375 = vmatpush1.msra.mxu0 0.0
    %1376 = vmatprep.subr.mxu0 0.0
    %1377 = vmatpush1.msra.mxu0 0.0
    %1378 = vmatprep.subr.mxu0 0.0
    %1379 = vmatpush1.msra.mxu0 0.0
    %1380 = vmatprep.subr.mxu0 0.0
    %1381 = vmatpush1.msra.mxu0 0.0
    %1382 = vmatprep.mubr.f32.mxu0 0.0
    %v1383 = vand.u32 %v1106, 4294901760
    %v1384 = vsub.f32 %v1106, %v1383
    %1385 = vmatmul.mubr.f32.gmra.mrb[0].mxu0 %v1384
    %v1386 = vpop.f32.mrb[0].mxu0
    %v1387 = vadd.f32 %v1299, %v1386
    %v1388 = vpop.f32.mrb[0].mxu0
    %1389 = vdwg.mxu0
    %1390 = vmatprep.subr.mxu0 0.0
    %v1391 = vand.u32 %v545, 4294901760
    %1392 = vmatpush1.msra.mxu0 %v1391
    %1393 = vmatprep.subr.mxu0 0.0
    %v1394 = vand.u32 %v546, 4294901760
    %1395 = vmatpush1.msra.mxu0 %v1394
    %1396 = vmatprep.subr.mxu0 0.0
    %v1397 = vand.u32 %v547, 4294901760
    %1398 = vmatpush1.msra.mxu0 %v1397
    %1399 = vmatprep.subr.mxu0 0.0
    %v1400 = vand.u32 %v548, 4294901760
    %1401 = vmatpush1.msra.mxu0 %v1400
    %1402 = vmatprep.subr.mxu0 0.0
    %v1403 = vand.u32 %v549, 4294901760
    %1404 = vmatpush1.msra.mxu0 %v1403
    %1405 = vmatprep.subr.mxu0 0.0
    %v1406 = vand.u32 %v550, 4294901760
    %1407 = vmatpush1.msra.mxu0 %v1406
    %1408 = vmatprep.subr.mxu0 0.0
    %v1409 = vand.u32 %v551, 4294901760
    %1410 = vmatpush1.msra.mxu0 %v1409
    %1411 = vmatprep.subr.mxu0 0.0
    %v1412 = vand.u32 %v552, 4294901760
    %1413 = vmatpush1.msra.mxu0 %v1412
    %1414 = vmatprep.subr.mxu0 0.0
    %1415 = vmatpush1.msra.mxu0 0.0
    %1416 = vmatprep.subr.mxu0 0.0
    %1417 = vmatpush1.msra.mxu0 0.0
    %1418 = vmatprep.subr.mxu0 0.0
    %1419 = vmatpush1.msra.mxu0 0.0
    %1420 = vmatprep.subr.mxu0 0.0
    %1421 = vmatpush1.msra.mxu0 0.0
    %1422 = vmatprep.subr.mxu0 0.0
    %1423 = vmatpush1.msra.mxu0 0.0
    %1424 = vmatprep.subr.mxu0 0.0
    %1425 = vmatpush1.msra.mxu0 0.0
    %1426 = vmatprep.subr.mxu0 0.0
    %1427 = vmatpush1.msra.mxu0 0.0
    %1428 = vmatprep.subr.mxu0 0.0
    %1429 = vmatpush1.msra.mxu0 0.0
    %1430 = vmatprep.subr.mxu0 0.0
    %1431 = vmatpush1.msra.mxu0 0.0
    %1432 = vmatprep.subr.mxu0 0.0
    %1433 = vmatpush1.msra.mxu0 0.0
    %1434 = vmatprep.subr.mxu0 0.0
    %1435 = vmatpush1.msra.mxu0 0.0
    %1436 = vmatprep.subr.mxu0 0.0
    %1437 = vmatpush1.msra.mxu0 0.0
    %1438 = vmatprep.subr.mxu0 0.0
    %1439 = vmatpush1.msra.mxu0 0.0
    %1440 = vmatprep.subr.mxu0 0.0
    %1441 = vmatpush1.msra.mxu0 0.0
    %1442 = vmatprep.subr.mxu0 0.0
    %1443 = vmatpush1.msra.mxu0 0.0
    %1444 = vmatprep.subr.mxu0 0.0
    %1445 = vmatpush1.msra.mxu0 0.0
    %1446 = vmatprep.subr.mxu0 0.0
    %1447 = vmatpush1.msra.mxu0 0.0
    %1448 = vmatprep.subr.mxu0 0.0
    %1449 = vmatpush1.msra.mxu0 0.0
    %1450 = vmatprep.subr.mxu0 0.0
    %1451 = vmatpush1.msra.mxu0 0.0
    %1452 = vmatprep.subr.mxu0 0.0
    %1453 = vmatpush1.msra.mxu0 0.0
    %1454 = vmatprep.subr.mxu0 0.0
    %1455 = vmatpush1.msra.mxu0 0.0
    %1456 = vmatprep.subr.mxu0 0.0
    %1457 = vmatpush1.msra.mxu0 0.0
    %1458 = vmatprep.subr.mxu0 0.0
    %1459 = vmatpush1.msra.mxu0 0.0
    %1460 = vmatprep.subr.mxu0 0.0
    %1461 = vmatpush1.msra.mxu0 0.0
    %1462 = vmatprep.mubr.f32.mxu0 0.0
    %v1463 = vand.u32 %v1106, 4294901760
    %v1464 = vsub.f32 %v1106, %v1463
    %v1465 = vand.u32 %v1464, 4294901760
    %1466 = vmatmul.mubr.f32.gmra.mrb[0].mxu0 %v1465
    %v1467 = vpop.f32.mrb[0].mxu0
    %v1468 = vadd.f32 %v1387, %v1467
    %v1469 = vpop.f32.mrb[0].mxu0
    %1470 = vdwg.mxu0
    %1471 = vmatprep.subr.mxu0 0.0
    %v1472 = vand.u32 %v545, 4294901760
    %v1473 = vsub.f32 %v545, %v1472
    %v1474 = vand.u32 %v1473, 4294901760
    %1475 = vmatpush1.msra.mxu0 %v1474
    %1476 = vmatprep.subr.mxu0 0.0
    %v1477 = vand.u32 %v546, 4294901760
    %v1478 = vsub.f32 %v546, %v1477
    %v1479 = vand.u32 %v1478, 4294901760
    %1480 = vmatpush1.msra.mxu0 %v1479
    %1481 = vmatprep.subr.mxu0 0.0
    %v1482 = vand.u32 %v547, 4294901760
    %v1483 = vsub.f32 %v547, %v1482
    %v1484 = vand.u32 %v1483, 4294901760
    %1485 = vmatpush1.msra.mxu0 %v1484
    %1486 = vmatprep.subr.mxu0 0.0
    %v1487 = vand.u32 %v548, 4294901760
    %v1488 = vsub.f32 %v548, %v1487
    %v1489 = vand.u32 %v1488, 4294901760
    %1490 = vmatpush1.msra.mxu0 %v1489
    %1491 = vmatprep.subr.mxu0 0.0
    %v1492 = vand.u32 %v549, 4294901760
    %v1493 = vsub.f32 %v549, %v1492
    %v1494 = vand.u32 %v1493, 4294901760
    %1495 = vmatpush1.msra.mxu0 %v1494
    %1496 = vmatprep.subr.mxu0 0.0
    %v1497 = vand.u32 %v550, 4294901760
    %v1498 = vsub.f32 %v550, %v1497
    %v1499 = vand.u32 %v1498, 4294901760
    %1500 = vmatpush1.msra.mxu0 %v1499
    %1501 = vmatprep.subr.mxu0 0.0
    %v1502 = vand.u32 %v551, 4294901760
    %v1503 = vsub.f32 %v551, %v1502
    %v1504 = vand.u32 %v1503, 4294901760
    %1505 = vmatpush1.msra.mxu0 %v1504
    %1506 = vmatprep.subr.mxu0 0.0
    %v1507 = vand.u32 %v552, 4294901760
    %v1508 = vsub.f32 %v552, %v1507
    %v1509 = vand.u32 %v1508, 4294901760
    %1510 = vmatpush1.msra.mxu0 %v1509
    %1511 = vmatprep.subr.mxu0 0.0
    %1512 = vmatpush1.msra.mxu0 0.0
    %1513 = vmatprep.subr.mxu0 0.0
    %1514 = vmatpush1.msra.mxu0 0.0
    %1515 = vmatprep.subr.mxu0 0.0
    %1516 = vmatpush1.msra.mxu0 0.0
    %1517 = vmatprep.subr.mxu0 0.0
    %1518 = vmatpush1.msra.mxu0 0.0
    %1519 = vmatprep.subr.mxu0 0.0
    %1520 = vmatpush1.msra.mxu0 0.0
    %1521 = vmatprep.subr.mxu0 0.0
    %1522 = vmatpush1.msra.mxu0 0.0
    %1523 = vmatprep.subr.mxu0 0.0
    %1524 = vmatpush1.msra.mxu0 0.0
    %1525 = vmatprep.subr.mxu0 0.0
    %1526 = vmatpush1.msra.mxu0 0.0
    %1527 = vmatprep.subr.mxu0 0.0
    %1528 = vmatpush1.msra.mxu0 0.0
    %1529 = vmatprep.subr.mxu0 0.0
    %1530 = vmatpush1.msra.mxu0 0.0
    %1531 = vmatprep.subr.mxu0 0.0
    %1532 = vmatpush1.msra.mxu0 0.0
    %1533 = vmatprep.subr.mxu0 0.0
    %1534 = vmatpush1.msra.mxu0 0.0
    %1535 = vmatprep.subr.mxu0 0.0
    %1536 = vmatpush1.msra.mxu0 0.0
    %1537 = vmatprep.subr.mxu0 0.0
    %1538 = vmatpush1.msra.mxu0 0.0
    %1539 = vmatprep.subr.mxu0 0.0
    %1540 = vmatpush1.msra.mxu0 0.0
    %1541 = vmatprep.subr.mxu0 0.0
    %1542 = vmatpush1.msra.mxu0 0.0
    %1543 = vmatprep.subr.mxu0 0.0
    %1544 = vmatpush1.msra.mxu0 0.0
    %1545 = vmatprep.subr.mxu0 0.0
    %1546 = vmatpush1.msra.mxu0 0.0
    %1547 = vmatprep.subr.mxu0 0.0
    %1548 = vmatpush1.msra.mxu0 0.0
    %1549 = vmatprep.subr.mxu0 0.0
    %1550 = vmatpush1.msra.mxu0 0.0
    %1551 = vmatprep.subr.mxu0 0.0
    %1552 = vmatpush1.msra.mxu0 0.0
    %1553 = vmatprep.subr.mxu0 0.0
    %1554 = vmatpush1.msra.mxu0 0.0
    %1555 = vmatprep.subr.mxu0 0.0
    %1556 = vmatpush1.msra.mxu0 0.0
    %1557 = vmatprep.subr.mxu0 0.0
    %1558 = vmatpush1.msra.mxu0 0.0
    %1559 = vmatprep.mubr.f32.mxu0 0.0
    %v1560 = vand.u32 %v1106, 4294901760
    %1561 = vmatmul.mubr.f32.gmra.mrb[0].mxu0 %v1560
    %v1562 = vpop.f32.mrb[0].mxu0
    %v1563 = vadd.f32 %v1468, %v1562
    %v1564 = vpop.f32.mrb[0].mxu0
    %1565 = vdwg.mxu0
    %1566 = vmatprep.subr.mxu0 0.0
    %v1567 = vand.u32 %v545, 4294901760
    %1568 = vmatpush1.msra.mxu0 %v1567
    %1569 = vmatprep.subr.mxu0 0.0
    %v1570 = vand.u32 %v546, 4294901760
    %1571 = vmatpush1.msra.mxu0 %v1570
    %1572 = vmatprep.subr.mxu0 0.0
    %v1573 = vand.u32 %v547, 4294901760
    %1574 = vmatpush1.msra.mxu0 %v1573
    %1575 = vmatprep.subr.mxu0 0.0
    %v1576 = vand.u32 %v548, 4294901760
    %1577 = vmatpush1.msra.mxu0 %v1576
    %1578 = vmatprep.subr.mxu0 0.0
    %v1579 = vand.u32 %v549, 4294901760
    %1580 = vmatpush1.msra.mxu0 %v1579
    %1581 = vmatprep.subr.mxu0 0.0
    %v1582 = vand.u32 %v550, 4294901760
    %1583 = vmatpush1.msra.mxu0 %v1582
    %1584 = vmatprep.subr.mxu0 0.0
    %v1585 = vand.u32 %v551, 4294901760
    %1586 = vmatpush1.msra.mxu0 %v1585
    %1587 = vmatprep.subr.mxu0 0.0
    %v1588 = vand.u32 %v552, 4294901760
    %1589 = vmatpush1.msra.mxu0 %v1588
    %1590 = vmatprep.subr.mxu0 0.0
    %1591 = vmatpush1.msra.mxu0 0.0
    %1592 = vmatprep.subr.mxu0 0.0
    %1593 = vmatpush1.msra.mxu0 0.0
    %1594 = vmatprep.subr.mxu0 0.0
    %1595 = vmatpush1.msra.mxu0 0.0
    %1596 = vmatprep.subr.mxu0 0.0
    %1597 = vmatpush1.msra.mxu0 0.0
    %1598 = vmatprep.subr.mxu0 0.0
    %1599 = vmatpush1.msra.mxu0 0.0
    %1600 = vmatprep.subr.mxu0 0.0
    %1601 = vmatpush1.msra.mxu0 0.0
    %1602 = vmatprep.subr.mxu0 0.0
    %1603 = vmatpush1.msra.mxu0 0.0
    %1604 = vmatprep.subr.mxu0 0.0
    %1605 = vmatpush1.msra.mxu0 0.0
    %1606 = vmatprep.subr.mxu0 0.0
    %1607 = vmatpush1.msra.mxu0 0.0
    %1608 = vmatprep.subr.mxu0 0.0
    %1609 = vmatpush1.msra.mxu0 0.0
    %1610 = vmatprep.subr.mxu0 0.0
    %1611 = vmatpush1.msra.mxu0 0.0
    %1612 = vmatprep.subr.mxu0 0.0
    %1613 = vmatpush1.msra.mxu0 0.0
    %1614 = vmatprep.subr.mxu0 0.0
    %1615 = vmatpush1.msra.mxu0 0.0
    %1616 = vmatprep.subr.mxu0 0.0
    %1617 = vmatpush1.msra.mxu0 0.0
    %1618 = vmatprep.subr.mxu0 0.0
    %1619 = vmatpush1.msra.mxu0 0.0
    %1620 = vmatprep.subr.mxu0 0.0
    %1621 = vmatpush1.msra.mxu0 0.0
    %1622 = vmatprep.subr.mxu0 0.0
    %1623 = vmatpush1.msra.mxu0 0.0
    %1624 = vmatprep.subr.mxu0 0.0
    %1625 = vmatpush1.msra.mxu0 0.0
    %1626 = vmatprep.subr.mxu0 0.0
    %1627 = vmatpush1.msra.mxu0 0.0
    %1628 = vmatprep.subr.mxu0 0.0
    %1629 = vmatpush1.msra.mxu0 0.0
    %1630 = vmatprep.subr.mxu0 0.0
    %1631 = vmatpush1.msra.mxu0 0.0
    %1632 = vmatprep.subr.mxu0 0.0
    %1633 = vmatpush1.msra.mxu0 0.0
    %1634 = vmatprep.subr.mxu0 0.0
    %1635 = vmatpush1.msra.mxu0 0.0
    %1636 = vmatprep.subr.mxu0 0.0
    %1637 = vmatpush1.msra.mxu0 0.0
    %1638 = vmatprep.mubr.f32.mxu0 0.0
    %v1639 = vand.u32 %v1106, 4294901760
    %1640 = vmatmul.mubr.f32.gmra.mrb[0].mxu0 %v1639
    %v1641 = vpop.f32.mrb[0].mxu0
    %v1642 = vadd.f32 %v1563, %v1641
    %v1643 = vpop.f32.mrb[0].mxu0
    %1644 = vdwg.mxu0
    %v1645 = vmax.f32 %v1642, 0.0
    %v1646 = vadd.f32 %v536, %v1645
    %v1648 = vsel %vm563, %v1646, 0
    %1650 = vmatprep.subr.mxu0 0.0
    %v1651 = vand.u32 %v537, 4294901760
    %1652 = vmatpush1.msra.mxu0 %v1651
    %1653 = vmatprep.subr.mxu0 0.0
    %v1654 = vand.u32 %v538, 4294901760
    %1655 = vmatpush1.msra.mxu0 %v1654
    %1656 = vmatprep.subr.mxu0 0.0
    %v1657 = vand.u32 %v539, 4294901760
    %1658 = vmatpush1.msra.mxu0 %v1657
    %1659 = vmatprep.subr.mxu0 0.0
    %v1660 = vand.u32 %v540, 4294901760
    %1661 = vmatpush1.msra.mxu0 %v1660
    %1662 = vmatprep.subr.mxu0 0.0
    %v1663 = vand.u32 %v541, 4294901760
    %1664 = vmatpush1.msra.mxu0 %v1663
    %1665 = vmatprep.subr.mxu0 0.0
    %v1666 = vand.u32 %v542, 4294901760
    %1667 = vmatpush1.msra.mxu0 %v1666
    %1668 = vmatprep.subr.mxu0 0.0
    %v1669 = vand.u32 %v543, 4294901760
    %1670 = vmatpush1.msra.mxu0 %v1669
    %1671 = vmatprep.subr.mxu0 0.0
    %v1672 = vand.u32 %v544, 4294901760
    %1673 = vmatpush1.msra.mxu0 %v1672
    %1674 = vmatprep.subr.mxu0 0.0
    %1675 = vmatpush1.msra.mxu0 0.0
    %1676 = vmatprep.subr.mxu0 0.0
    %1677 = vmatpush1.msra.mxu0 0.0
    %1678 = vmatprep.subr.mxu0 0.0
    %1679 = vmatpush1.msra.mxu0 0.0
    %1680 = vmatprep.subr.mxu0 0.0
    %1681 = vmatpush1.msra.mxu0 0.0
    %1682 = vmatprep.subr.mxu0 0.0
    %1683 = vmatpush1.msra.mxu0 0.0
    %1684 = vmatprep.subr.mxu0 0.0
    %1685 = vmatpush1.msra.mxu0 0.0
    %1686 = vmatprep.subr.mxu0 0.0
    %1687 = vmatpush1.msra.mxu0 0.0
    %1688 = vmatprep.subr.mxu0 0.0
    %1689 = vmatpush1.msra.mxu0 0.0
    %1690 = vmatprep.subr.mxu0 0.0
    %1691 = vmatpush1.msra.mxu0 0.0
    %1692 = vmatprep.subr.mxu0 0.0
    %1693 = vmatpush1.msra.mxu0 0.0
    %1694 = vmatprep.subr.mxu0 0.0
    %1695 = vmatpush1.msra.mxu0 0.0
    %1696 = vmatprep.subr.mxu0 0.0
    %1697 = vmatpush1.msra.mxu0 0.0
    %1698 = vmatprep.subr.mxu0 0.0
    %1699 = vmatpush1.msra.mxu0 0.0
    %1700 = vmatprep.subr.mxu0 0.0
    %1701 = vmatpush1.msra.mxu0 0.0
    %1702 = vmatprep.subr.mxu0 0.0
    %1703 = vmatpush1.msra.mxu0 0.0
    %1704 = vmatprep.subr.mxu0 0.0
    %1705 = vmatpush1.msra.mxu0 0.0
    %1706 = vmatprep.subr.mxu0 0.0
    %1707 = vmatpush1.msra.mxu0 0.0
    %1708 = vmatprep.subr.mxu0 0.0
    %1709 = vmatpush1.msra.mxu0 0.0
    %1710 = vmatprep.subr.mxu0 0.0
    %1711 = vmatpush1.msra.mxu0 0.0
    %1712 = vmatprep.subr.mxu0 0.0
    %1713 = vmatpush1.msra.mxu0 0.0
    %1714 = vmatprep.subr.mxu0 0.0
    %1715 = vmatpush1.msra.mxu0 0.0
    %1716 = vmatprep.subr.mxu0 0.0
    %1717 = vmatpush1.msra.mxu0 0.0
    %1718 = vmatprep.subr.mxu0 0.0
    %1719 = vmatpush1.msra.mxu0 0.0
    %1720 = vmatprep.subr.mxu0 0.0
    %1721 = vmatpush1.msra.mxu0 0.0
    %1722 = vmatprep.mubr.f32.mxu0 0.0
    %v1723 = vand.u32 %v1648, 4294901760
    %v1724 = vsub.f32 %v1648, %v1723
    %v1725 = vand.u32 %v1724, 4294901760
    %v1726 = vsub.f32 %v1724, %v1725
    %v1727 = vand.u32 %v1726, 4294901760
    %1728 = vmatmul.mubr.f32.gmra.mrb[0].mxu0 %v1727
    %v1729 = vpop.f32.mrb[0].mxu0
    %v1730 = vadd.f32 %v557, %v1729
    %v1731 = vpop.f32.mrb[0].mxu0
    %1732 = vdwg.mxu0
    %1733 = vmatprep.subr.mxu0 0.0
    %v1734 = vand.u32 %v537, 4294901760
    %v1735 = vsub.f32 %v537, %v1734
    %v1736 = vand.u32 %v1735, 4294901760
    %v1737 = vsub.f32 %v1735, %v1736
    %v1738 = vand.u32 %v1737, 4294901760
    %1739 = vmatpush1.msra.mxu0 %v1738
    %1740 = vmatprep.subr.mxu0 0.0
    %v1741 = vand.u32 %v538, 4294901760
    %v1742 = vsub.f32 %v538, %v1741
    %v1743 = vand.u32 %v1742, 4294901760
    %v1744 = vsub.f32 %v1742, %v1743
    %v1745 = vand.u32 %v1744, 4294901760
    %1746 = vmatpush1.msra.mxu0 %v1745
    %1747 = vmatprep.subr.mxu0 0.0
    %v1748 = vand.u32 %v539, 4294901760
    %v1749 = vsub.f32 %v539, %v1748
    %v1750 = vand.u32 %v1749, 4294901760
    %v1751 = vsub.f32 %v1749, %v1750
    %v1752 = vand.u32 %v1751, 4294901760
    %1753 = vmatpush1.msra.mxu0 %v1752
    %1754 = vmatprep.subr.mxu0 0.0
    %v1755 = vand.u32 %v540, 4294901760
    %v1756 = vsub.f32 %v540, %v1755
    %v1757 = vand.u32 %v1756, 4294901760
    %v1758 = vsub.f32 %v1756, %v1757
    %v1759 = vand.u32 %v1758, 4294901760
    %1760 = vmatpush1.msra.mxu0 %v1759
    %1761 = vmatprep.subr.mxu0 0.0
    %v1762 = vand.u32 %v541, 4294901760
    %v1763 = vsub.f32 %v541, %v1762
    %v1764 = vand.u32 %v1763, 4294901760
    %v1765 = vsub.f32 %v1763, %v1764
    %v1766 = vand.u32 %v1765, 4294901760
    %1767 = vmatpush1.msra.mxu0 %v1766
    %1768 = vmatprep.subr.mxu0 0.0
    %v1769 = vand.u32 %v542, 4294901760
    %v1770 = vsub.f32 %v542, %v1769
    %v1771 = vand.u32 %v1770, 4294901760
    %v1772 = vsub.f32 %v1770, %v1771
    %v1773 = vand.u32 %v1772, 4294901760
    %1774 = vmatpush1.msra.mxu0 %v1773
    %1775 = vmatprep.subr.mxu0 0.0
    %v1776 = vand.u32 %v543, 4294901760
    %v1777 = vsub.f32 %v543, %v1776
    %v1778 = vand.u32 %v1777, 4294901760
    %v1779 = vsub.f32 %v1777, %v1778
    %v1780 = vand.u32 %v1779, 4294901760
    %1781 = vmatpush1.msra.mxu0 %v1780
    %1782 = vmatprep.subr.mxu0 0.0
    %v1783 = vand.u32 %v544, 4294901760
    %v1784 = vsub.f32 %v544, %v1783
    %v1785 = vand.u32 %v1784, 4294901760
    %v1786 = vsub.f32 %v1784, %v1785
    %v1787 = vand.u32 %v1786, 4294901760
    %1788 = vmatpush1.msra.mxu0 %v1787
    %1789 = vmatprep.subr.mxu0 0.0
    %1790 = vmatpush1.msra.mxu0 0.0
    %1791 = vmatprep.subr.mxu0 0.0
    %1792 = vmatpush1.msra.mxu0 0.0
    %1793 = vmatprep.subr.mxu0 0.0
    %1794 = vmatpush1.msra.mxu0 0.0
    %1795 = vmatprep.subr.mxu0 0.0
    %1796 = vmatpush1.msra.mxu0 0.0
    %1797 = vmatprep.subr.mxu0 0.0
    %1798 = vmatpush1.msra.mxu0 0.0
    %1799 = vmatprep.subr.mxu0 0.0
    %1800 = vmatpush1.msra.mxu0 0.0
    %1801 = vmatprep.subr.mxu0 0.0
    %1802 = vmatpush1.msra.mxu0 0.0
    %1803 = vmatprep.subr.mxu0 0.0
    %1804 = vmatpush1.msra.mxu0 0.0
    %1805 = vmatprep.subr.mxu0 0.0
    %1806 = vmatpush1.msra.mxu0 0.0
    %1807 = vmatprep.subr.mxu0 0.0
    %1808 = vmatpush1.msra.mxu0 0.0
    %1809 = vmatprep.subr.mxu0 0.0
    %1810 = vmatpush1.msra.mxu0 0.0
    %1811 = vmatprep.subr.mxu0 0.0
    %1812 = vmatpush1.msra.mxu0 0.0
    %1813 = vmatprep.subr.mxu0 0.0
    %1814 = vmatpush1.msra.mxu0 0.0
    %1815 = vmatprep.subr.mxu0 0.0
    %1816 = vmatpush1.msra.mxu0 0.0
    %1817 = vmatprep.subr.mxu0 0.0
    %1818 = vmatpush1.msra.mxu0 0.0
    %1819 = vmatprep.subr.mxu0 0.0
    %1820 = vmatpush1.msra.mxu0 0.0
    %1821 = vmatprep.subr.mxu0 0.0
    %1822 = vmatpush1.msra.mxu0 0.0
    %1823 = vmatprep.subr.mxu0 0.0
    %1824 = vmatpush1.msra.mxu0 0.0
    %1825 = vmatprep.subr.mxu0 0.0
    %1826 = vmatpush1.msra.mxu0 0.0
    %1827 = vmatprep.subr.mxu0 0.0
    %1828 = vmatpush1.msra.mxu0 0.0
    %1829 = vmatprep.subr.mxu0 0.0
    %1830 = vmatpush1.msra.mxu0 0.0
    %1831 = vmatprep.subr.mxu0 0.0
    %1832 = vmatpush1.msra.mxu0 0.0
    %1833 = vmatprep.subr.mxu0 0.0
    %1834 = vmatpush1.msra.mxu0 0.0
    %1835 = vmatprep.subr.mxu0 0.0
    %1836 = vmatpush1.msra.mxu0 0.0
    %1837 = vmatprep.mubr.f32.mxu0 0.0
    %v1838 = vand.u32 %v1648, 4294901760
    %1839 = vmatmul.mubr.f32.gmra.mrb[0].mxu0 %v1838
    %v1840 = vpop.f32.mrb[0].mxu0
    %v1841 = vadd.f32 %v1730, %v1840
    %v1842 = vpop.f32.mrb[0].mxu0
    %1843 = vdwg.mxu0
    %1844 = vmatprep.subr.mxu0 0.0
    %v1845 = vand.u32 %v537, 4294901760
    %v1846 = vsub.f32 %v537, %v1845
    %1847 = vmatpush1.msra.mxu0 %v1846
    %1848 = vmatprep.subr.mxu0 0.0
    %v1849 = vand.u32 %v538, 4294901760
    %v1850 = vsub.f32 %v538, %v1849
    %1851 = vmatpush1.msra.mxu0 %v1850
    %1852 = vmatprep.subr.mxu0 0.0
    %v1853 = vand.u32 %v539, 4294901760
    %v1854 = vsub.f32 %v539, %v1853
    %1855 = vmatpush1.msra.mxu0 %v1854
    %1856 = vmatprep.subr.mxu0 0.0
    %v1857 = vand.u32 %v540, 4294901760
    %v1858 = vsub.f32 %v540, %v1857
    %1859 = vmatpush1.msra.mxu0 %v1858
    %1860 = vmatprep.subr.mxu0 0.0
    %v1861 = vand.u32 %v541, 4294901760
    %v1862 = vsub.f32 %v541, %v1861
    %1863 = vmatpush1.msra.mxu0 %v1862
    %1864 = vmatprep.subr.mxu0 0.0
    %v1865 = vand.u32 %v542, 4294901760
    %v1866 = vsub.f32 %v542, %v1865
    %1867 = vmatpush1.msra.mxu0 %v1866
    %1868 = vmatprep.subr.mxu0 0.0
    %v1869 = vand.u32 %v543, 4294901760
    %v1870 = vsub.f32 %v543, %v1869
    %1871 = vmatpush1.msra.mxu0 %v1870
    %1872 = vmatprep.subr.mxu0 0.0
    %v1873 = vand.u32 %v544, 4294901760
    %v1874 = vsub.f32 %v544, %v1873
    %1875 = vmatpush1.msra.mxu0 %v1874
    %1876 = vmatprep.subr.mxu0 0.0
    %1877 = vmatpush1.msra.mxu0 0.0
    %1878 = vmatprep.subr.mxu0 0.0
    %1879 = vmatpush1.msra.mxu0 0.0
    %1880 = vmatprep.subr.mxu0 0.0
    %1881 = vmatpush1.msra.mxu0 0.0
    %1882 = vmatprep.subr.mxu0 0.0
    %1883 = vmatpush1.msra.mxu0 0.0
    %1884 = vmatprep.subr.mxu0 0.0
    %1885 = vmatpush1.msra.mxu0 0.0
    %1886 = vmatprep.subr.mxu0 0.0
    %1887 = vmatpush1.msra.mxu0 0.0
    %1888 = vmatprep.subr.mxu0 0.0
    %1889 = vmatpush1.msra.mxu0 0.0
    %1890 = vmatprep.subr.mxu0 0.0
    %1891 = vmatpush1.msra.mxu0 0.0
    %1892 = vmatprep.subr.mxu0 0.0
    %1893 = vmatpush1.msra.mxu0 0.0
    %1894 = vmatprep.subr.mxu0 0.0
    %1895 = vmatpush1.msra.mxu0 0.0
    %1896 = vmatprep.subr.mxu0 0.0
    %1897 = vmatpush1.msra.mxu0 0.0
    %1898 = vmatprep.subr.mxu0 0.0
    %1899 = vmatpush1.msra.mxu0 0.0
    %1900 = vmatprep.subr.mxu0 0.0
    %1901 = vmatpush1.msra.mxu0 0.0
    %1902 = vmatprep.subr.mxu0 0.0
    %1903 = vmatpush1.msra.mxu0 0.0
    %1904 = vmatprep.subr.mxu0 0.0
    %1905 = vmatpush1.msra.mxu0 0.0
    %1906 = vmatprep.subr.mxu0 0.0
    %1907 = vmatpush1.msra.mxu0 0.0
    %1908 = vmatprep.subr.mxu0 0.0
    %1909 = vmatpush1.msra.mxu0 0.0
    %1910 = vmatprep.subr.mxu0 0.0
    %1911 = vmatpush1.msra.mxu0 0.0
    %1912 = vmatprep.subr.mxu0 0.0
    %1913 = vmatpush1.msra.mxu0 0.0
    %1914 = vmatprep.subr.mxu0 0.0
    %1915 = vmatpush1.msra.mxu0 0.0
    %1916 = vmatprep.subr.mxu0 0.0
    %1917 = vmatpush1.msra.mxu0 0.0
    %1918 = vmatprep.subr.mxu0 0.0
    %1919 = vmatpush1.msra.mxu0 0.0
    %1920 = vmatprep.subr.mxu0 0.0
    %1921 = vmatpush1.msra.mxu0 0.0
    %1922 = vmatprep.subr.mxu0 0.0
    %1923 = vmatpush1.msra.mxu0 0.0
    %1924 = vmatprep.mubr.f32.mxu0 0.0
    %v1925 = vand.u32 %v1648, 4294901760
    %v1926 = vsub.f32 %v1648, %v1925
    %1927 = vmatmul.mubr.f32.gmra.mrb[0].mxu0 %v1926
    %v1928 = vpop.f32.mrb[0].mxu0
    %v1929 = vadd.f32 %v1841, %v1928
    %v1930 = vpop.f32.mrb[0].mxu0
    %1931 = vdwg.mxu0
    %1932 = vmatprep.subr.mxu0 0.0
    %v1933 = vand.u32 %v537, 4294901760
    %1934 = vmatpush1.msra.mxu0 %v1933
    %1935 = vmatprep.subr.mxu0 0.0
    %v1936 = vand.u32 %v538, 4294901760
    %1937 = vmatpush1.msra.mxu0 %v1936
    %1938 = vmatprep.subr.mxu0 0.0
    %v1939 = vand.u32 %v539, 4294901760
    %1940 = vmatpush1.msra.mxu0 %v1939
    %1941 = vmatprep.subr.mxu0 0.0
    %v1942 = vand.u32 %v540, 4294901760
    %1943 = vmatpush1.msra.mxu0 %v1942
    %1944 = vmatprep.subr.mxu0 0.0
    %v1945 = vand.u32 %v541, 4294901760
    %1946 = vmatpush1.msra.mxu0 %v1945
    %1947 = vmatprep.subr.mxu0 0.0
    %v1948 = vand.u32 %v542, 4294901760
    %1949 = vmatpush1.msra.mxu0 %v1948
    %1950 = vmatprep.subr.mxu0 0.0
    %v1951 = vand.u32 %v543, 4294901760
    %1952 = vmatpush1.msra.mxu0 %v1951
    %1953 = vmatprep.subr.mxu0 0.0
    %v1954 = vand.u32 %v544, 4294901760
    %1955 = vmatpush1.msra.mxu0 %v1954
    %1956 = vmatprep.subr.mxu0 0.0
    %1957 = vmatpush1.msra.mxu0 0.0
    %1958 = vmatprep.subr.mxu0 0.0
    %1959 = vmatpush1.msra.mxu0 0.0
    %1960 = vmatprep.subr.mxu0 0.0
    %1961 = vmatpush1.msra.mxu0 0.0
    %1962 = vmatprep.subr.mxu0 0.0
    %1963 = vmatpush1.msra.mxu0 0.0
    %1964 = vmatprep.subr.mxu0 0.0
    %1965 = vmatpush1.msra.mxu0 0.0
    %1966 = vmatprep.subr.mxu0 0.0
    %1967 = vmatpush1.msra.mxu0 0.0
    %1968 = vmatprep.subr.mxu0 0.0
    %1969 = vmatpush1.msra.mxu0 0.0
    %1970 = vmatprep.subr.mxu0 0.0
    %1971 = vmatpush1.msra.mxu0 0.0
    %1972 = vmatprep.subr.mxu0 0.0
    %1973 = vmatpush1.msra.mxu0 0.0
    %1974 = vmatprep.subr.mxu0 0.0
    %1975 = vmatpush1.msra.mxu0 0.0
    %1976 = vmatprep.subr.mxu0 0.0
    %1977 = vmatpush1.msra.mxu0 0.0
    %1978 = vmatprep.subr.mxu0 0.0
    %1979 = vmatpush1.msra.mxu0 0.0
    %1980 = vmatprep.subr.mxu0 0.0
    %1981 = vmatpush1.msra.mxu0 0.0
    %1982 = vmatprep.subr.mxu0 0.0
    %1983 = vmatpush1.msra.mxu0 0.0
    %1984 = vmatprep.subr.mxu0 0.0
    %1985 = vmatpush1.msra.mxu0 0.0
    %1986 = vmatprep.subr.mxu0 0.0
    %1987 = vmatpush1.msra.mxu0 0.0
    %1988 = vmatprep.subr.mxu0 0.0
    %1989 = vmatpush1.msra.mxu0 0.0
    %1990 = vmatprep.subr.mxu0 0.0
    %1991 = vmatpush1.msra.mxu0 0.0
    %1992 = vmatprep.subr.mxu0 0.0
    %1993 = vmatpush1.msra.mxu0 0.0
    %1994 = vmatprep.subr.mxu0 0.0
    %1995 = vmatpush1.msra.mxu0 0.0
    %1996 = vmatprep.subr.mxu0 0.0
    %1997 = vmatpush1.msra.mxu0 0.0
    %1998 = vmatprep.subr.mxu0 0.0
    %1999 = vmatpush1.msra.mxu0 0.0
    %2000 = vmatprep.subr.mxu0 0.0
    %2001 = vmatpush1.msra.mxu0 0.0
    %2002 = vmatprep.subr.mxu0 0.0
    %2003 = vmatpush1.msra.mxu0 0.0
    %2004 = vmatprep.mubr.f32.mxu0 0.0
    %v2005 = vand.u32 %v1648, 4294901760
    %v2006 = vsub.f32 %v1648, %v2005
    %v2007 = vand.u32 %v2006, 4294901760
    %2008 = vmatmul.mubr.f32.gmra.mrb[0].mxu0 %v2007
    %v2009 = vpop.f32.mrb[0].mxu0
    %v2010 = vadd.f32 %v1929, %v2009
    %v2011 = vpop.f32.mrb[0].mxu0
    %2012 = vdwg.mxu0
    %2013 = vmatprep.subr.mxu0 0.0
    %v2014 = vand.u32 %v537, 4294901760
    %v2015 = vsub.f32 %v537, %v2014
    %v2016 = vand.u32 %v2015, 4294901760
    %2017 = vmatpush1.msra.mxu0 %v2016
    %2018 = vmatprep.subr.mxu0 0.0
    %v2019 = vand.u32 %v538, 4294901760
    %v2020 = vsub.f32 %v538, %v2019
    %v2021 = vand.u32 %v2020, 4294901760
    %2022 = vmatpush1.msra.mxu0 %v2021
    %2023 = vmatprep.subr.mxu0 0.0
    %v2024 = vand.u32 %v539, 4294901760
    %v2025 = vsub.f32 %v539, %v2024
    %v2026 = vand.u32 %v2025, 4294901760
    %2027 = vmatpush1.msra.mxu0 %v2026
    %2028 = vmatprep.subr.mxu0 0.0
    %v2029 = vand.u32 %v540, 4294901760
    %v2030 = vsub.f32 %v540, %v2029
    %v2031 = vand.u32 %v2030, 4294901760
    %2032 = vmatpush1.msra.mxu0 %v2031
    %2033 = vmatprep.subr.mxu0 0.0
    %v2034 = vand.u32 %v541, 4294901760
    %v2035 = vsub.f32 %v541, %v2034
    %v2036 = vand.u32 %v2035, 4294901760
    %2037 = vmatpush1.msra.mxu0 %v2036
    %2038 = vmatprep.subr.mxu0 0.0
    %v2039 = vand.u32 %v542, 4294901760
    %v2040 = vsub.f32 %v542, %v2039
    %v2041 = vand.u32 %v2040, 4294901760
    %2042 = vmatpush1.msra.mxu0 %v2041
    %2043 = vmatprep.subr.mxu0 0.0
    %v2044 = vand.u32 %v543, 4294901760
    %v2045 = vsub.f32 %v543, %v2044
    %v2046 = vand.u32 %v2045, 4294901760
    %2047 = vmatpush1.msra.mxu0 %v2046
    %2048 = vmatprep.subr.mxu0 0.0
    %v2049 = vand.u32 %v544, 4294901760
    %v2050 = vsub.f32 %v544, %v2049
    %v2051 = vand.u32 %v2050, 4294901760
    %2052 = vmatpush1.msra.mxu0 %v2051
    %2053 = vmatprep.subr.mxu0 0.0
    %2054 = vmatpush1.msra.mxu0 0.0
    %2055 = vmatprep.subr.mxu0 0.0
    %2056 = vmatpush1.msra.mxu0 0.0
    %2057 = vmatprep.subr.mxu0 0.0
    %2058 = vmatpush1.msra.mxu0 0.0
    %2059 = vmatprep.subr.mxu0 0.0
    %2060 = vmatpush1.msra.mxu0 0.0
    %2061 = vmatprep.subr.mxu0 0.0
    %2062 = vmatpush1.msra.mxu0 0.0
    %2063 = vmatprep.subr.mxu0 0.0
    %2064 = vmatpush1.msra.mxu0 0.0
    %2065 = vmatprep.subr.mxu0 0.0
    %2066 = vmatpush1.msra.mxu0 0.0
    %2067 = vmatprep.subr.mxu0 0.0
    %2068 = vmatpush1.msra.mxu0 0.0
    %2069 = vmatprep.subr.mxu0 0.0
    %2070 = vmatpush1.msra.mxu0 0.0
    %2071 = vmatprep.subr.mxu0 0.0
    %2072 = vmatpush1.msra.mxu0 0.0
    %2073 = vmatprep.subr.mxu0 0.0
    %2074 = vmatpush1.msra.mxu0 0.0
    %2075 = vmatprep.subr.mxu0 0.0
    %2076 = vmatpush1.msra.mxu0 0.0
    %2077 = vmatprep.subr.mxu0 0.0
    %2078 = vmatpush1.msra.mxu0 0.0
    %2079 = vmatprep.subr.mxu0 0.0
    %2080 = vmatpush1.msra.mxu0 0.0
    %2081 = vmatprep.subr.mxu0 0.0
    %2082 = vmatpush1.msra.mxu0 0.0
    %2083 = vmatprep.subr.mxu0 0.0
    %2084 = vmatpush1.msra.mxu0 0.0
    %2085 = vmatprep.subr.mxu0 0.0
    %2086 = vmatpush1.msra.mxu0 0.0
    %2087 = vmatprep.subr.mxu0 0.0
    %2088 = vmatpush1.msra.mxu0 0.0
    %2089 = vmatprep.subr.mxu0 0.0
    %2090 = vmatpush1.msra.mxu0 0.0
    %2091 = vmatprep.subr.mxu0 0.0
    %2092 = vmatpush1.msra.mxu0 0.0
    %2093 = vmatprep.subr.mxu0 0.0
    %2094 = vmatpush1.msra.mxu0 0.0
    %2095 = vmatprep.subr.mxu0 0.0
    %2096 = vmatpush1.msra.mxu0 0.0
    %2097 = vmatprep.subr.mxu0 0.0
    %2098 = vmatpush1.msra.mxu0 0.0
    %2099 = vmatprep.subr.mxu0 0.0
    %2100 = vmatpush1.msra.mxu0 0.0
    %2101 = vmatprep.mubr.f32.mxu0 0.0
    %v2102 = vand.u32 %v1648, 4294901760
    %2103 = vmatmul.mubr.f32.gmra.mrb[0].mxu0 %v2102
    %v2104 = vpop.f32.mrb[0].mxu0
    %v2105 = vadd.f32 %v2010, %v2104
    %v2106 = vpop.f32.mrb[0].mxu0
    %2107 = vdwg.mxu0
    %2108 = vmatprep.subr.mxu0 0.0
    %v2109 = vand.u32 %v537, 4294901760
    %2110 = vmatpush1.msra.mxu0 %v2109
    %2111 = vmatprep.subr.mxu0 0.0
    %v2112 = vand.u32 %v538, 4294901760
    %2113 = vmatpush1.msra.mxu0 %v2112
    %2114 = vmatprep.subr.mxu0 0.0
    %v2115 = vand.u32 %v539, 4294901760
    %2116 = vmatpush1.msra.mxu0 %v2115
    %2117 = vmatprep.subr.mxu0 0.0
    %v2118 = vand.u32 %v540, 4294901760
    %2119 = vmatpush1.msra.mxu0 %v2118
    %2120 = vmatprep.subr.mxu0 0.0
    %v2121 = vand.u32 %v541, 4294901760
    %2122 = vmatpush1.msra.mxu0 %v2121
    %2123 = vmatprep.subr.mxu0 0.0
    %v2124 = vand.u32 %v542, 4294901760
    %2125 = vmatpush1.msra.mxu0 %v2124
    %2126 = vmatprep.subr.mxu0 0.0
    %v2127 = vand.u32 %v543, 4294901760
    %2128 = vmatpush1.msra.mxu0 %v2127
    %2129 = vmatprep.subr.mxu0 0.0
    %v2130 = vand.u32 %v544, 4294901760
    %2131 = vmatpush1.msra.mxu0 %v2130
    %2132 = vmatprep.subr.mxu0 0.0
    %2133 = vmatpush1.msra.mxu0 0.0
    %2134 = vmatprep.subr.mxu0 0.0
    %2135 = vmatpush1.msra.mxu0 0.0
    %2136 = vmatprep.subr.mxu0 0.0
    %2137 = vmatpush1.msra.mxu0 0.0
    %2138 = vmatprep.subr.mxu0 0.0
    %2139 = vmatpush1.msra.mxu0 0.0
    %2140 = vmatprep.subr.mxu0 0.0
    %2141 = vmatpush1.msra.mxu0 0.0
    %2142 = vmatprep.subr.mxu0 0.0
    %2143 = vmatpush1.msra.mxu0 0.0
    %2144 = vmatprep.subr.mxu0 0.0
    %2145 = vmatpush1.msra.mxu0 0.0
    %2146 = vmatprep.subr.mxu0 0.0
    %2147 = vmatpush1.msra.mxu0 0.0
    %2148 = vmatprep.subr.mxu0 0.0
    %2149 = vmatpush1.msra.mxu0 0.0
    %2150 = vmatprep.subr.mxu0 0.0
    %2151 = vmatpush1.msra.mxu0 0.0
    %2152 = vmatprep.subr.mxu0 0.0
    %2153 = vmatpush1.msra.mxu0 0.0
    %2154 = vmatprep.subr.mxu0 0.0
    %2155 = vmatpush1.msra.mxu0 0.0
    %2156 = vmatprep.subr.mxu0 0.0
    %2157 = vmatpush1.msra.mxu0 0.0
    %2158 = vmatprep.subr.mxu0 0.0
    %2159 = vmatpush1.msra.mxu0 0.0
    %2160 = vmatprep.subr.mxu0 0.0
    %2161 = vmatpush1.msra.mxu0 0.0
    %2162 = vmatprep.subr.mxu0 0.0
    %2163 = vmatpush1.msra.mxu0 0.0
    %2164 = vmatprep.subr.mxu0 0.0
    %2165 = vmatpush1.msra.mxu0 0.0
    %2166 = vmatprep.subr.mxu0 0.0
    %2167 = vmatpush1.msra.mxu0 0.0
    %2168 = vmatprep.subr.mxu0 0.0
    %2169 = vmatpush1.msra.mxu0 0.0
    %2170 = vmatprep.subr.mxu0 0.0
    %2171 = vmatpush1.msra.mxu0 0.0
    %2172 = vmatprep.subr.mxu0 0.0
    %2173 = vmatpush1.msra.mxu0 0.0
    %2174 = vmatprep.subr.mxu0 0.0
    %2175 = vmatpush1.msra.mxu0 0.0
    %2176 = vmatprep.subr.mxu0 0.0
    %2177 = vmatpush1.msra.mxu0 0.0
    %2178 = vmatprep.subr.mxu0 0.0
    %2179 = vmatpush1.msra.mxu0 0.0
    %2180 = vmatprep.mubr.f32.mxu0 0.0
    %v2181 = vand.u32 %v1648, 4294901760
    %2182 = vmatmul.mubr.f32.gmra.mrb[0].mxu0 %v2181
    %v2183 = vpop.f32.mrb[0].mxu0
    %v2184 = vadd.f32 %v2105, %v2183
    %v2185 = vpop.f32.mrb[0].mxu0
    %2186 = vdwg.mxu0
    %v2187 = vmax.f32 %v2184, 0.0
    %v2189 = vsel %vm563, %v2187, 0
    %2191 = vmatprep.subr.mxu0 0.0
    %v2192 = vand.u32 %v545, 4294901760
    %2193 = vmatpush1.msra.mxu0 %v2192
    %2194 = vmatprep.subr.mxu0 0.0
    %v2195 = vand.u32 %v546, 4294901760
    %2196 = vmatpush1.msra.mxu0 %v2195
    %2197 = vmatprep.subr.mxu0 0.0
    %v2198 = vand.u32 %v547, 4294901760
    %2199 = vmatpush1.msra.mxu0 %v2198
    %2200 = vmatprep.subr.mxu0 0.0
    %v2201 = vand.u32 %v548, 4294901760
    %2202 = vmatpush1.msra.mxu0 %v2201
    %2203 = vmatprep.subr.mxu0 0.0
    %v2204 = vand.u32 %v549, 4294901760
    %2205 = vmatpush1.msra.mxu0 %v2204
    %2206 = vmatprep.subr.mxu0 0.0
    %v2207 = vand.u32 %v550, 4294901760
    %2208 = vmatpush1.msra.mxu0 %v2207
    %2209 = vmatprep.subr.mxu0 0.0
    %v2210 = vand.u32 %v551, 4294901760
    %2211 = vmatpush1.msra.mxu0 %v2210
    %2212 = vmatprep.subr.mxu0 0.0
    %v2213 = vand.u32 %v552, 4294901760
    %2214 = vmatpush1.msra.mxu0 %v2213
    %2215 = vmatprep.subr.mxu0 0.0
    %2216 = vmatpush1.msra.mxu0 0.0
    %2217 = vmatprep.subr.mxu0 0.0
    %2218 = vmatpush1.msra.mxu0 0.0
    %2219 = vmatprep.subr.mxu0 0.0
    %2220 = vmatpush1.msra.mxu0 0.0
    %2221 = vmatprep.subr.mxu0 0.0
    %2222 = vmatpush1.msra.mxu0 0.0
    %2223 = vmatprep.subr.mxu0 0.0
    %2224 = vmatpush1.msra.mxu0 0.0
    %2225 = vmatprep.subr.mxu0 0.0
    %2226 = vmatpush1.msra.mxu0 0.0
    %2227 = vmatprep.subr.mxu0 0.0
    %2228 = vmatpush1.msra.mxu0 0.0
    %2229 = vmatprep.subr.mxu0 0.0
    %2230 = vmatpush1.msra.mxu0 0.0
    %2231 = vmatprep.subr.mxu0 0.0
    %2232 = vmatpush1.msra.mxu0 0.0
    %2233 = vmatprep.subr.mxu0 0.0
    %2234 = vmatpush1.msra.mxu0 0.0
    %2235 = vmatprep.subr.mxu0 0.0
    %2236 = vmatpush1.msra.mxu0 0.0
    %2237 = vmatprep.subr.mxu0 0.0
    %2238 = vmatpush1.msra.mxu0 0.0
    %2239 = vmatprep.subr.mxu0 0.0
    %2240 = vmatpush1.msra.mxu0 0.0
    %2241 = vmatprep.subr.mxu0 0.0
    %2242 = vmatpush1.msra.mxu0 0.0
    %2243 = vmatprep.subr.mxu0 0.0
    %2244 = vmatpush1.msra.mxu0 0.0
    %2245 = vmatprep.subr.mxu0 0.0
    %2246 = vmatpush1.msra.mxu0 0.0
    %2247 = vmatprep.subr.mxu0 0.0
    %2248 = vmatpush1.msra.mxu0 0.0
    %2249 = vmatprep.subr.mxu0 0.0
    %2250 = vmatpush1.msra.mxu0 0.0
    %2251 = vmatprep.subr.mxu0 0.0
    %2252 = vmatpush1.msra.mxu0 0.0
    %2253 = vmatprep.subr.mxu0 0.0
    %2254 = vmatpush1.msra.mxu0 0.0
    %2255 = vmatprep.subr.mxu0 0.0
    %2256 = vmatpush1.msra.mxu0 0.0
    %2257 = vmatprep.subr.mxu0 0.0
    %2258 = vmatpush1.msra.mxu0 0.0
    %2259 = vmatprep.subr.mxu0 0.0
    %2260 = vmatpush1.msra.mxu0 0.0
    %2261 = vmatprep.subr.mxu0 0.0
    %2262 = vmatpush1.msra.mxu0 0.0
    %2263 = vmatprep.mubr.f32.mxu0 0.0
    %v2264 = vand.u32 %v2189, 4294901760
    %v2265 = vsub.f32 %v2189, %v2264
    %v2266 = vand.u32 %v2265, 4294901760
    %v2267 = vsub.f32 %v2265, %v2266
    %v2268 = vand.u32 %v2267, 4294901760
    %2269 = vmatmul.mubr.f32.gmra.mrb[0].mxu0 %v2268
    %v2270 = vpop.f32.mrb[0].mxu0
    %v2271 = vadd.f32 %v562, %v2270
    %v2272 = vpop.f32.mrb[0].mxu0
    %2273 = vdwg.mxu0
    %2274 = vmatprep.subr.mxu0 0.0
    %v2275 = vand.u32 %v545, 4294901760
    %v2276 = vsub.f32 %v545, %v2275
    %v2277 = vand.u32 %v2276, 4294901760
    %v2278 = vsub.f32 %v2276, %v2277
    %v2279 = vand.u32 %v2278, 4294901760
    %2280 = vmatpush1.msra.mxu0 %v2279
    %2281 = vmatprep.subr.mxu0 0.0
    %v2282 = vand.u32 %v546, 4294901760
    %v2283 = vsub.f32 %v546, %v2282
    %v2284 = vand.u32 %v2283, 4294901760
    %v2285 = vsub.f32 %v2283, %v2284
    %v2286 = vand.u32 %v2285, 4294901760
    %2287 = vmatpush1.msra.mxu0 %v2286
    %2288 = vmatprep.subr.mxu0 0.0
    %v2289 = vand.u32 %v547, 4294901760
    %v2290 = vsub.f32 %v547, %v2289
    %v2291 = vand.u32 %v2290, 4294901760
    %v2292 = vsub.f32 %v2290, %v2291
    %v2293 = vand.u32 %v2292, 4294901760
    %2294 = vmatpush1.msra.mxu0 %v2293
    %2295 = vmatprep.subr.mxu0 0.0
    %v2296 = vand.u32 %v548, 4294901760
    %v2297 = vsub.f32 %v548, %v2296
    %v2298 = vand.u32 %v2297, 4294901760
    %v2299 = vsub.f32 %v2297, %v2298
    %v2300 = vand.u32 %v2299, 4294901760
    %2301 = vmatpush1.msra.mxu0 %v2300
    %2302 = vmatprep.subr.mxu0 0.0
    %v2303 = vand.u32 %v549, 4294901760
    %v2304 = vsub.f32 %v549, %v2303
    %v2305 = vand.u32 %v2304, 4294901760
    %v2306 = vsub.f32 %v2304, %v2305
    %v2307 = vand.u32 %v2306, 4294901760
    %2308 = vmatpush1.msra.mxu0 %v2307
    %2309 = vmatprep.subr.mxu0 0.0
    %v2310 = vand.u32 %v550, 4294901760
    %v2311 = vsub.f32 %v550, %v2310
    %v2312 = vand.u32 %v2311, 4294901760
    %v2313 = vsub.f32 %v2311, %v2312
    %v2314 = vand.u32 %v2313, 4294901760
    %2315 = vmatpush1.msra.mxu0 %v2314
    %2316 = vmatprep.subr.mxu0 0.0
    %v2317 = vand.u32 %v551, 4294901760
    %v2318 = vsub.f32 %v551, %v2317
    %v2319 = vand.u32 %v2318, 4294901760
    %v2320 = vsub.f32 %v2318, %v2319
    %v2321 = vand.u32 %v2320, 4294901760
    %2322 = vmatpush1.msra.mxu0 %v2321
    %2323 = vmatprep.subr.mxu0 0.0
    %v2324 = vand.u32 %v552, 4294901760
    %v2325 = vsub.f32 %v552, %v2324
    %v2326 = vand.u32 %v2325, 4294901760
    %v2327 = vsub.f32 %v2325, %v2326
    %v2328 = vand.u32 %v2327, 4294901760
    %2329 = vmatpush1.msra.mxu0 %v2328
    %2330 = vmatprep.subr.mxu0 0.0
    %2331 = vmatpush1.msra.mxu0 0.0
    %2332 = vmatprep.subr.mxu0 0.0
    %2333 = vmatpush1.msra.mxu0 0.0
    %2334 = vmatprep.subr.mxu0 0.0
    %2335 = vmatpush1.msra.mxu0 0.0
    %2336 = vmatprep.subr.mxu0 0.0
    %2337 = vmatpush1.msra.mxu0 0.0
    %2338 = vmatprep.subr.mxu0 0.0
    %2339 = vmatpush1.msra.mxu0 0.0
    %2340 = vmatprep.subr.mxu0 0.0
    %2341 = vmatpush1.msra.mxu0 0.0
    %2342 = vmatprep.subr.mxu0 0.0
    %2343 = vmatpush1.msra.mxu0 0.0
    %2344 = vmatprep.subr.mxu0 0.0
    %2345 = vmatpush1.msra.mxu0 0.0
    %2346 = vmatprep.subr.mxu0 0.0
    %2347 = vmatpush1.msra.mxu0 0.0
    %2348 = vmatprep.subr.mxu0 0.0
    %2349 = vmatpush1.msra.mxu0 0.0
    %2350 = vmatprep.subr.mxu0 0.0
    %2351 = vmatpush1.msra.mxu0 0.0
    %2352 = vmatprep.subr.mxu0 0.0
    %2353 = vmatpush1.msra.mxu0 0.0
    %2354 = vmatprep.subr.mxu0 0.0
    %2355 = vmatpush1.msra.mxu0 0.0
    %2356 = vmatprep.subr.mxu0 0.0
    %2357 = vmatpush1.msra.mxu0 0.0
    %2358 = vmatprep.subr.mxu0 0.0
    %2359 = vmatpush1.msra.mxu0 0.0
    %2360 = vmatprep.subr.mxu0 0.0
    %2361 = vmatpush1.msra.mxu0 0.0
    %2362 = vmatprep.subr.mxu0 0.0
    %2363 = vmatpush1.msra.mxu0 0.0
    %2364 = vmatprep.subr.mxu0 0.0
    %2365 = vmatpush1.msra.mxu0 0.0
    %2366 = vmatprep.subr.mxu0 0.0
    %2367 = vmatpush1.msra.mxu0 0.0
    %2368 = vmatprep.subr.mxu0 0.0
    %2369 = vmatpush1.msra.mxu0 0.0
    %2370 = vmatprep.subr.mxu0 0.0
    %2371 = vmatpush1.msra.mxu0 0.0
    %2372 = vmatprep.subr.mxu0 0.0
    %2373 = vmatpush1.msra.mxu0 0.0
    %2374 = vmatprep.subr.mxu0 0.0
    %2375 = vmatpush1.msra.mxu0 0.0
    %2376 = vmatprep.subr.mxu0 0.0
    %2377 = vmatpush1.msra.mxu0 0.0
    %2378 = vmatprep.mubr.f32.mxu0 0.0
    %v2379 = vand.u32 %v2189, 4294901760
    %2380 = vmatmul.mubr.f32.gmra.mrb[0].mxu0 %v2379
    %v2381 = vpop.f32.mrb[0].mxu0
    %v2382 = vadd.f32 %v2271, %v2381
    %v2383 = vpop.f32.mrb[0].mxu0
    %2384 = vdwg.mxu0
    %2385 = vmatprep.subr.mxu0 0.0
    %v2386 = vand.u32 %v545, 4294901760
    %v2387 = vsub.f32 %v545, %v2386
    %2388 = vmatpush1.msra.mxu0 %v2387
    %2389 = vmatprep.subr.mxu0 0.0
    %v2390 = vand.u32 %v546, 4294901760
    %v2391 = vsub.f32 %v546, %v2390
    %2392 = vmatpush1.msra.mxu0 %v2391
    %2393 = vmatprep.subr.mxu0 0.0
    %v2394 = vand.u32 %v547, 4294901760
    %v2395 = vsub.f32 %v547, %v2394
    %2396 = vmatpush1.msra.mxu0 %v2395
    %2397 = vmatprep.subr.mxu0 0.0
    %v2398 = vand.u32 %v548, 4294901760
    %v2399 = vsub.f32 %v548, %v2398
    %2400 = vmatpush1.msra.mxu0 %v2399
    %2401 = vmatprep.subr.mxu0 0.0
    %v2402 = vand.u32 %v549, 4294901760
    %v2403 = vsub.f32 %v549, %v2402
    %2404 = vmatpush1.msra.mxu0 %v2403
    %2405 = vmatprep.subr.mxu0 0.0
    %v2406 = vand.u32 %v550, 4294901760
    %v2407 = vsub.f32 %v550, %v2406
    %2408 = vmatpush1.msra.mxu0 %v2407
    %2409 = vmatprep.subr.mxu0 0.0
    %v2410 = vand.u32 %v551, 4294901760
    %v2411 = vsub.f32 %v551, %v2410
    %2412 = vmatpush1.msra.mxu0 %v2411
    %2413 = vmatprep.subr.mxu0 0.0
    %v2414 = vand.u32 %v552, 4294901760
    %v2415 = vsub.f32 %v552, %v2414
    %2416 = vmatpush1.msra.mxu0 %v2415
    %2417 = vmatprep.subr.mxu0 0.0
    %2418 = vmatpush1.msra.mxu0 0.0
    %2419 = vmatprep.subr.mxu0 0.0
    %2420 = vmatpush1.msra.mxu0 0.0
    %2421 = vmatprep.subr.mxu0 0.0
    %2422 = vmatpush1.msra.mxu0 0.0
    %2423 = vmatprep.subr.mxu0 0.0
    %2424 = vmatpush1.msra.mxu0 0.0
    %2425 = vmatprep.subr.mxu0 0.0
    %2426 = vmatpush1.msra.mxu0 0.0
    %2427 = vmatprep.subr.mxu0 0.0
    %2428 = vmatpush1.msra.mxu0 0.0
    %2429 = vmatprep.subr.mxu0 0.0
    %2430 = vmatpush1.msra.mxu0 0.0
    %2431 = vmatprep.subr.mxu0 0.0
    %2432 = vmatpush1.msra.mxu0 0.0
    %2433 = vmatprep.subr.mxu0 0.0
    %2434 = vmatpush1.msra.mxu0 0.0
    %2435 = vmatprep.subr.mxu0 0.0
    %2436 = vmatpush1.msra.mxu0 0.0
    %2437 = vmatprep.subr.mxu0 0.0
    %2438 = vmatpush1.msra.mxu0 0.0
    %2439 = vmatprep.subr.mxu0 0.0
    %2440 = vmatpush1.msra.mxu0 0.0
    %2441 = vmatprep.subr.mxu0 0.0
    %2442 = vmatpush1.msra.mxu0 0.0
    %2443 = vmatprep.subr.mxu0 0.0
    %2444 = vmatpush1.msra.mxu0 0.0
    %2445 = vmatprep.subr.mxu0 0.0
    %2446 = vmatpush1.msra.mxu0 0.0
    %2447 = vmatprep.subr.mxu0 0.0
    %2448 = vmatpush1.msra.mxu0 0.0
    %2449 = vmatprep.subr.mxu0 0.0
    %2450 = vmatpush1.msra.mxu0 0.0
    %2451 = vmatprep.subr.mxu0 0.0
    %2452 = vmatpush1.msra.mxu0 0.0
    %2453 = vmatprep.subr.mxu0 0.0
    %2454 = vmatpush1.msra.mxu0 0.0
    %2455 = vmatprep.subr.mxu0 0.0
    %2456 = vmatpush1.msra.mxu0 0.0
    %2457 = vmatprep.subr.mxu0 0.0
    %2458 = vmatpush1.msra.mxu0 0.0
    %2459 = vmatprep.subr.mxu0 0.0
    %2460 = vmatpush1.msra.mxu0 0.0
    %2461 = vmatprep.subr.mxu0 0.0
    %2462 = vmatpush1.msra.mxu0 0.0
    %2463 = vmatprep.subr.mxu0 0.0
    %2464 = vmatpush1.msra.mxu0 0.0
    %2465 = vmatprep.mubr.f32.mxu0 0.0
    %v2466 = vand.u32 %v2189, 4294901760
    %v2467 = vsub.f32 %v2189, %v2466
    %2468 = vmatmul.mubr.f32.gmra.mrb[0].mxu0 %v2467
    %v2469 = vpop.f32.mrb[0].mxu0
    %v2470 = vadd.f32 %v2382, %v2469
    %v2471 = vpop.f32.mrb[0].mxu0
    %2472 = vdwg.mxu0
    %2473 = vmatprep.subr.mxu0 0.0
    %v2474 = vand.u32 %v545, 4294901760
    %2475 = vmatpush1.msra.mxu0 %v2474
    %2476 = vmatprep.subr.mxu0 0.0
    %v2477 = vand.u32 %v546, 4294901760
    %2478 = vmatpush1.msra.mxu0 %v2477
    %2479 = vmatprep.subr.mxu0 0.0
    %v2480 = vand.u32 %v547, 4294901760
    %2481 = vmatpush1.msra.mxu0 %v2480
    %2482 = vmatprep.subr.mxu0 0.0
    %v2483 = vand.u32 %v548, 4294901760
    %2484 = vmatpush1.msra.mxu0 %v2483
    %2485 = vmatprep.subr.mxu0 0.0
    %v2486 = vand.u32 %v549, 4294901760
    %2487 = vmatpush1.msra.mxu0 %v2486
    %2488 = vmatprep.subr.mxu0 0.0
    %v2489 = vand.u32 %v550, 4294901760
    %2490 = vmatpush1.msra.mxu0 %v2489
    %2491 = vmatprep.subr.mxu0 0.0
    %v2492 = vand.u32 %v551, 4294901760
    %2493 = vmatpush1.msra.mxu0 %v2492
    %2494 = vmatprep.subr.mxu0 0.0
    %v2495 = vand.u32 %v552, 4294901760
    %2496 = vmatpush1.msra.mxu0 %v2495
    %2497 = vmatprep.subr.mxu0 0.0
    %2498 = vmatpush1.msra.mxu0 0.0
    %2499 = vmatprep.subr.mxu0 0.0
    %2500 = vmatpush1.msra.mxu0 0.0
    %2501 = vmatprep.subr.mxu0 0.0
    %2502 = vmatpush1.msra.mxu0 0.0
    %2503 = vmatprep.subr.mxu0 0.0
    %2504 = vmatpush1.msra.mxu0 0.0
    %2505 = vmatprep.subr.mxu0 0.0
    %2506 = vmatpush1.msra.mxu0 0.0
    %2507 = vmatprep.subr.mxu0 0.0
    %2508 = vmatpush1.msra.mxu0 0.0
    %2509 = vmatprep.subr.mxu0 0.0
    %2510 = vmatpush1.msra.mxu0 0.0
    %2511 = vmatprep.subr.mxu0 0.0
    %2512 = vmatpush1.msra.mxu0 0.0
    %2513 = vmatprep.subr.mxu0 0.0
    %2514 = vmatpush1.msra.mxu0 0.0
    %2515 = vmatprep.subr.mxu0 0.0
    %2516 = vmatpush1.msra.mxu0 0.0
    %2517 = vmatprep.subr.mxu0 0.0
    %2518 = vmatpush1.msra.mxu0 0.0
    %2519 = vmatprep.subr.mxu0 0.0
    %2520 = vmatpush1.msra.mxu0 0.0
    %2521 = vmatprep.subr.mxu0 0.0
    %2522 = vmatpush1.msra.mxu0 0.0
    %2523 = vmatprep.subr.mxu0 0.0
    %2524 = vmatpush1.msra.mxu0 0.0
    %2525 = vmatprep.subr.mxu0 0.0
    %2526 = vmatpush1.msra.mxu0 0.0
    %2527 = vmatprep.subr.mxu0 0.0
    %2528 = vmatpush1.msra.mxu0 0.0
    %2529 = vmatprep.subr.mxu0 0.0
    %2530 = vmatpush1.msra.mxu0 0.0
    %2531 = vmatprep.subr.mxu0 0.0
    %2532 = vmatpush1.msra.mxu0 0.0
    %2533 = vmatprep.subr.mxu0 0.0
    %2534 = vmatpush1.msra.mxu0 0.0
    %2535 = vmatprep.subr.mxu0 0.0
    %2536 = vmatpush1.msra.mxu0 0.0
    %2537 = vmatprep.subr.mxu0 0.0
    %2538 = vmatpush1.msra.mxu0 0.0
    %2539 = vmatprep.subr.mxu0 0.0
    %2540 = vmatpush1.msra.mxu0 0.0
    %2541 = vmatprep.subr.mxu0 0.0
    %2542 = vmatpush1.msra.mxu0 0.0
    %2543 = vmatprep.subr.mxu0 0.0
    %2544 = vmatpush1.msra.mxu0 0.0
    %2545 = vmatprep.mubr.f32.mxu0 0.0
    %v2546 = vand.u32 %v2189, 4294901760
    %v2547 = vsub.f32 %v2189, %v2546
    %v2548 = vand.u32 %v2547, 4294901760
    %2549 = vmatmul.mubr.f32.gmra.mrb[0].mxu0 %v2548
    %v2550 = vpop.f32.mrb[0].mxu0
    %v2551 = vadd.f32 %v2470, %v2550
    %v2552 = vpop.f32.mrb[0].mxu0
    %2553 = vdwg.mxu0
    %2554 = vmatprep.subr.mxu0 0.0
    %v2555 = vand.u32 %v545, 4294901760
    %v2556 = vsub.f32 %v545, %v2555
    %v2557 = vand.u32 %v2556, 4294901760
    %2558 = vmatpush1.msra.mxu0 %v2557
    %2559 = vmatprep.subr.mxu0 0.0
    %v2560 = vand.u32 %v546, 4294901760
    %v2561 = vsub.f32 %v546, %v2560
    %v2562 = vand.u32 %v2561, 4294901760
    %2563 = vmatpush1.msra.mxu0 %v2562
    %2564 = vmatprep.subr.mxu0 0.0
    %v2565 = vand.u32 %v547, 4294901760
    %v2566 = vsub.f32 %v547, %v2565
    %v2567 = vand.u32 %v2566, 4294901760
    %2568 = vmatpush1.msra.mxu0 %v2567
    %2569 = vmatprep.subr.mxu0 0.0
    %v2570 = vand.u32 %v548, 4294901760
    %v2571 = vsub.f32 %v548, %v2570
    %v2572 = vand.u32 %v2571, 4294901760
    %2573 = vmatpush1.msra.mxu0 %v2572
    %2574 = vmatprep.subr.mxu0 0.0
    %v2575 = vand.u32 %v549, 4294901760
    %v2576 = vsub.f32 %v549, %v2575
    %v2577 = vand.u32 %v2576, 4294901760
    %2578 = vmatpush1.msra.mxu0 %v2577
    %2579 = vmatprep.subr.mxu0 0.0
    %v2580 = vand.u32 %v550, 4294901760
    %v2581 = vsub.f32 %v550, %v2580
    %v2582 = vand.u32 %v2581, 4294901760
    %2583 = vmatpush1.msra.mxu0 %v2582
    %2584 = vmatprep.subr.mxu0 0.0
    %v2585 = vand.u32 %v551, 4294901760
    %v2586 = vsub.f32 %v551, %v2585
    %v2587 = vand.u32 %v2586, 4294901760
    %2588 = vmatpush1.msra.mxu0 %v2587
    %2589 = vmatprep.subr.mxu0 0.0
    %v2590 = vand.u32 %v552, 4294901760
    %v2591 = vsub.f32 %v552, %v2590
    %v2592 = vand.u32 %v2591, 4294901760
    %2593 = vmatpush1.msra.mxu0 %v2592
    %2594 = vmatprep.subr.mxu0 0.0
    %2595 = vmatpush1.msra.mxu0 0.0
    %2596 = vmatprep.subr.mxu0 0.0
    %2597 = vmatpush1.msra.mxu0 0.0
    %2598 = vmatprep.subr.mxu0 0.0
    %2599 = vmatpush1.msra.mxu0 0.0
    %2600 = vmatprep.subr.mxu0 0.0
    %2601 = vmatpush1.msra.mxu0 0.0
    %2602 = vmatprep.subr.mxu0 0.0
    %2603 = vmatpush1.msra.mxu0 0.0
    %2604 = vmatprep.subr.mxu0 0.0
    %2605 = vmatpush1.msra.mxu0 0.0
    %2606 = vmatprep.subr.mxu0 0.0
    %2607 = vmatpush1.msra.mxu0 0.0
    %2608 = vmatprep.subr.mxu0 0.0
    %2609 = vmatpush1.msra.mxu0 0.0
    %2610 = vmatprep.subr.mxu0 0.0
    %2611 = vmatpush1.msra.mxu0 0.0
    %2612 = vmatprep.subr.mxu0 0.0
    %2613 = vmatpush1.msra.mxu0 0.0
    %2614 = vmatprep.subr.mxu0 0.0
    %2615 = vmatpush1.msra.mxu0 0.0
    %2616 = vmatprep.subr.mxu0 0.0
    %2617 = vmatpush1.msra.mxu0 0.0
    %2618 = vmatprep.subr.mxu0 0.0
    %2619 = vmatpush1.msra.mxu0 0.0
    %2620 = vmatprep.subr.mxu0 0.0
    %2621 = vmatpush1.msra.mxu0 0.0
    %2622 = vmatprep.subr.mxu0 0.0
    %2623 = vmatpush1.msra.mxu0 0.0
    %2624 = vmatprep.subr.mxu0 0.0
    %2625 = vmatpush1.msra.mxu0 0.0
    %2626 = vmatprep.subr.mxu0 0.0
    %2627 = vmatpush1.msra.mxu0 0.0
    %2628 = vmatprep.subr.mxu0 0.0
    %2629 = vmatpush1.msra.mxu0 0.0
    %2630 = vmatprep.subr.mxu0 0.0
    %2631 = vmatpush1.msra.mxu0 0.0
    %2632 = vmatprep.subr.mxu0 0.0
    %2633 = vmatpush1.msra.mxu0 0.0
    %2634 = vmatprep.subr.mxu0 0.0
    %2635 = vmatpush1.msra.mxu0 0.0
    %2636 = vmatprep.subr.mxu0 0.0
    %2637 = vmatpush1.msra.mxu0 0.0
    %2638 = vmatprep.subr.mxu0 0.0
    %2639 = vmatpush1.msra.mxu0 0.0
    %2640 = vmatprep.subr.mxu0 0.0
    %2641 = vmatpush1.msra.mxu0 0.0
    %2642 = vmatprep.mubr.f32.mxu0 0.0
    %v2643 = vand.u32 %v2189, 4294901760
    %2644 = vmatmul.mubr.f32.gmra.mrb[0].mxu0 %v2643
    %v2645 = vpop.f32.mrb[0].mxu0
    %v2646 = vadd.f32 %v2551, %v2645
    %v2647 = vpop.f32.mrb[0].mxu0
    %2648 = vdwg.mxu0
    %2649 = vmatprep.subr.mxu0 0.0
    %v2650 = vand.u32 %v545, 4294901760
    %2651 = vmatpush1.msra.mxu0 %v2650
    %2652 = vmatprep.subr.mxu0 0.0
    %v2653 = vand.u32 %v546, 4294901760
    %2654 = vmatpush1.msra.mxu0 %v2653
    %2655 = vmatprep.subr.mxu0 0.0
    %v2656 = vand.u32 %v547, 4294901760
    %2657 = vmatpush1.msra.mxu0 %v2656
    %2658 = vmatprep.subr.mxu0 0.0
    %v2659 = vand.u32 %v548, 4294901760
    %2660 = vmatpush1.msra.mxu0 %v2659
    %2661 = vmatprep.subr.mxu0 0.0
    %v2662 = vand.u32 %v549, 4294901760
    %2663 = vmatpush1.msra.mxu0 %v2662
    %2664 = vmatprep.subr.mxu0 0.0
    %v2665 = vand.u32 %v550, 4294901760
    %2666 = vmatpush1.msra.mxu0 %v2665
    %2667 = vmatprep.subr.mxu0 0.0
    %v2668 = vand.u32 %v551, 4294901760
    %2669 = vmatpush1.msra.mxu0 %v2668
    %2670 = vmatprep.subr.mxu0 0.0
    %v2671 = vand.u32 %v552, 4294901760
    %2672 = vmatpush1.msra.mxu0 %v2671
    %2673 = vmatprep.subr.mxu0 0.0
    %2674 = vmatpush1.msra.mxu0 0.0
    %2675 = vmatprep.subr.mxu0 0.0
    %2676 = vmatpush1.msra.mxu0 0.0
    %2677 = vmatprep.subr.mxu0 0.0
    %2678 = vmatpush1.msra.mxu0 0.0
    %2679 = vmatprep.subr.mxu0 0.0
    %2680 = vmatpush1.msra.mxu0 0.0
    %2681 = vmatprep.subr.mxu0 0.0
    %2682 = vmatpush1.msra.mxu0 0.0
    %2683 = vmatprep.subr.mxu0 0.0
    %2684 = vmatpush1.msra.mxu0 0.0
    %2685 = vmatprep.subr.mxu0 0.0
    %2686 = vmatpush1.msra.mxu0 0.0
    %2687 = vmatprep.subr.mxu0 0.0
    %2688 = vmatpush1.msra.mxu0 0.0
    %2689 = vmatprep.subr.mxu0 0.0
    %2690 = vmatpush1.msra.mxu0 0.0
    %2691 = vmatprep.subr.mxu0 0.0
    %2692 = vmatpush1.msra.mxu0 0.0
    %2693 = vmatprep.subr.mxu0 0.0
    %2694 = vmatpush1.msra.mxu0 0.0
    %2695 = vmatprep.subr.mxu0 0.0
    %2696 = vmatpush1.msra.mxu0 0.0
    %2697 = vmatprep.subr.mxu0 0.0
    %2698 = vmatpush1.msra.mxu0 0.0
    %2699 = vmatprep.subr.mxu0 0.0
    %2700 = vmatpush1.msra.mxu0 0.0
    %2701 = vmatprep.subr.mxu0 0.0
    %2702 = vmatpush1.msra.mxu0 0.0
    %2703 = vmatprep.subr.mxu0 0.0
    %2704 = vmatpush1.msra.mxu0 0.0
    %2705 = vmatprep.subr.mxu0 0.0
    %2706 = vmatpush1.msra.mxu0 0.0
    %2707 = vmatprep.subr.mxu0 0.0
    %2708 = vmatpush1.msra.mxu0 0.0
    %2709 = vmatprep.subr.mxu0 0.0
    %2710 = vmatpush1.msra.mxu0 0.0
    %2711 = vmatprep.subr.mxu0 0.0
    %2712 = vmatpush1.msra.mxu0 0.0
    %2713 = vmatprep.subr.mxu0 0.0
    %2714 = vmatpush1.msra.mxu0 0.0
    %2715 = vmatprep.subr.mxu0 0.0
    %2716 = vmatpush1.msra.mxu0 0.0
    %2717 = vmatprep.subr.mxu0 0.0
    %2718 = vmatpush1.msra.mxu0 0.0
    %2719 = vmatprep.subr.mxu0 0.0
    %2720 = vmatpush1.msra.mxu0 0.0
    %2721 = vmatprep.mubr.f32.mxu0 0.0
    %v2722 = vand.u32 %v2189, 4294901760
    %2723 = vmatmul.mubr.f32.gmra.mrb[0].mxu0 %v2722
    %v2724 = vpop.f32.mrb[0].mxu0
    %v2725 = vadd.f32 %v2646, %v2724
    %v2726 = vpop.f32.mrb[0].mxu0
    %2727 = vdwg.mxu0
    %v2728 = vmax.f32 %v2725, 0.0
    %v2729 = vadd.f32 %v1646, %v2728
    %v2730 = vld [vmem:[#allocation4 + $0xb8] sm:$0xff]
    %v2731 = vld [vmem:[#allocation4 + $0xc0] sm:$0xff]
    %v2732 = vld [vmem:[#allocation4 + $0xc8] sm:$0xff]
    %v2733 = vld [vmem:[#allocation4 + $0xd0] sm:$0xff]
    %v2734 = vld [vmem:[#allocation4 + $0xd8] sm:$0xff]
    %v2735 = vld [vmem:[#allocation4 + $0xe0] sm:$0xff]
    %v2736 = vld [vmem:[#allocation4 + $0xe8] sm:$0xff]
    %v2737 = vld [vmem:[#allocation4 + $0xf0] sm:$0xff]
    %v2738 = vld [vmem:[#allocation4 + $0xf8] sm:$0x1]
    %v2739 = vlaneseq
    %v2740 = vshrl.u32 %v2739, 7
    %v2741 = vsub.s32 0, %v2740
    %v2742 = vrot.slane %v2738, %v2741
    %v2744 = vsel %vm563, %v2729, 0
    %2746 = vmatprep.subr.mxu0 0.0
    %v2747 = vand.u32 %v2730, 4294901760
    %2748 = vmatpush1.msra.mxu0 %v2747
    %2749 = vmatprep.subr.mxu0 0.0
    %v2750 = vand.u32 %v2731, 4294901760
    %2751 = vmatpush1.msra.mxu0 %v2750
    %2752 = vmatprep.subr.mxu0 0.0
    %v2753 = vand.u32 %v2732, 4294901760
    %2754 = vmatpush1.msra.mxu0 %v2753
    %2755 = vmatprep.subr.mxu0 0.0
    %v2756 = vand.u32 %v2733, 4294901760
    %2757 = vmatpush1.msra.mxu0 %v2756
    %2758 = vmatprep.subr.mxu0 0.0
    %v2759 = vand.u32 %v2734, 4294901760
    %2760 = vmatpush1.msra.mxu0 %v2759
    %2761 = vmatprep.subr.mxu0 0.0
    %v2762 = vand.u32 %v2735, 4294901760
    %2763 = vmatpush1.msra.mxu0 %v2762
    %2764 = vmatprep.subr.mxu0 0.0
    %v2765 = vand.u32 %v2736, 4294901760
    %2766 = vmatpush1.msra.mxu0 %v2765
    %2767 = vmatprep.subr.mxu0 0.0
    %v2768 = vand.u32 %v2737, 4294901760
    %2769 = vmatpush1.msra.mxu0 %v2768
    %2770 = vmatprep.subr.mxu0 0.0
    %2771 = vmatpush1.msra.mxu0 0.0
    %2772 = vmatprep.subr.mxu0 0.0
    %2773 = vmatpush1.msra.mxu0 0.0
    %2774 = vmatprep.subr.mxu0 0.0
    %2775 = vmatpush1.msra.mxu0 0.0
    %2776 = vmatprep.subr.mxu0 0.0
    %2777 = vmatpush1.msra.mxu0 0.0
    %2778 = vmatprep.subr.mxu0 0.0
    %2779 = vmatpush1.msra.mxu0 0.0
    %2780 = vmatprep.subr.mxu0 0.0
    %2781 = vmatpush1.msra.mxu0 0.0
    %2782 = vmatprep.subr.mxu0 0.0
    %2783 = vmatpush1.msra.mxu0 0.0
    %2784 = vmatprep.subr.mxu0 0.0
    %2785 = vmatpush1.msra.mxu0 0.0
    %2786 = vmatprep.subr.mxu0 0.0
    %2787 = vmatpush1.msra.mxu0 0.0
    %2788 = vmatprep.subr.mxu0 0.0
    %2789 = vmatpush1.msra.mxu0 0.0
    %2790 = vmatprep.subr.mxu0 0.0
    %2791 = vmatpush1.msra.mxu0 0.0
    %2792 = vmatprep.subr.mxu0 0.0
    %2793 = vmatpush1.msra.mxu0 0.0
    %2794 = vmatprep.subr.mxu0 0.0
    %2795 = vmatpush1.msra.mxu0 0.0
    %2796 = vmatprep.subr.mxu0 0.0
    %2797 = vmatpush1.msra.mxu0 0.0
    %2798 = vmatprep.subr.mxu0 0.0
    %2799 = vmatpush1.msra.mxu0 0.0
    %2800 = vmatprep.subr.mxu0 0.0
    %2801 = vmatpush1.msra.mxu0 0.0
    %2802 = vmatprep.subr.mxu0 0.0
    %2803 = vmatpush1.msra.mxu0 0.0
    %2804 = vmatprep.subr.mxu0 0.0
    %2805 = vmatpush1.msra.mxu0 0.0
    %2806 = vmatprep.subr.mxu0 0.0
    %2807 = vmatpush1.msra.mxu0 0.0
    %2808 = vmatprep.subr.mxu0 0.0
    %2809 = vmatpush1.msra.mxu0 0.0
    %2810 = vmatprep.subr.mxu0 0.0
    %2811 = vmatpush1.msra.mxu0 0.0
    %2812 = vmatprep.subr.mxu0 0.0
    %2813 = vmatpush1.msra.mxu0 0.0
    %2814 = vmatprep.subr.mxu0 0.0
    %2815 = vmatpush1.msra.mxu0 0.0
    %2816 = vmatprep.subr.mxu0 0.0
    %2817 = vmatpush1.msra.mxu0 0.0
    %2818 = vmatprep.mubr.f32.mxu0 0.0
    %v2819 = vand.u32 %v2744, 4294901760
    %v2820 = vsub.f32 %v2744, %v2819
    %v2821 = vand.u32 %v2820, 4294901760
    %v2822 = vsub.f32 %v2820, %v2821
    %v2823 = vand.u32 %v2822, 4294901760
    %2824 = vmatmul.mubr.f32.gmra.mrb[0].mxu0 %v2823
    %v2825 = vpop.f32.mrb[0].mxu0
    %v2826 = vadd.f32 %v2742, %v2825
    %v2827 = vpop.f32.mrb[0].mxu0
    %2828 = vdwg.mxu0
    %2829 = vmatprep.subr.mxu0 0.0
    %v2830 = vand.u32 %v2730, 4294901760
    %v2831 = vsub.f32 %v2730, %v2830
    %v2832 = vand.u32 %v2831, 4294901760
    %v2833 = vsub.f32 %v2831, %v2832
    %v2834 = vand.u32 %v2833, 4294901760
    %2835 = vmatpush1.msra.mxu0 %v2834
    %2836 = vmatprep.subr.mxu0 0.0
    %v2837 = vand.u32 %v2731, 4294901760
    %v2838 = vsub.f32 %v2731, %v2837
    %v2839 = vand.u32 %v2838, 4294901760
    %v2840 = vsub.f32 %v2838, %v2839
    %v2841 = vand.u32 %v2840, 4294901760
    %2842 = vmatpush1.msra.mxu0 %v2841
    %2843 = vmatprep.subr.mxu0 0.0
    %v2844 = vand.u32 %v2732, 4294901760
    %v2845 = vsub.f32 %v2732, %v2844
    %v2846 = vand.u32 %v2845, 4294901760
    %v2847 = vsub.f32 %v2845, %v2846
    %v2848 = vand.u32 %v2847, 4294901760
    %2849 = vmatpush1.msra.mxu0 %v2848
    %2850 = vmatprep.subr.mxu0 0.0
    %v2851 = vand.u32 %v2733, 4294901760
    %v2852 = vsub.f32 %v2733, %v2851
    %v2853 = vand.u32 %v2852, 4294901760
    %v2854 = vsub.f32 %v2852, %v2853
    %v2855 = vand.u32 %v2854, 4294901760
    %2856 = vmatpush1.msra.mxu0 %v2855
    %2857 = vmatprep.subr.mxu0 0.0
    %v2858 = vand.u32 %v2734, 4294901760
    %v2859 = vsub.f32 %v2734, %v2858
    %v2860 = vand.u32 %v2859, 4294901760
    %v2861 = vsub.f32 %v2859, %v2860
    %v2862 = vand.u32 %v2861, 4294901760
    %2863 = vmatpush1.msra.mxu0 %v2862
    %2864 = vmatprep.subr.mxu0 0.0
    %v2865 = vand.u32 %v2735, 4294901760
    %v2866 = vsub.f32 %v2735, %v2865
    %v2867 = vand.u32 %v2866, 4294901760
    %v2868 = vsub.f32 %v2866, %v2867
    %v2869 = vand.u32 %v2868, 4294901760
    %2870 = vmatpush1.msra.mxu0 %v2869
    %2871 = vmatprep.subr.mxu0 0.0
    %v2872 = vand.u32 %v2736, 4294901760
    %v2873 = vsub.f32 %v2736, %v2872
    %v2874 = vand.u32 %v2873, 4294901760
    %v2875 = vsub.f32 %v2873, %v2874
    %v2876 = vand.u32 %v2875, 4294901760
    %2877 = vmatpush1.msra.mxu0 %v2876
    %2878 = vmatprep.subr.mxu0 0.0
    %v2879 = vand.u32 %v2737, 4294901760
    %v2880 = vsub.f32 %v2737, %v2879
    %v2881 = vand.u32 %v2880, 4294901760
    %v2882 = vsub.f32 %v2880, %v2881
    %v2883 = vand.u32 %v2882, 4294901760
    %2884 = vmatpush1.msra.mxu0 %v2883
    %2885 = vmatprep.subr.mxu0 0.0
    %2886 = vmatpush1.msra.mxu0 0.0
    %2887 = vmatprep.subr.mxu0 0.0
    %2888 = vmatpush1.msra.mxu0 0.0
    %2889 = vmatprep.subr.mxu0 0.0
    %2890 = vmatpush1.msra.mxu0 0.0
    %2891 = vmatprep.subr.mxu0 0.0
    %2892 = vmatpush1.msra.mxu0 0.0
    %2893 = vmatprep.subr.mxu0 0.0
    %2894 = vmatpush1.msra.mxu0 0.0
    %2895 = vmatprep.subr.mxu0 0.0
    %2896 = vmatpush1.msra.mxu0 0.0
    %2897 = vmatprep.subr.mxu0 0.0
    %2898 = vmatpush1.msra.mxu0 0.0
    %2899 = vmatprep.subr.mxu0 0.0
    %2900 = vmatpush1.msra.mxu0 0.0
    %2901 = vmatprep.subr.mxu0 0.0
    %2902 = vmatpush1.msra.mxu0 0.0
    %2903 = vmatprep.subr.mxu0 0.0
    %2904 = vmatpush1.msra.mxu0 0.0
    %2905 = vmatprep.subr.mxu0 0.0
    %2906 = vmatpush1.msra.mxu0 0.0
    %2907 = vmatprep.subr.mxu0 0.0
    %2908 = vmatpush1.msra.mxu0 0.0
    %2909 = vmatprep.subr.mxu0 0.0
    %2910 = vmatpush1.msra.mxu0 0.0
    %2911 = vmatprep.subr.mxu0 0.0
    %2912 = vmatpush1.msra.mxu0 0.0
    %2913 = vmatprep.subr.mxu0 0.0
    %2914 = vmatpush1.msra.mxu0 0.0
    %2915 = vmatprep.subr.mxu0 0.0
    %2916 = vmatpush1.msra.mxu0 0.0
    %2917 = vmatprep.subr.mxu0 0.0
    %2918 = vmatpush1.msra.mxu0 0.0
    %2919 = vmatprep.subr.mxu0 0.0
    %2920 = vmatpush1.msra.mxu0 0.0
    %2921 = vmatprep.subr.mxu0 0.0
    %2922 = vmatpush1.msra.mxu0 0.0
    %2923 = vmatprep.subr.mxu0 0.0
    %2924 = vmatpush1.msra.mxu0 0.0
    %2925 = vmatprep.subr.mxu0 0.0
    %2926 = vmatpush1.msra.mxu0 0.0
    %2927 = vmatprep.subr.mxu0 0.0
    %2928 = vmatpush1.msra.mxu0 0.0
    %2929 = vmatprep.subr.mxu0 0.0
    %2930 = vmatpush1.msra.mxu0 0.0
    %2931 = vmatprep.subr.mxu0 0.0
    %2932 = vmatpush1.msra.mxu0 0.0
    %2933 = vmatprep.mubr.f32.mxu0 0.0
    %v2934 = vand.u32 %v2744, 4294901760
    %2935 = vmatmul.mubr.f32.gmra.mrb[0].mxu0 %v2934
    %v2936 = vpop.f32.mrb[0].mxu0
    %v2937 = vadd.f32 %v2826, %v2936
    %v2938 = vpop.f32.mrb[0].mxu0
    %2939 = vdwg.mxu0
    %2940 = vmatprep.subr.mxu0 0.0
    %v2941 = vand.u32 %v2730, 4294901760
    %v2942 = vsub.f32 %v2730, %v2941
    %2943 = vmatpush1.msra.mxu0 %v2942
    %2944 = vmatprep.subr.mxu0 0.0
    %v2945 = vand.u32 %v2731, 4294901760
    %v2946 = vsub.f32 %v2731, %v2945
    %2947 = vmatpush1.msra.mxu0 %v2946
    %2948 = vmatprep.subr.mxu0 0.0
    %v2949 = vand.u32 %v2732, 4294901760
    %v2950 = vsub.f32 %v2732, %v2949
    %2951 = vmatpush1.msra.mxu0 %v2950
    %2952 = vmatprep.subr.mxu0 0.0
    %v2953 = vand.u32 %v2733, 4294901760
    %v2954 = vsub.f32 %v2733, %v2953
    %2955 = vmatpush1.msra.mxu0 %v2954
    %2956 = vmatprep.subr.mxu0 0.0
    %v2957 = vand.u32 %v2734, 4294901760
    %v2958 = vsub.f32 %v2734, %v2957
    %2959 = vmatpush1.msra.mxu0 %v2958
    %2960 = vmatprep.subr.mxu0 0.0
    %v2961 = vand.u32 %v2735, 4294901760
    %v2962 = vsub.f32 %v2735, %v2961
    %2963 = vmatpush1.msra.mxu0 %v2962
    %2964 = vmatprep.subr.mxu0 0.0
    %v2965 = vand.u32 %v2736, 4294901760
    %v2966 = vsub.f32 %v2736, %v2965
    %2967 = vmatpush1.msra.mxu0 %v2966
    %2968 = vmatprep.subr.mxu0 0.0
    %v2969 = vand.u32 %v2737, 4294901760
    %v2970 = vsub.f32 %v2737, %v2969
    %2971 = vmatpush1.msra.mxu0 %v2970
    %2972 = vmatprep.subr.mxu0 0.0
    %2973 = vmatpush1.msra.mxu0 0.0
    %2974 = vmatprep.subr.mxu0 0.0
    %2975 = vmatpush1.msra.mxu0 0.0
    %2976 = vmatprep.subr.mxu0 0.0
    %2977 = vmatpush1.msra.mxu0 0.0
    %2978 = vmatprep.subr.mxu0 0.0
    %2979 = vmatpush1.msra.mxu0 0.0
    %2980 = vmatprep.subr.mxu0 0.0
    %2981 = vmatpush1.msra.mxu0 0.0
    %2982 = vmatprep.subr.mxu0 0.0
    %2983 = vmatpush1.msra.mxu0 0.0
    %2984 = vmatprep.subr.mxu0 0.0
    %2985 = vmatpush1.msra.mxu0 0.0
    %2986 = vmatprep.subr.mxu0 0.0
    %2987 = vmatpush1.msra.mxu0 0.0
    %2988 = vmatprep.subr.mxu0 0.0
    %2989 = vmatpush1.msra.mxu0 0.0
    %2990 = vmatprep.subr.mxu0 0.0
    %2991 = vmatpush1.msra.mxu0 0.0
    %2992 = vmatprep.subr.mxu0 0.0
    %2993 = vmatpush1.msra.mxu0 0.0
    %2994 = vmatprep.subr.mxu0 0.0
    %2995 = vmatpush1.msra.mxu0 0.0
    %2996 = vmatprep.subr.mxu0 0.0
    %2997 = vmatpush1.msra.mxu0 0.0
    %2998 = vmatprep.subr.mxu0 0.0
    %2999 = vmatpush1.msra.mxu0 0.0
    %3000 = vmatprep.subr.mxu0 0.0
    %3001 = vmatpush1.msra.mxu0 0.0
    %3002 = vmatprep.subr.mxu0 0.0
    %3003 = vmatpush1.msra.mxu0 0.0
    %3004 = vmatprep.subr.mxu0 0.0
    %3005 = vmatpush1.msra.mxu0 0.0
    %3006 = vmatprep.subr.mxu0 0.0
    %3007 = vmatpush1.msra.mxu0 0.0
    %3008 = vmatprep.subr.mxu0 0.0
    %3009 = vmatpush1.msra.mxu0 0.0
    %3010 = vmatprep.subr.mxu0 0.0
    %3011 = vmatpush1.msra.mxu0 0.0
    %3012 = vmatprep.subr.mxu0 0.0
    %3013 = vmatpush1.msra.mxu0 0.0
    %3014 = vmatprep.subr.mxu0 0.0
    %3015 = vmatpush1.msra.mxu0 0.0
    %3016 = vmatprep.subr.mxu0 0.0
    %3017 = vmatpush1.msra.mxu0 0.0
    %3018 = vmatprep.subr.mxu0 0.0
    %3019 = vmatpush1.msra.mxu0 0.0
    %3020 = vmatprep.mubr.f32.mxu0 0.0
    %v3021 = vand.u32 %v2744, 4294901760
    %v3022 = vsub.f32 %v2744, %v3021
    %3023 = vmatmul.mubr.f32.gmra.mrb[0].mxu0 %v3022
    %v3024 = vpop.f32.mrb[0].mxu0
    %v3025 = vadd.f32 %v2937, %v3024
    %v3026 = vpop.f32.mrb[0].mxu0
    %3027 = vdwg.mxu0
    %3028 = vmatprep.subr.mxu0 0.0
    %v3029 = vand.u32 %v2730, 4294901760
    %3030 = vmatpush1.msra.mxu0 %v3029
    %3031 = vmatprep.subr.mxu0 0.0
    %v3032 = vand.u32 %v2731, 4294901760
    %3033 = vmatpush1.msra.mxu0 %v3032
    %3034 = vmatprep.subr.mxu0 0.0
    %v3035 = vand.u32 %v2732, 4294901760
    %3036 = vmatpush1.msra.mxu0 %v3035
    %3037 = vmatprep.subr.mxu0 0.0
    %v3038 = vand.u32 %v2733, 4294901760
    %3039 = vmatpush1.msra.mxu0 %v3038
    %3040 = vmatprep.subr.mxu0 0.0
    %v3041 = vand.u32 %v2734, 4294901760
    %3042 = vmatpush1.msra.mxu0 %v3041
    %3043 = vmatprep.subr.mxu0 0.0
    %v3044 = vand.u32 %v2735, 4294901760
    %3045 = vmatpush1.msra.mxu0 %v3044
    %3046 = vmatprep.subr.mxu0 0.0
    %v3047 = vand.u32 %v2736, 4294901760
    %3048 = vmatpush1.msra.mxu0 %v3047
    %3049 = vmatprep.subr.mxu0 0.0
    %v3050 = vand.u32 %v2737, 4294901760
    %3051 = vmatpush1.msra.mxu0 %v3050
    %3052 = vmatprep.subr.mxu0 0.0
    %3053 = vmatpush1.msra.mxu0 0.0
    %3054 = vmatprep.subr.mxu0 0.0
    %3055 = vmatpush1.msra.mxu0 0.0
    %3056 = vmatprep.subr.mxu0 0.0
    %3057 = vmatpush1.msra.mxu0 0.0
    %3058 = vmatprep.subr.mxu0 0.0
    %3059 = vmatpush1.msra.mxu0 0.0
    %3060 = vmatprep.subr.mxu0 0.0
    %3061 = vmatpush1.msra.mxu0 0.0
    %3062 = vmatprep.subr.mxu0 0.0
    %3063 = vmatpush1.msra.mxu0 0.0
    %3064 = vmatprep.subr.mxu0 0.0
    %3065 = vmatpush1.msra.mxu0 0.0
    %3066 = vmatprep.subr.mxu0 0.0
    %3067 = vmatpush1.msra.mxu0 0.0
    %3068 = vmatprep.subr.mxu0 0.0
    %3069 = vmatpush1.msra.mxu0 0.0
    %3070 = vmatprep.subr.mxu0 0.0
    %3071 = vmatpush1.msra.mxu0 0.0
    %3072 = vmatprep.subr.mxu0 0.0
    %3073 = vmatpush1.msra.mxu0 0.0
    %3074 = vmatprep.subr.mxu0 0.0
    %3075 = vmatpush1.msra.mxu0 0.0
    %3076 = vmatprep.subr.mxu0 0.0
    %3077 = vmatpush1.msra.mxu0 0.0
    %3078 = vmatprep.subr.mxu0 0.0
    %3079 = vmatpush1.msra.mxu0 0.0
    %3080 = vmatprep.subr.mxu0 0.0
    %3081 = vmatpush1.msra.mxu0 0.0
    %3082 = vmatprep.subr.mxu0 0.0
    %3083 = vmatpush1.msra.mxu0 0.0
    %3084 = vmatprep.subr.mxu0 0.0
    %3085 = vmatpush1.msra.mxu0 0.0
    %3086 = vmatprep.subr.mxu0 0.0
    %3087 = vmatpush1.msra.mxu0 0.0
    %3088 = vmatprep.subr.mxu0 0.0
    %3089 = vmatpush1.msra.mxu0 0.0
    %3090 = vmatprep.subr.mxu0 0.0
    %3091 = vmatpush1.msra.mxu0 0.0
    %3092 = vmatprep.subr.mxu0 0.0
    %3093 = vmatpush1.msra.mxu0 0.0
    %3094 = vmatprep.subr.mxu0 0.0
    %3095 = vmatpush1.msra.mxu0 0.0
    %3096 = vmatprep.subr.mxu0 0.0
    %3097 = vmatpush1.msra.mxu0 0.0
    %3098 = vmatprep.subr.mxu0 0.0
    %3099 = vmatpush1.msra.mxu0 0.0
    %3100 = vmatprep.mubr.f32.mxu0 0.0
    %v3101 = vand.u32 %v2744, 4294901760
    %v3102 = vsub.f32 %v2744, %v3101
    %v3103 = vand.u32 %v3102, 4294901760
    %3104 = vmatmul.mubr.f32.gmra.mrb[0].mxu0 %v3103
    %v3105 = vpop.f32.mrb[0].mxu0
    %v3106 = vadd.f32 %v3025, %v3105
    %v3107 = vpop.f32.mrb[0].mxu0
    %3108 = vdwg.mxu0
    %3109 = vmatprep.subr.mxu0 0.0
    %v3110 = vand.u32 %v2730, 4294901760
    %v3111 = vsub.f32 %v2730, %v3110
    %v3112 = vand.u32 %v3111, 4294901760
    %3113 = vmatpush1.msra.mxu0 %v3112
    %3114 = vmatprep.subr.mxu0 0.0
    %v3115 = vand.u32 %v2731, 4294901760
    %v3116 = vsub.f32 %v2731, %v3115
    %v3117 = vand.u32 %v3116, 4294901760
    %3118 = vmatpush1.msra.mxu0 %v3117
    %3119 = vmatprep.subr.mxu0 0.0
    %v3120 = vand.u32 %v2732, 4294901760
    %v3121 = vsub.f32 %v2732, %v3120
    %v3122 = vand.u32 %v3121, 4294901760
    %3123 = vmatpush1.msra.mxu0 %v3122
    %3124 = vmatprep.subr.mxu0 0.0
    %v3125 = vand.u32 %v2733, 4294901760
    %v3126 = vsub.f32 %v2733, %v3125
    %v3127 = vand.u32 %v3126, 4294901760
    %3128 = vmatpush1.msra.mxu0 %v3127
    %3129 = vmatprep.subr.mxu0 0.0
    %v3130 = vand.u32 %v2734, 4294901760
    %v3131 = vsub.f32 %v2734, %v3130
    %v3132 = vand.u32 %v3131, 4294901760
    %3133 = vmatpush1.msra.mxu0 %v3132
    %3134 = vmatprep.subr.mxu0 0.0
    %v3135 = vand.u32 %v2735, 4294901760
    %v3136 = vsub.f32 %v2735, %v3135
    %v3137 = vand.u32 %v3136, 4294901760
    %3138 = vmatpush1.msra.mxu0 %v3137
    %3139 = vmatprep.subr.mxu0 0.0
    %v3140 = vand.u32 %v2736, 4294901760
    %v3141 = vsub.f32 %v2736, %v3140
    %v3142 = vand.u32 %v3141, 4294901760
    %3143 = vmatpush1.msra.mxu0 %v3142
    %3144 = vmatprep.subr.mxu0 0.0
    %v3145 = vand.u32 %v2737, 4294901760
    %v3146 = vsub.f32 %v2737, %v3145
    %v3147 = vand.u32 %v3146, 4294901760
    %3148 = vmatpush1.msra.mxu0 %v3147
    %3149 = vmatprep.subr.mxu0 0.0
    %3150 = vmatpush1.msra.mxu0 0.0
    %3151 = vmatprep.subr.mxu0 0.0
    %3152 = vmatpush1.msra.mxu0 0.0
    %3153 = vmatprep.subr.mxu0 0.0
    %3154 = vmatpush1.msra.mxu0 0.0
    %3155 = vmatprep.subr.mxu0 0.0
    %3156 = vmatpush1.msra.mxu0 0.0
    %3157 = vmatprep.subr.mxu0 0.0
    %3158 = vmatpush1.msra.mxu0 0.0
    %3159 = vmatprep.subr.mxu0 0.0
    %3160 = vmatpush1.msra.mxu0 0.0
    %3161 = vmatprep.subr.mxu0 0.0
    %3162 = vmatpush1.msra.mxu0 0.0
    %3163 = vmatprep.subr.mxu0 0.0
    %3164 = vmatpush1.msra.mxu0 0.0
    %3165 = vmatprep.subr.mxu0 0.0
    %3166 = vmatpush1.msra.mxu0 0.0
    %3167 = vmatprep.subr.mxu0 0.0
    %3168 = vmatpush1.msra.mxu0 0.0
    %3169 = vmatprep.subr.mxu0 0.0
    %3170 = vmatpush1.msra.mxu0 0.0
    %3171 = vmatprep.subr.mxu0 0.0
    %3172 = vmatpush1.msra.mxu0 0.0
    %3173 = vmatprep.subr.mxu0 0.0
    %3174 = vmatpush1.msra.mxu0 0.0
    %3175 = vmatprep.subr.mxu0 0.0
    %3176 = vmatpush1.msra.mxu0 0.0
    %3177 = vmatprep.subr.mxu0 0.0
    %3178 = vmatpush1.msra.mxu0 0.0
    %3179 = vmatprep.subr.mxu0 0.0
    %3180 = vmatpush1.msra.mxu0 0.0
    %3181 = vmatprep.subr.mxu0 0.0
    %3182 = vmatpush1.msra.mxu0 0.0
    %3183 = vmatprep.subr.mxu0 0.0
    %3184 = vmatpush1.msra.mxu0 0.0
    %3185 = vmatprep.subr.mxu0 0.0
    %3186 = vmatpush1.msra.mxu0 0.0
    %3187 = vmatprep.subr.mxu0 0.0
    %3188 = vmatpush1.msra.mxu0 0.0
    %3189 = vmatprep.subr.mxu0 0.0
    %3190 = vmatpush1.msra.mxu0 0.0
    %3191 = vmatprep.subr.mxu0 0.0
    %3192 = vmatpush1.msra.mxu0 0.0
    %3193 = vmatprep.subr.mxu0 0.0
    %3194 = vmatpush1.msra.mxu0 0.0
    %3195 = vmatprep.subr.mxu0 0.0
    %3196 = vmatpush1.msra.mxu0 0.0
    %3197 = vmatprep.mubr.f32.mxu0 0.0
    %v3198 = vand.u32 %v2744, 4294901760
    %3199 = vmatmul.mubr.f32.gmra.mrb[0].mxu0 %v3198
    %v3200 = vpop.f32.mrb[0].mxu0
    %v3201 = vadd.f32 %v3106, %v3200
    %v3202 = vpop.f32.mrb[0].mxu0
    %3203 = vdwg.mxu0
    %3204 = vmatprep.subr.mxu0 0.0
    %v3205 = vand.u32 %v2730, 4294901760
    %3206 = vmatpush1.msra.mxu0 %v3205
    %3207 = vmatprep.subr.mxu0 0.0
    %v3208 = vand.u32 %v2731, 4294901760
    %3209 = vmatpush1.msra.mxu0 %v3208
    %3210 = vmatprep.subr.mxu0 0.0
    %v3211 = vand.u32 %v2732, 4294901760
    %3212 = vmatpush1.msra.mxu0 %v3211
    %3213 = vmatprep.subr.mxu0 0.0
    %v3214 = vand.u32 %v2733, 4294901760
    %3215 = vmatpush1.msra.mxu0 %v3214
    %3216 = vmatprep.subr.mxu0 0.0
    %v3217 = vand.u32 %v2734, 4294901760
    %3218 = vmatpush1.msra.mxu0 %v3217
    %3219 = vmatprep.subr.mxu0 0.0
    %v3220 = vand.u32 %v2735, 4294901760
    %3221 = vmatpush1.msra.mxu0 %v3220
    %3222 = vmatprep.subr.mxu0 0.0
    %v3223 = vand.u32 %v2736, 4294901760
    %3224 = vmatpush1.msra.mxu0 %v3223
    %3225 = vmatprep.subr.mxu0 0.0
    %v3226 = vand.u32 %v2737, 4294901760
    %3227 = vmatpush1.msra.mxu0 %v3226
    %3228 = vmatprep.subr.mxu0 0.0
    %3229 = vmatpush1.msra.mxu0 0.0
    %3230 = vmatprep.subr.mxu0 0.0
    %3231 = vmatpush1.msra.mxu0 0.0
    %3232 = vmatprep.subr.mxu0 0.0
    %3233 = vmatpush1.msra.mxu0 0.0
    %3234 = vmatprep.subr.mxu0 0.0
    %3235 = vmatpush1.msra.mxu0 0.0
    %3236 = vmatprep.subr.mxu0 0.0
    %3237 = vmatpush1.msra.mxu0 0.0
    %3238 = vmatprep.subr.mxu0 0.0
    %3239 = vmatpush1.msra.mxu0 0.0
    %3240 = vmatprep.subr.mxu0 0.0
    %3241 = vmatpush1.msra.mxu0 0.0
    %3242 = vmatprep.subr.mxu0 0.0
    %3243 = vmatpush1.msra.mxu0 0.0
    %3244 = vmatprep.subr.mxu0 0.0
    %3245 = vmatpush1.msra.mxu0 0.0
    %3246 = vmatprep.subr.mxu0 0.0
    %3247 = vmatpush1.msra.mxu0 0.0
    %3248 = vmatprep.subr.mxu0 0.0
    %3249 = vmatpush1.msra.mxu0 0.0
    %3250 = vmatprep.subr.mxu0 0.0
    %3251 = vmatpush1.msra.mxu0 0.0
    %3252 = vmatprep.subr.mxu0 0.0
    %3253 = vmatpush1.msra.mxu0 0.0
    %3254 = vmatprep.subr.mxu0 0.0
    %3255 = vmatpush1.msra.mxu0 0.0
    %3256 = vmatprep.subr.mxu0 0.0
    %3257 = vmatpush1.msra.mxu0 0.0
    %3258 = vmatprep.subr.mxu0 0.0
    %3259 = vmatpush1.msra.mxu0 0.0
    %3260 = vmatprep.subr.mxu0 0.0
    %3261 = vmatpush1.msra.mxu0 0.0
    %3262 = vmatprep.subr.mxu0 0.0
    %3263 = vmatpush1.msra.mxu0 0.0
    %3264 = vmatprep.subr.mxu0 0.0
    %3265 = vmatpush1.msra.mxu0 0.0
    %3266 = vmatprep.subr.mxu0 0.0
    %3267 = vmatpush1.msra.mxu0 0.0
    %3268 = vmatprep.subr.mxu0 0.0
    %3269 = vmatpush1.msra.mxu0 0.0
    %3270 = vmatprep.subr.mxu0 0.0
    %3271 = vmatpush1.msra.mxu0 0.0
    %3272 = vmatprep.subr.mxu0 0.0
    %3273 = vmatpush1.msra.mxu0 0.0
    %3274 = vmatprep.subr.mxu0 0.0
    %3275 = vmatpush1.msra.mxu0 0.0
    %3276 = vmatprep.mubr.f32.mxu0 0.0
    %v3277 = vand.u32 %v2744, 4294901760
    %3278 = vmatmul.mubr.f32.gmra.mrb[0].mxu0 %v3277
    %v3279 = vpop.f32.mrb[0].mxu0
    %v3280 = vadd.f32 %v3201, %v3279
    %v3281 = vpop.f32.mrb[0].mxu0
    %3282 = vdwg.mxu0
    %v3283 = vld [vmem:[#allocation4 + $0x110] sm:$0xff]
    %v3284 = vld [vmem:[#allocation4 + $0x118] sm:$0xff]
    %v3285 = vld [vmem:[#allocation4 + $0x120] sm:$0xff]
    %v3286 = vld [vmem:[#allocation4 + $0x128] sm:$0xff]
    %v3287 = vld [vmem:[#allocation4 + $0x130] sm:$0xff]
    %v3288 = vld [vmem:[#allocation4 + $0x138] sm:$0xff]
    %v3289 = vld [vmem:[#allocation4 + $0x140] sm:$0x1]
    %v3290 = vlaneseq
    %v3291 = vshrl.u32 %v3290, 7
    %v3292 = vsub.s32 0, %v3291
    %v3293 = vrot.slane %v3289, %v3292
    %vm3294 = vcmask 392192
    %v3296 = vsel %vm3294, %v3280, 0
    %3298 = vmatprep.subr.mxu0 0.0
    %v3299 = vand.u32 %v3283, 4294901760
    %3300 = vmatpush1.msra.mxu0 %v3299
    %3301 = vmatprep.subr.mxu0 0.0
    %v3302 = vand.u32 %v3284, 4294901760
    %3303 = vmatpush1.msra.mxu0 %v3302
    %3304 = vmatprep.subr.mxu0 0.0
    %v3305 = vand.u32 %v3285, 4294901760
    %3306 = vmatpush1.msra.mxu0 %v3305
    %3307 = vmatprep.subr.mxu0 0.0
    %v3308 = vand.u32 %v3286, 4294901760
    %3309 = vmatpush1.msra.mxu0 %v3308
    %3310 = vmatprep.subr.mxu0 0.0
    %v3311 = vand.u32 %v3287, 4294901760
    %3312 = vmatpush1.msra.mxu0 %v3311
    %3313 = vmatprep.subr.mxu0 0.0
    %v3314 = vand.u32 %v3288, 4294901760
    %3315 = vmatpush1.msra.mxu0 %v3314
    %3316 = vmatprep.subr.mxu0 0.0
    %3317 = vmatpush1.msra.mxu0 0.0
    %3318 = vmatprep.subr.mxu0 0.0
    %3319 = vmatpush1.msra.mxu0 0.0
    %3320 = vmatprep.subr.mxu0 0.0
    %3321 = vmatpush1.msra.mxu0 0.0
    %3322 = vmatprep.subr.mxu0 0.0
    %3323 = vmatpush1.msra.mxu0 0.0
    %3324 = vmatprep.subr.mxu0 0.0
    %3325 = vmatpush1.msra.mxu0 0.0
    %3326 = vmatprep.subr.mxu0 0.0
    %3327 = vmatpush1.msra.mxu0 0.0
    %3328 = vmatprep.subr.mxu0 0.0
    %3329 = vmatpush1.msra.mxu0 0.0
    %3330 = vmatprep.subr.mxu0 0.0
    %3331 = vmatpush1.msra.mxu0 0.0
    %3332 = vmatprep.subr.mxu0 0.0
    %3333 = vmatpush1.msra.mxu0 0.0
    %3334 = vmatprep.subr.mxu0 0.0
    %3335 = vmatpush1.msra.mxu0 0.0
    %3336 = vmatprep.subr.mxu0 0.0
    %3337 = vmatpush1.msra.mxu0 0.0
    %3338 = vmatprep.subr.mxu0 0.0
    %3339 = vmatpush1.msra.mxu0 0.0
    %3340 = vmatprep.subr.mxu0 0.0
    %3341 = vmatpush1.msra.mxu0 0.0
    %3342 = vmatprep.subr.mxu0 0.0
    %3343 = vmatpush1.msra.mxu0 0.0
    %3344 = vmatprep.subr.mxu0 0.0
    %3345 = vmatpush1.msra.mxu0 0.0
    %3346 = vmatprep.subr.mxu0 0.0
    %3347 = vmatpush1.msra.mxu0 0.0
    %3348 = vmatprep.subr.mxu0 0.0
    %3349 = vmatpush1.msra.mxu0 0.0
    %3350 = vmatprep.subr.mxu0 0.0
    %3351 = vmatpush1.msra.mxu0 0.0
    %3352 = vmatprep.subr.mxu0 0.0
    %3353 = vmatpush1.msra.mxu0 0.0
    %3354 = vmatprep.subr.mxu0 0.0
    %3355 = vmatpush1.msra.mxu0 0.0
    %3356 = vmatprep.subr.mxu0 0.0
    %3357 = vmatpush1.msra.mxu0 0.0
    %3358 = vmatprep.subr.mxu0 0.0
    %3359 = vmatpush1.msra.mxu0 0.0
    %3360 = vmatprep.subr.mxu0 0.0
    %3361 = vmatpush1.msra.mxu0 0.0
    %3362 = vmatprep.subr.mxu0 0.0
    %3363 = vmatpush1.msra.mxu0 0.0
    %3364 = vmatprep.subr.mxu0 0.0
    %3365 = vmatpush1.msra.mxu0 0.0
    %3366 = vmatprep.subr.mxu0 0.0
    %3367 = vmatpush1.msra.mxu0 0.0
    %3368 = vmatprep.mubr.f32.mxu0 0.0
    %v3369 = vand.u32 %v3296, 4294901760
    %v3370 = vsub.f32 %v3296, %v3369
    %v3371 = vand.u32 %v3370, 4294901760
    %v3372 = vsub.f32 %v3370, %v3371
    %v3373 = vand.u32 %v3372, 4294901760
    %3374 = vmatmul.mubr.f32.gmra.mrb[0].mxu0 %v3373
    %v3375 = vpop.f32.mrb[0].mxu0
    %v3376 = vadd.f32 %v3293, %v3375
    %v3377 = vpop.f32.mrb[0].mxu0
    %3378 = vdwg.mxu0
    %3379 = vmatprep.subr.mxu0 0.0
    %v3380 = vand.u32 %v3283, 4294901760
    %v3381 = vsub.f32 %v3283, %v3380
    %v3382 = vand.u32 %v3381, 4294901760
    %v3383 = vsub.f32 %v3381, %v3382
    %v3384 = vand.u32 %v3383, 4294901760
    %3385 = vmatpush1.msra.mxu0 %v3384
    %3386 = vmatprep.subr.mxu0 0.0
    %v3387 = vand.u32 %v3284, 4294901760
    %v3388 = vsub.f32 %v3284, %v3387
    %v3389 = vand.u32 %v3388, 4294901760
    %v3390 = vsub.f32 %v3388, %v3389
    %v3391 = vand.u32 %v3390, 4294901760
    %3392 = vmatpush1.msra.mxu0 %v3391
    %3393 = vmatprep.subr.mxu0 0.0
    %v3394 = vand.u32 %v3285, 4294901760
    %v3395 = vsub.f32 %v3285, %v3394
    %v3396 = vand.u32 %v3395, 4294901760
    %v3397 = vsub.f32 %v3395, %v3396
    %v3398 = vand.u32 %v3397, 4294901760
    %3399 = vmatpush1.msra.mxu0 %v3398
    %3400 = vmatprep.subr.mxu0 0.0
    %v3401 = vand.u32 %v3286, 4294901760
    %v3402 = vsub.f32 %v3286, %v3401
    %v3403 = vand.u32 %v3402, 4294901760
    %v3404 = vsub.f32 %v3402, %v3403
    %v3405 = vand.u32 %v3404, 4294901760
    %3406 = vmatpush1.msra.mxu0 %v3405
    %3407 = vmatprep.subr.mxu0 0.0
    %v3408 = vand.u32 %v3287, 4294901760
    %v3409 = vsub.f32 %v3287, %v3408
    %v3410 = vand.u32 %v3409, 4294901760
    %v3411 = vsub.f32 %v3409, %v3410
    %v3412 = vand.u32 %v3411, 4294901760
    %3413 = vmatpush1.msra.mxu0 %v3412
    %3414 = vmatprep.subr.mxu0 0.0
    %v3415 = vand.u32 %v3288, 4294901760
    %v3416 = vsub.f32 %v3288, %v3415
    %v3417 = vand.u32 %v3416, 4294901760
    %v3418 = vsub.f32 %v3416, %v3417
    %v3419 = vand.u32 %v3418, 4294901760
    %3420 = vmatpush1.msra.mxu0 %v3419
    %3421 = vmatprep.subr.mxu0 0.0
    %3422 = vmatpush1.msra.mxu0 0.0
    %3423 = vmatprep.subr.mxu0 0.0
    %3424 = vmatpush1.msra.mxu0 0.0
    %3425 = vmatprep.subr.mxu0 0.0
    %3426 = vmatpush1.msra.mxu0 0.0
    %3427 = vmatprep.subr.mxu0 0.0
    %3428 = vmatpush1.msra.mxu0 0.0
    %3429 = vmatprep.subr.mxu0 0.0
    %3430 = vmatpush1.msra.mxu0 0.0
    %3431 = vmatprep.subr.mxu0 0.0
    %3432 = vmatpush1.msra.mxu0 0.0
    %3433 = vmatprep.subr.mxu0 0.0
    %3434 = vmatpush1.msra.mxu0 0.0
    %3435 = vmatprep.subr.mxu0 0.0
    %3436 = vmatpush1.msra.mxu0 0.0
    %3437 = vmatprep.subr.mxu0 0.0
    %3438 = vmatpush1.msra.mxu0 0.0
    %3439 = vmatprep.subr.mxu0 0.0
    %3440 = vmatpush1.msra.mxu0 0.0
    %3441 = vmatprep.subr.mxu0 0.0
    %3442 = vmatpush1.msra.mxu0 0.0
    %3443 = vmatprep.subr.mxu0 0.0
    %3444 = vmatpush1.msra.mxu0 0.0
    %3445 = vmatprep.subr.mxu0 0.0
    %3446 = vmatpush1.msra.mxu0 0.0
    %3447 = vmatprep.subr.mxu0 0.0
    %3448 = vmatpush1.msra.mxu0 0.0
    %3449 = vmatprep.subr.mxu0 0.0
    %3450 = vmatpush1.msra.mxu0 0.0
    %3451 = vmatprep.subr.mxu0 0.0
    %3452 = vmatpush1.msra.mxu0 0.0
    %3453 = vmatprep.subr.mxu0 0.0
    %3454 = vmatpush1.msra.mxu0 0.0
    %3455 = vmatprep.subr.mxu0 0.0
    %3456 = vmatpush1.msra.mxu0 0.0
    %3457 = vmatprep.subr.mxu0 0.0
    %3458 = vmatpush1.msra.mxu0 0.0
    %3459 = vmatprep.subr.mxu0 0.0
    %3460 = vmatpush1.msra.mxu0 0.0
    %3461 = vmatprep.subr.mxu0 0.0
    %3462 = vmatpush1.msra.mxu0 0.0
    %3463 = vmatprep.subr.mxu0 0.0
    %3464 = vmatpush1.msra.mxu0 0.0
    %3465 = vmatprep.subr.mxu0 0.0
    %3466 = vmatpush1.msra.mxu0 0.0
    %3467 = vmatprep.subr.mxu0 0.0
    %3468 = vmatpush1.msra.mxu0 0.0
    %3469 = vmatprep.subr.mxu0 0.0
    %3470 = vmatpush1.msra.mxu0 0.0
    %3471 = vmatprep.subr.mxu0 0.0
    %3472 = vmatpush1.msra.mxu0 0.0
    %3473 = vmatprep.mubr.f32.mxu0 0.0
    %v3474 = vand.u32 %v3296, 4294901760
    %3475 = vmatmul.mubr.f32.gmra.mrb[0].mxu0 %v3474
    %v3476 = vpop.f32.mrb[0].mxu0
    %v3477 = vadd.f32 %v3376, %v3476
    %v3478 = vpop.f32.mrb[0].mxu0
    %3479 = vdwg.mxu0
    %3480 = vmatprep.subr.mxu0 0.0
    %v3481 = vand.u32 %v3283, 4294901760
    %v3482 = vsub.f32 %v3283, %v3481
    %3483 = vmatpush1.msra.mxu0 %v3482
    %3484 = vmatprep.subr.mxu0 0.0
    %v3485 = vand.u32 %v3284, 4294901760
    %v3486 = vsub.f32 %v3284, %v3485
    %3487 = vmatpush1.msra.mxu0 %v3486
    %3488 = vmatprep.subr.mxu0 0.0
    %v3489 = vand.u32 %v3285, 4294901760
    %v3490 = vsub.f32 %v3285, %v3489
    %3491 = vmatpush1.msra.mxu0 %v3490
    %3492 = vmatprep.subr.mxu0 0.0
    %v3493 = vand.u32 %v3286, 4294901760
    %v3494 = vsub.f32 %v3286, %v3493
    %3495 = vmatpush1.msra.mxu0 %v3494
    %3496 = vmatprep.subr.mxu0 0.0
    %v3497 = vand.u32 %v3287, 4294901760
    %v3498 = vsub.f32 %v3287, %v3497
    %3499 = vmatpush1.msra.mxu0 %v3498
    %3500 = vmatprep.subr.mxu0 0.0
    %v3501 = vand.u32 %v3288, 4294901760
    %v3502 = vsub.f32 %v3288, %v3501
    %3503 = vmatpush1.msra.mxu0 %v3502
    %3504 = vmatprep.subr.mxu0 0.0
    %3505 = vmatpush1.msra.mxu0 0.0
    %3506 = vmatprep.subr.mxu0 0.0
    %3507 = vmatpush1.msra.mxu0 0.0
    %3508 = vmatprep.subr.mxu0 0.0
    %3509 = vmatpush1.msra.mxu0 0.0
    %3510 = vmatprep.subr.mxu0 0.0
    %3511 = vmatpush1.msra.mxu0 0.0
    %3512 = vmatprep.subr.mxu0 0.0
    %3513 = vmatpush1.msra.mxu0 0.0
    %3514 = vmatprep.subr.mxu0 0.0
    %3515 = vmatpush1.msra.mxu0 0.0
    %3516 = vmatprep.subr.mxu0 0.0
    %3517 = vmatpush1.msra.mxu0 0.0
    %3518 = vmatprep.subr.mxu0 0.0
    %3519 = vmatpush1.msra.mxu0 0.0
    %3520 = vmatprep.subr.mxu0 0.0
    %3521 = vmatpush1.msra.mxu0 0.0
    %3522 = vmatprep.subr.mxu0 0.0
    %3523 = vmatpush1.msra.mxu0 0.0
    %3524 = vmatprep.subr.mxu0 0.0
    %3525 = vmatpush1.msra.mxu0 0.0
    %3526 = vmatprep.subr.mxu0 0.0
    %3527 = vmatpush1.msra.mxu0 0.0
    %3528 = vmatprep.subr.mxu0 0.0
    %3529 = vmatpush1.msra.mxu0 0.0
    %3530 = vmatprep.subr.mxu0 0.0
    %3531 = vmatpush1.msra.mxu0 0.0
    %3532 = vmatprep.subr.mxu0 0.0
    %3533 = vmatpush1.msra.mxu0 0.0
    %3534 = vmatprep.subr.mxu0 0.0
    %3535 = vmatpush1.msra.mxu0 0.0
    %3536 = vmatprep.subr.mxu0 0.0
    %3537 = vmatpush1.msra.mxu0 0.0
    %3538 = vmatprep.subr.mxu0 0.0
    %3539 = vmatpush1.msra.mxu0 0.0
    %3540 = vmatprep.subr.mxu0 0.0
    %3541 = vmatpush1.msra.mxu0 0.0
    %3542 = vmatprep.subr.mxu0 0.0
    %3543 = vmatpush1.msra.mxu0 0.0
    %3544 = vmatprep.subr.mxu0 0.0
    %3545 = vmatpush1.msra.mxu0 0.0
    %3546 = vmatprep.subr.mxu0 0.0
    %3547 = vmatpush1.msra.mxu0 0.0
    %3548 = vmatprep.subr.mxu0 0.0
    %3549 = vmatpush1.msra.mxu0 0.0
    %3550 = vmatprep.subr.mxu0 0.0
    %3551 = vmatpush1.msra.mxu0 0.0
    %3552 = vmatprep.subr.mxu0 0.0
    %3553 = vmatpush1.msra.mxu0 0.0
    %3554 = vmatprep.subr.mxu0 0.0
    %3555 = vmatpush1.msra.mxu0 0.0
    %3556 = vmatprep.mubr.f32.mxu0 0.0
    %v3557 = vand.u32 %v3296, 4294901760
    %v3558 = vsub.f32 %v3296, %v3557
    %3559 = vmatmul.mubr.f32.gmra.mrb[0].mxu0 %v3558
    %v3560 = vpop.f32.mrb[0].mxu0
    %v3561 = vadd.f32 %v3477, %v3560
    %v3562 = vpop.f32.mrb[0].mxu0
    %3563 = vdwg.mxu0
    %3564 = vmatprep.subr.mxu0 0.0
    %v3565 = vand.u32 %v3283, 4294901760
    %3566 = vmatpush1.msra.mxu0 %v3565
    %3567 = vmatprep.subr.mxu0 0.0
    %v3568 = vand.u32 %v3284, 4294901760
    %3569 = vmatpush1.msra.mxu0 %v3568
    %3570 = vmatprep.subr.mxu0 0.0
    %v3571 = vand.u32 %v3285, 4294901760
    %3572 = vmatpush1.msra.mxu0 %v3571
    %3573 = vmatprep.subr.mxu0 0.0
    %v3574 = vand.u32 %v3286, 4294901760
    %3575 = vmatpush1.msra.mxu0 %v3574
    %3576 = vmatprep.subr.mxu0 0.0
    %v3577 = vand.u32 %v3287, 4294901760
    %3578 = vmatpush1.msra.mxu0 %v3577
    %3579 = vmatprep.subr.mxu0 0.0
    %v3580 = vand.u32 %v3288, 4294901760
    %3581 = vmatpush1.msra.mxu0 %v3580
    %3582 = vmatprep.subr.mxu0 0.0
    %3583 = vmatpush1.msra.mxu0 0.0
    %3584 = vmatprep.subr.mxu0 0.0
    %3585 = vmatpush1.msra.mxu0 0.0
    %3586 = vmatprep.subr.mxu0 0.0
    %3587 = vmatpush1.msra.mxu0 0.0
    %3588 = vmatprep.subr.mxu0 0.0
    %3589 = vmatpush1.msra.mxu0 0.0
    %3590 = vmatprep.subr.mxu0 0.0
    %3591 = vmatpush1.msra.mxu0 0.0
    %3592 = vmatprep.subr.mxu0 0.0
    %3593 = vmatpush1.msra.mxu0 0.0
    %3594 = vmatprep.subr.mxu0 0.0
    %3595 = vmatpush1.msra.mxu0 0.0
    %3596 = vmatprep.subr.mxu0 0.0
    %3597 = vmatpush1.msra.mxu0 0.0
    %3598 = vmatprep.subr.mxu0 0.0
    %3599 = vmatpush1.msra.mxu0 0.0
    %3600 = vmatprep.subr.mxu0 0.0
    %3601 = vmatpush1.msra.mxu0 0.0
    %3602 = vmatprep.subr.mxu0 0.0
    %3603 = vmatpush1.msra.mxu0 0.0
    %3604 = vmatprep.subr.mxu0 0.0
    %3605 = vmatpush1.msra.mxu0 0.0
    %3606 = vmatprep.subr.mxu0 0.0
    %3607 = vmatpush1.msra.mxu0 0.0
    %3608 = vmatprep.subr.mxu0 0.0
    %3609 = vmatpush1.msra.mxu0 0.0
    %3610 = vmatprep.subr.mxu0 0.0
    %3611 = vmatpush1.msra.mxu0 0.0
    %3612 = vmatprep.subr.mxu0 0.0
    %3613 = vmatpush1.msra.mxu0 0.0
    %3614 = vmatprep.subr.mxu0 0.0
    %3615 = vmatpush1.msra.mxu0 0.0
    %3616 = vmatprep.subr.mxu0 0.0
    %3617 = vmatpush1.msra.mxu0 0.0
    %3618 = vmatprep.subr.mxu0 0.0
    %3619 = vmatpush1.msra.mxu0 0.0
    %3620 = vmatprep.subr.mxu0 0.0
    %3621 = vmatpush1.msra.mxu0 0.0
    %3622 = vmatprep.subr.mxu0 0.0
    %3623 = vmatpush1.msra.mxu0 0.0
    %3624 = vmatprep.subr.mxu0 0.0
    %3625 = vmatpush1.msra.mxu0 0.0
    %3626 = vmatprep.subr.mxu0 0.0
    %3627 = vmatpush1.msra.mxu0 0.0
    %3628 = vmatprep.subr.mxu0 0.0
    %3629 = vmatpush1.msra.mxu0 0.0
    %3630 = vmatprep.subr.mxu0 0.0
    %3631 = vmatpush1.msra.mxu0 0.0
    %3632 = vmatprep.subr.mxu0 0.0
    %3633 = vmatpush1.msra.mxu0 0.0
    %3634 = vmatprep.mubr.f32.mxu0 0.0
    %v3635 = vand.u32 %v3296, 4294901760
    %v3636 = vsub.f32 %v3296, %v3635
    %v3637 = vand.u32 %v3636, 4294901760
    %3638 = vmatmul.mubr.f32.gmra.mrb[0].mxu0 %v3637
    %v3639 = vpop.f32.mrb[0].mxu0
    %v3640 = vadd.f32 %v3561, %v3639
    %v3641 = vpop.f32.mrb[0].mxu0
    %3642 = vdwg.mxu0
    %3643 = vmatprep.subr.mxu0 0.0
    %v3644 = vand.u32 %v3283, 4294901760
    %v3645 = vsub.f32 %v3283, %v3644
    %v3646 = vand.u32 %v3645, 4294901760
    %3647 = vmatpush1.msra.mxu0 %v3646
    %3648 = vmatprep.subr.mxu0 0.0
    %v3649 = vand.u32 %v3284, 4294901760
    %v3650 = vsub.f32 %v3284, %v3649
    %v3651 = vand.u32 %v3650, 4294901760
    %3652 = vmatpush1.msra.mxu0 %v3651
    %3653 = vmatprep.subr.mxu0 0.0
    %v3654 = vand.u32 %v3285, 4294901760
    %v3655 = vsub.f32 %v3285, %v3654
    %v3656 = vand.u32 %v3655, 4294901760
    %3657 = vmatpush1.msra.mxu0 %v3656
    %3658 = vmatprep.subr.mxu0 0.0
    %v3659 = vand.u32 %v3286, 4294901760
    %v3660 = vsub.f32 %v3286, %v3659
    %v3661 = vand.u32 %v3660, 4294901760
    %3662 = vmatpush1.msra.mxu0 %v3661
    %3663 = vmatprep.subr.mxu0 0.0
    %v3664 = vand.u32 %v3287, 4294901760
    %v3665 = vsub.f32 %v3287, %v3664
    %v3666 = vand.u32 %v3665, 4294901760
    %3667 = vmatpush1.msra.mxu0 %v3666
    %3668 = vmatprep.subr.mxu0 0.0
    %v3669 = vand.u32 %v3288, 4294901760
    %v3670 = vsub.f32 %v3288, %v3669
    %v3671 = vand.u32 %v3670, 4294901760
    %3672 = vmatpush1.msra.mxu0 %v3671
    %3673 = vmatprep.subr.mxu0 0.0
    %3674 = vmatpush1.msra.mxu0 0.0
    %3675 = vmatprep.subr.mxu0 0.0
    %3676 = vmatpush1.msra.mxu0 0.0
    %3677 = vmatprep.subr.mxu0 0.0
    %3678 = vmatpush1.msra.mxu0 0.0
    %3679 = vmatprep.subr.mxu0 0.0
    %3680 = vmatpush1.msra.mxu0 0.0
    %3681 = vmatprep.subr.mxu0 0.0
    %3682 = vmatpush1.msra.mxu0 0.0
    %3683 = vmatprep.subr.mxu0 0.0
    %3684 = vmatpush1.msra.mxu0 0.0
    %3685 = vmatprep.subr.mxu0 0.0
    %3686 = vmatpush1.msra.mxu0 0.0
    %3687 = vmatprep.subr.mxu0 0.0
    %3688 = vmatpush1.msra.mxu0 0.0
    %3689 = vmatprep.subr.mxu0 0.0
    %3690 = vmatpush1.msra.mxu0 0.0
    %3691 = vmatprep.subr.mxu0 0.0
    %3692 = vmatpush1.msra.mxu0 0.0
    %3693 = vmatprep.subr.mxu0 0.0
    %3694 = vmatpush1.msra.mxu0 0.0
    %3695 = vmatprep.subr.mxu0 0.0
    %3696 = vmatpush1.msra.mxu0 0.0
    %3697 = vmatprep.subr.mxu0 0.0
    %3698 = vmatpush1.msra.mxu0 0.0
    %3699 = vmatprep.subr.mxu0 0.0
    %3700 = vmatpush1.msra.mxu0 0.0
    %3701 = vmatprep.subr.mxu0 0.0
    %3702 = vmatpush1.msra.mxu0 0.0
    %3703 = vmatprep.subr.mxu0 0.0
    %3704 = vmatpush1.msra.mxu0 0.0
    %3705 = vmatprep.subr.mxu0 0.0
    %3706 = vmatpush1.msra.mxu0 0.0
    %3707 = vmatprep.subr.mxu0 0.0
    %3708 = vmatpush1.msra.mxu0 0.0
    %3709 = vmatprep.subr.mxu0 0.0
    %3710 = vmatpush1.msra.mxu0 0.0
    %3711 = vmatprep.subr.mxu0 0.0
    %3712 = vmatpush1.msra.mxu0 0.0
    %3713 = vmatprep.subr.mxu0 0.0
    %3714 = vmatpush1.msra.mxu0 0.0
    %3715 = vmatprep.subr.mxu0 0.0
    %3716 = vmatpush1.msra.mxu0 0.0
    %3717 = vmatprep.subr.mxu0 0.0
    %3718 = vmatpush1.msra.mxu0 0.0
    %3719 = vmatprep.subr.mxu0 0.0
    %3720 = vmatpush1.msra.mxu0 0.0
    %3721 = vmatprep.subr.mxu0 0.0
    %3722 = vmatpush1.msra.mxu0 0.0
    %3723 = vmatprep.subr.mxu0 0.0
    %3724 = vmatpush1.msra.mxu0 0.0
    %3725 = vmatprep.mubr.f32.mxu0 0.0
    %v3726 = vand.u32 %v3296, 4294901760
    %3727 = vmatmul.mubr.f32.gmra.mrb[0].mxu0 %v3726
    %v3728 = vpop.f32.mrb[0].mxu0
    %v3729 = vadd.f32 %v3640, %v3728
    %v3730 = vpop.f32.mrb[0].mxu0
    %3731 = vdwg.mxu0
    %3732 = vmatprep.subr.mxu0 0.0
    %v3733 = vand.u32 %v3283, 4294901760
    %3734 = vmatpush1.msra.mxu0 %v3733
    %3735 = vmatprep.subr.mxu0 0.0
    %v3736 = vand.u32 %v3284, 4294901760
    %3737 = vmatpush1.msra.mxu0 %v3736
    %3738 = vmatprep.subr.mxu0 0.0
    %v3739 = vand.u32 %v3285, 4294901760
    %3740 = vmatpush1.msra.mxu0 %v3739
    %3741 = vmatprep.subr.mxu0 0.0
    %v3742 = vand.u32 %v3286, 4294901760
    %3743 = vmatpush1.msra.mxu0 %v3742
    %3744 = vmatprep.subr.mxu0 0.0
    %v3745 = vand.u32 %v3287, 4294901760
    %3746 = vmatpush1.msra.mxu0 %v3745
    %3747 = vmatprep.subr.mxu0 0.0
    %v3748 = vand.u32 %v3288, 4294901760
    %3749 = vmatpush1.msra.mxu0 %v3748
    %3750 = vmatprep.subr.mxu0 0.0
    %3751 = vmatpush1.msra.mxu0 0.0
    %3752 = vmatprep.subr.mxu0 0.0
    %3753 = vmatpush1.msra.mxu0 0.0
    %3754 = vmatprep.subr.mxu0 0.0
    %3755 = vmatpush1.msra.mxu0 0.0
    %3756 = vmatprep.subr.mxu0 0.0
    %3757 = vmatpush1.msra.mxu0 0.0
    %3758 = vmatprep.subr.mxu0 0.0
    %3759 = vmatpush1.msra.mxu0 0.0
    %3760 = vmatprep.subr.mxu0 0.0
    %3761 = vmatpush1.msra.mxu0 0.0
    %3762 = vmatprep.subr.mxu0 0.0
    %3763 = vmatpush1.msra.mxu0 0.0
    %3764 = vmatprep.subr.mxu0 0.0
    %3765 = vmatpush1.msra.mxu0 0.0
    %3766 = vmatprep.subr.mxu0 0.0
    %3767 = vmatpush1.msra.mxu0 0.0
    %3768 = vmatprep.subr.mxu0 0.0
    %3769 = vmatpush1.msra.mxu0 0.0
    %3770 = vmatprep.subr.mxu0 0.0
    %3771 = vmatpush1.msra.mxu0 0.0
    %3772 = vmatprep.subr.mxu0 0.0
    %3773 = vmatpush1.msra.mxu0 0.0
    %3774 = vmatprep.subr.mxu0 0.0
    %3775 = vmatpush1.msra.mxu0 0.0
    %3776 = vmatprep.subr.mxu0 0.0
    %3777 = vmatpush1.msra.mxu0 0.0
    %3778 = vmatprep.subr.mxu0 0.0
    %3779 = vmatpush1.msra.mxu0 0.0
    %3780 = vmatprep.subr.mxu0 0.0
    %3781 = vmatpush1.msra.mxu0 0.0
    %3782 = vmatprep.subr.mxu0 0.0
    %3783 = vmatpush1.msra.mxu0 0.0
    %3784 = vmatprep.subr.mxu0 0.0
    %3785 = vmatpush1.msra.mxu0 0.0
    %3786 = vmatprep.subr.mxu0 0.0
    %3787 = vmatpush1.msra.mxu0 0.0
    %3788 = vmatprep.subr.mxu0 0.0
    %3789 = vmatpush1.msra.mxu0 0.0
    %3790 = vmatprep.subr.mxu0 0.0
    %3791 = vmatpush1.msra.mxu0 0.0
    %3792 = vmatprep.subr.mxu0 0.0
    %3793 = vmatpush1.msra.mxu0 0.0
    %3794 = vmatprep.subr.mxu0 0.0
    %3795 = vmatpush1.msra.mxu0 0.0
    %3796 = vmatprep.subr.mxu0 0.0
    %3797 = vmatpush1.msra.mxu0 0.0
    %3798 = vmatprep.subr.mxu0 0.0
    %3799 = vmatpush1.msra.mxu0 0.0
    %3800 = vmatprep.subr.mxu0 0.0
    %3801 = vmatpush1.msra.mxu0 0.0
    %3802 = vmatprep.mubr.f32.mxu0 0.0
    %v3803 = vand.u32 %v3296, 4294901760
    %3804 = vmatmul.mubr.f32.gmra.mrb[0].mxu0 %v3803
    %v3805 = vpop.f32.mrb[0].mxu0
    %v3806 = vadd.f32 %v3729, %v3805
    %v3807 = vpop.f32.mrb[0].mxu0
    %3808 = vdwg.mxu0
    %v3809 = vld [vmem:[#allocation4 + $0x150] sm:$0xff]
    %v3810 = vld [vmem:[#allocation4 + $0x158] sm:$0xff]
    %v3811 = vld [vmem:[#allocation4 + $0x160] sm:$0xff]
    %v3812 = vld [vmem:[#allocation4 + $0x168] sm:$0xff]
    %v3813 = vld [vmem:[#allocation4 + $0x170] sm:$0xff]
    %v3814 = vld [vmem:[#allocation4 + $0x178] sm:$0xff]
    %v3815 = vld [vmem:[#allocation4 + $0x180] sm:$0xff]
    %v3816 = vld [vmem:[#allocation4 + $0x188] sm:$0xff]
    %v3817 = vld [vmem:[#allocation4 + $0x190] sm:$0x1]
    %v3818 = vld [vmem:[#allocation4 + $0x198] sm:$0xff]
    %v3819 = vld [vmem:[#allocation4 + $0x1a0] sm:$0xff]
    %v3820 = vld [vmem:[#allocation4 + $0x1a8] sm:$0xff]
    %v3821 = vld [vmem:[#allocation4 + $0x1b0] sm:$0xff]
    %v3822 = vld [vmem:[#allocation4 + $0x1b8] sm:$0xff]
    %v3823 = vld [vmem:[#allocation4 + $0x1c0] sm:$0xff]
    %v3824 = vld [vmem:[#allocation4 + $0x1c8] sm:$0xff]
    %v3825 = vld [vmem:[#allocation4 + $0x1d0] sm:$0xff]
    %v3826 = vld [vmem:[#allocation4 + $0x1d8] sm:$0x1]
    %v3827 = vlaneseq
    %v3828 = vshrl.u32 %v3827, 7
    %v3829 = vsub.s32 0, %v3828
    %v3830 = vrot.slane %v3817, %v3829
    %v3832 = vsel %vm563, %v3806, 0
    %3834 = vmatprep.subr.mxu0 0.0
    %v3835 = vand.u32 %v3809, 4294901760
    %3836 = vmatpush1.msra.mxu0 %v3835
    %3837 = vmatprep.subr.mxu0 0.0
    %v3838 = vand.u32 %v3810, 4294901760
    %3839 = vmatpush1.msra.mxu0 %v3838
    %3840 = vmatprep.subr.mxu0 0.0
    %v3841 = vand.u32 %v3811, 4294901760
    %3842 = vmatpush1.msra.mxu0 %v3841
    %3843 = vmatprep.subr.mxu0 0.0
    %v3844 = vand.u32 %v3812, 4294901760
    %3845 = vmatpush1.msra.mxu0 %v3844
    %3846 = vmatprep.subr.mxu0 0.0
    %v3847 = vand.u32 %v3813, 4294901760
    %3848 = vmatpush1.msra.mxu0 %v3847
    %3849 = vmatprep.subr.mxu0 0.0
    %v3850 = vand.u32 %v3814, 4294901760
    %3851 = vmatpush1.msra.mxu0 %v3850
    %3852 = vmatprep.subr.mxu0 0.0
    %v3853 = vand.u32 %v3815, 4294901760
    %3854 = vmatpush1.msra.mxu0 %v3853
    %3855 = vmatprep.subr.mxu0 0.0
    %v3856 = vand.u32 %v3816, 4294901760
    %3857 = vmatpush1.msra.mxu0 %v3856
    %3858 = vmatprep.subr.mxu0 0.0
    %3859 = vmatpush1.msra.mxu0 0.0
    %3860 = vmatprep.subr.mxu0 0.0
    %3861 = vmatpush1.msra.mxu0 0.0
    %3862 = vmatprep.subr.mxu0 0.0
    %3863 = vmatpush1.msra.mxu0 0.0
    %3864 = vmatprep.subr.mxu0 0.0
    %3865 = vmatpush1.msra.mxu0 0.0
    %3866 = vmatprep.subr.mxu0 0.0
    %3867 = vmatpush1.msra.mxu0 0.0
    %3868 = vmatprep.subr.mxu0 0.0
    %3869 = vmatpush1.msra.mxu0 0.0
    %3870 = vmatprep.subr.mxu0 0.0
    %3871 = vmatpush1.msra.mxu0 0.0
    %3872 = vmatprep.subr.mxu0 0.0
    %3873 = vmatpush1.msra.mxu0 0.0
    %3874 = vmatprep.subr.mxu0 0.0
    %3875 = vmatpush1.msra.mxu0 0.0
    %3876 = vmatprep.subr.mxu0 0.0
    %3877 = vmatpush1.msra.mxu0 0.0
    %3878 = vmatprep.subr.mxu0 0.0
    %3879 = vmatpush1.msra.mxu0 0.0
    %3880 = vmatprep.subr.mxu0 0.0
    %3881 = vmatpush1.msra.mxu0 0.0
    %3882 = vmatprep.subr.mxu0 0.0
    %3883 = vmatpush1.msra.mxu0 0.0
    %3884 = vmatprep.subr.mxu0 0.0
    %3885 = vmatpush1.msra.mxu0 0.0
    %3886 = vmatprep.subr.mxu0 0.0
    %3887 = vmatpush1.msra.mxu0 0.0
    %3888 = vmatprep.subr.mxu0 0.0
    %3889 = vmatpush1.msra.mxu0 0.0
    %3890 = vmatprep.subr.mxu0 0.0
    %3891 = vmatpush1.msra.mxu0 0.0
    %3892 = vmatprep.subr.mxu0 0.0
    %3893 = vmatpush1.msra.mxu0 0.0
    %3894 = vmatprep.subr.mxu0 0.0
    %3895 = vmatpush1.msra.mxu0 0.0
    %3896 = vmatprep.subr.mxu0 0.0
    %3897 = vmatpush1.msra.mxu0 0.0
    %3898 = vmatprep.subr.mxu0 0.0
    %3899 = vmatpush1.msra.mxu0 0.0
    %3900 = vmatprep.subr.mxu0 0.0
    %3901 = vmatpush1.msra.mxu0 0.0
    %3902 = vmatprep.subr.mxu0 0.0
    %3903 = vmatpush1.msra.mxu0 0.0
    %3904 = vmatprep.subr.mxu0 0.0
    %3905 = vmatpush1.msra.mxu0 0.0
    %3906 = vmatprep.mubr.f32.mxu0 0.0
    %v3907 = vand.u32 %v3832, 4294901760
    %v3908 = vsub.f32 %v3832, %v3907
    %v3909 = vand.u32 %v3908, 4294901760
    %v3910 = vsub.f32 %v3908, %v3909
    %v3911 = vand.u32 %v3910, 4294901760
    %3912 = vmatmul.mubr.f32.gmra.mrb[0].mxu0 %v3911
    %v3913 = vpop.f32.mrb[0].mxu0
    %v3914 = vadd.f32 %v3830, %v3913
    %v3915 = vpop.f32.mrb[0].mxu0
    %3916 = vdwg.mxu0
    %3917 = vmatprep.subr.mxu0 0.0
    %v3918 = vand.u32 %v3809, 4294901760
    %v3919 = vsub.f32 %v3809, %v3918
    %v3920 = vand.u32 %v3919, 4294901760
    %v3921 = vsub.f32 %v3919, %v3920
    %v3922 = vand.u32 %v3921, 4294901760
    %3923 = vmatpush1.msra.mxu0 %v3922
    %3924 = vmatprep.subr.mxu0 0.0
    %v3925 = vand.u32 %v3810, 4294901760
    %v3926 = vsub.f32 %v3810, %v3925
    %v3927 = vand.u32 %v3926, 4294901760
    %v3928 = vsub.f32 %v3926, %v3927
    %v3929 = vand.u32 %v3928, 4294901760
    %3930 = vmatpush1.msra.mxu0 %v3929
    %3931 = vmatprep.subr.mxu0 0.0
    %v3932 = vand.u32 %v3811, 4294901760
    %v3933 = vsub.f32 %v3811, %v3932
    %v3934 = vand.u32 %v3933, 4294901760
    %v3935 = vsub.f32 %v3933, %v3934
    %v3936 = vand.u32 %v3935, 4294901760
    %3937 = vmatpush1.msra.mxu0 %v3936
    %3938 = vmatprep.subr.mxu0 0.0
    %v3939 = vand.u32 %v3812, 4294901760
    %v3940 = vsub.f32 %v3812, %v3939
    %v3941 = vand.u32 %v3940, 4294901760
    %v3942 = vsub.f32 %v3940, %v3941
    %v3943 = vand.u32 %v3942, 4294901760
    %3944 = vmatpush1.msra.mxu0 %v3943
    %3945 = vmatprep.subr.mxu0 0.0
    %v3946 = vand.u32 %v3813, 4294901760
    %v3947 = vsub.f32 %v3813, %v3946
    %v3948 = vand.u32 %v3947, 4294901760
    %v3949 = vsub.f32 %v3947, %v3948
    %v3950 = vand.u32 %v3949, 4294901760
    %3951 = vmatpush1.msra.mxu0 %v3950
    %3952 = vmatprep.subr.mxu0 0.0
    %v3953 = vand.u32 %v3814, 4294901760
    %v3954 = vsub.f32 %v3814, %v3953
    %v3955 = vand.u32 %v3954, 4294901760
    %v3956 = vsub.f32 %v3954, %v3955
    %v3957 = vand.u32 %v3956, 4294901760
    %3958 = vmatpush1.msra.mxu0 %v3957
    %3959 = vmatprep.subr.mxu0 0.0
    %v3960 = vand.u32 %v3815, 4294901760
    %v3961 = vsub.f32 %v3815, %v3960
    %v3962 = vand.u32 %v3961, 4294901760
    %v3963 = vsub.f32 %v3961, %v3962
    %v3964 = vand.u32 %v3963, 4294901760
    %3965 = vmatpush1.msra.mxu0 %v3964
    %3966 = vmatprep.subr.mxu0 0.0
    %v3967 = vand.u32 %v3816, 4294901760
    %v3968 = vsub.f32 %v3816, %v3967
    %v3969 = vand.u32 %v3968, 4294901760
    %v3970 = vsub.f32 %v3968, %v3969
    %v3971 = vand.u32 %v3970, 4294901760
    %3972 = vmatpush1.msra.mxu0 %v3971
    %3973 = vmatprep.subr.mxu0 0.0
    %3974 = vmatpush1.msra.mxu0 0.0
    %3975 = vmatprep.subr.mxu0 0.0
    %3976 = vmatpush1.msra.mxu0 0.0
    %3977 = vmatprep.subr.mxu0 0.0
    %3978 = vmatpush1.msra.mxu0 0.0
    %3979 = vmatprep.subr.mxu0 0.0
    %3980 = vmatpush1.msra.mxu0 0.0
    %3981 = vmatprep.subr.mxu0 0.0
    %3982 = vmatpush1.msra.mxu0 0.0
    %3983 = vmatprep.subr.mxu0 0.0
    %3984 = vmatpush1.msra.mxu0 0.0
    %3985 = vmatprep.subr.mxu0 0.0
    %3986 = vmatpush1.msra.mxu0 0.0
    %3987 = vmatprep.subr.mxu0 0.0
    %3988 = vmatpush1.msra.mxu0 0.0
    %3989 = vmatprep.subr.mxu0 0.0
    %3990 = vmatpush1.msra.mxu0 0.0
    %3991 = vmatprep.subr.mxu0 0.0
    %3992 = vmatpush1.msra.mxu0 0.0
    %3993 = vmatprep.subr.mxu0 0.0
    %3994 = vmatpush1.msra.mxu0 0.0
    %3995 = vmatprep.subr.mxu0 0.0
    %3996 = vmatpush1.msra.mxu0 0.0
    %3997 = vmatprep.subr.mxu0 0.0
    %3998 = vmatpush1.msra.mxu0 0.0
    %3999 = vmatprep.subr.mxu0 0.0
    %4000 = vmatpush1.msra.mxu0 0.0
    %4001 = vmatprep.subr.mxu0 0.0
    %4002 = vmatpush1.msra.mxu0 0.0
    %4003 = vmatprep.subr.mxu0 0.0
    %4004 = vmatpush1.msra.mxu0 0.0
    %4005 = vmatprep.subr.mxu0 0.0
    %4006 = vmatpush1.msra.mxu0 0.0
    %4007 = vmatprep.subr.mxu0 0.0
    %4008 = vmatpush1.msra.mxu0 0.0
    %4009 = vmatprep.subr.mxu0 0.0
    %4010 = vmatpush1.msra.mxu0 0.0
    %4011 = vmatprep.subr.mxu0 0.0
    %4012 = vmatpush1.msra.mxu0 0.0
    %4013 = vmatprep.subr.mxu0 0.0
    %4014 = vmatpush1.msra.mxu0 0.0
    %4015 = vmatprep.subr.mxu0 0.0
    %4016 = vmatpush1.msra.mxu0 0.0
    %4017 = vmatprep.subr.mxu0 0.0
    %4018 = vmatpush1.msra.mxu0 0.0
    %4019 = vmatprep.subr.mxu0 0.0
    %4020 = vmatpush1.msra.mxu0 0.0
    %4021 = vmatprep.mubr.f32.mxu0 0.0
    %v4022 = vand.u32 %v3832, 4294901760
    %4023 = vmatmul.mubr.f32.gmra.mrb[0].mxu0 %v4022
    %v4024 = vpop.f32.mrb[0].mxu0
    %v4025 = vadd.f32 %v3914, %v4024
    %v4026 = vpop.f32.mrb[0].mxu0
    %4027 = vdwg.mxu0
    %4028 = vmatprep.subr.mxu0 0.0
    %v4029 = vand.u32 %v3809, 4294901760
    %v4030 = vsub.f32 %v3809, %v4029
    %4031 = vmatpush1.msra.mxu0 %v4030
    %4032 = vmatprep.subr.mxu0 0.0
    %v4033 = vand.u32 %v3810, 4294901760
    %v4034 = vsub.f32 %v3810, %v4033
    %4035 = vmatpush1.msra.mxu0 %v4034
    %4036 = vmatprep.subr.mxu0 0.0
    %v4037 = vand.u32 %v3811, 4294901760
    %v4038 = vsub.f32 %v3811, %v4037
    %4039 = vmatpush1.msra.mxu0 %v4038
    %4040 = vmatprep.subr.mxu0 0.0
    %v4041 = vand.u32 %v3812, 4294901760
    %v4042 = vsub.f32 %v3812, %v4041
    %4043 = vmatpush1.msra.mxu0 %v4042
    %4044 = vmatprep.subr.mxu0 0.0
    %v4045 = vand.u32 %v3813, 4294901760
    %v4046 = vsub.f32 %v3813, %v4045
    %4047 = vmatpush1.msra.mxu0 %v4046
    %4048 = vmatprep.subr.mxu0 0.0
    %v4049 = vand.u32 %v3814, 4294901760
    %v4050 = vsub.f32 %v3814, %v4049
    %4051 = vmatpush1.msra.mxu0 %v4050
    %4052 = vmatprep.subr.mxu0 0.0
    %v4053 = vand.u32 %v3815, 4294901760
    %v4054 = vsub.f32 %v3815, %v4053
    %4055 = vmatpush1.msra.mxu0 %v4054
    %4056 = vmatprep.subr.mxu0 0.0
    %v4057 = vand.u32 %v3816, 4294901760
    %v4058 = vsub.f32 %v3816, %v4057
    %4059 = vmatpush1.msra.mxu0 %v4058
    %4060 = vmatprep.subr.mxu0 0.0
    %4061 = vmatpush1.msra.mxu0 0.0
    %4062 = vmatprep.subr.mxu0 0.0
    %4063 = vmatpush1.msra.mxu0 0.0
    %4064 = vmatprep.subr.mxu0 0.0
    %4065 = vmatpush1.msra.mxu0 0.0
    %4066 = vmatprep.subr.mxu0 0.0
    %4067 = vmatpush1.msra.mxu0 0.0
    %4068 = vmatprep.subr.mxu0 0.0
    %4069 = vmatpush1.msra.mxu0 0.0
    %4070 = vmatprep.subr.mxu0 0.0
    %4071 = vmatpush1.msra.mxu0 0.0
    %4072 = vmatprep.subr.mxu0 0.0
    %4073 = vmatpush1.msra.mxu0 0.0
    %4074 = vmatprep.subr.mxu0 0.0
    %4075 = vmatpush1.msra.mxu0 0.0
    %4076 = vmatprep.subr.mxu0 0.0
    %4077 = vmatpush1.msra.mxu0 0.0
    %4078 = vmatprep.subr.mxu0 0.0
    %4079 = vmatpush1.msra.mxu0 0.0
    %4080 = vmatprep.subr.mxu0 0.0
    %4081 = vmatpush1.msra.mxu0 0.0
    %4082 = vmatprep.subr.mxu0 0.0
    %4083 = vmatpush1.msra.mxu0 0.0
    %4084 = vmatprep.subr.mxu0 0.0
    %4085 = vmatpush1.msra.mxu0 0.0
    %4086 = vmatprep.subr.mxu0 0.0
    %4087 = vmatpush1.msra.mxu0 0.0
    %4088 = vmatprep.subr.mxu0 0.0
    %4089 = vmatpush1.msra.mxu0 0.0
    %4090 = vmatprep.subr.mxu0 0.0
    %4091 = vmatpush1.msra.mxu0 0.0
    %4092 = vmatprep.subr.mxu0 0.0
    %4093 = vmatpush1.msra.mxu0 0.0
    %4094 = vmatprep.subr.mxu0 0.0
    %4095 = vmatpush1.msra.mxu0 0.0
    %4096 = vmatprep.subr.mxu0 0.0
    %4097 = vmatpush1.msra.mxu0 0.0
    %4098 = vmatprep.subr.mxu0 0.0
    %4099 = vmatpush1.msra.mxu0 0.0
    %4100 = vmatprep.subr.mxu0 0.0
    %4101 = vmatpush1.msra.mxu0 0.0
    %4102 = vmatprep.subr.mxu0 0.0
    %4103 = vmatpush1.msra.mxu0 0.0
    %4104 = vmatprep.subr.mxu0 0.0
    %4105 = vmatpush1.msra.mxu0 0.0
    %4106 = vmatprep.subr.mxu0 0.0
    %4107 = vmatpush1.msra.mxu0 0.0
    %4108 = vmatprep.mubr.f32.mxu0 0.0
    %v4109 = vand.u32 %v3832, 4294901760
    %v4110 = vsub.f32 %v3832, %v4109
    %4111 = vmatmul.mubr.f32.gmra.mrb[0].mxu0 %v4110
    %v4112 = vpop.f32.mrb[0].mxu0
    %v4113 = vadd.f32 %v4025, %v4112
    %v4114 = vpop.f32.mrb[0].mxu0
    %4115 = vdwg.mxu0
    %4116 = vmatprep.subr.mxu0 0.0
    %v4117 = vand.u32 %v3809, 4294901760
    %4118 = vmatpush1.msra.mxu0 %v4117
    %4119 = vmatprep.subr.mxu0 0.0
    %v4120 = vand.u32 %v3810, 4294901760
    %4121 = vmatpush1.msra.mxu0 %v4120
    %4122 = vmatprep.subr.mxu0 0.0
    %v4123 = vand.u32 %v3811, 4294901760
    %4124 = vmatpush1.msra.mxu0 %v4123
    %4125 = vmatprep.subr.mxu0 0.0
    %v4126 = vand.u32 %v3812, 4294901760
    %4127 = vmatpush1.msra.mxu0 %v4126
    %4128 = vmatprep.subr.mxu0 0.0
    %v4129 = vand.u32 %v3813, 4294901760
    %4130 = vmatpush1.msra.mxu0 %v4129
    %4131 = vmatprep.subr.mxu0 0.0
    %v4132 = vand.u32 %v3814, 4294901760
    %4133 = vmatpush1.msra.mxu0 %v4132
    %4134 = vmatprep.subr.mxu0 0.0
    %v4135 = vand.u32 %v3815, 4294901760
    %4136 = vmatpush1.msra.mxu0 %v4135
    %4137 = vmatprep.subr.mxu0 0.0
    %v4138 = vand.u32 %v3816, 4294901760
    %4139 = vmatpush1.msra.mxu0 %v4138
    %4140 = vmatprep.subr.mxu0 0.0
    %4141 = vmatpush1.msra.mxu0 0.0
    %4142 = vmatprep.subr.mxu0 0.0
    %4143 = vmatpush1.msra.mxu0 0.0
    %4144 = vmatprep.subr.mxu0 0.0
    %4145 = vmatpush1.msra.mxu0 0.0
    %4146 = vmatprep.subr.mxu0 0.0
    %4147 = vmatpush1.msra.mxu0 0.0
    %4148 = vmatprep.subr.mxu0 0.0
    %4149 = vmatpush1.msra.mxu0 0.0
    %4150 = vmatprep.subr.mxu0 0.0
    %4151 = vmatpush1.msra.mxu0 0.0
    %4152 = vmatprep.subr.mxu0 0.0
    %4153 = vmatpush1.msra.mxu0 0.0
    %4154 = vmatprep.subr.mxu0 0.0
    %4155 = vmatpush1.msra.mxu0 0.0
    %4156 = vmatprep.subr.mxu0 0.0
    %4157 = vmatpush1.msra.mxu0 0.0
    %4158 = vmatprep.subr.mxu0 0.0
    %4159 = vmatpush1.msra.mxu0 0.0
    %4160 = vmatprep.subr.mxu0 0.0
    %4161 = vmatpush1.msra.mxu0 0.0
    %4162 = vmatprep.subr.mxu0 0.0
    %4163 = vmatpush1.msra.mxu0 0.0
    %4164 = vmatprep.subr.mxu0 0.0
    %4165 = vmatpush1.msra.mxu0 0.0
    %4166 = vmatprep.subr.mxu0 0.0
    %4167 = vmatpush1.msra.mxu0 0.0
    %4168 = vmatprep.subr.mxu0 0.0
    %4169 = vmatpush1.msra.mxu0 0.0
    %4170 = vmatprep.subr.mxu0 0.0
    %4171 = vmatpush1.msra.mxu0 0.0
    %4172 = vmatprep.subr.mxu0 0.0
    %4173 = vmatpush1.msra.mxu0 0.0
    %4174 = vmatprep.subr.mxu0 0.0
    %4175 = vmatpush1.msra.mxu0 0.0
    %4176 = vmatprep.subr.mxu0 0.0
    %4177 = vmatpush1.msra.mxu0 0.0
    %4178 = vmatprep.subr.mxu0 0.0
    %4179 = vmatpush1.msra.mxu0 0.0
    %4180 = vmatprep.subr.mxu0 0.0
    %4181 = vmatpush1.msra.mxu0 0.0
    %4182 = vmatprep.subr.mxu0 0.0
    %4183 = vmatpush1.msra.mxu0 0.0
    %4184 = vmatprep.subr.mxu0 0.0
    %4185 = vmatpush1.msra.mxu0 0.0
    %4186 = vmatprep.subr.mxu0 0.0
    %4187 = vmatpush1.msra.mxu0 0.0
    %4188 = vmatprep.mubr.f32.mxu0 0.0
    %v4189 = vand.u32 %v3832, 4294901760
    %v4190 = vsub.f32 %v3832, %v4189
    %v4191 = vand.u32 %v4190, 4294901760
    %4192 = vmatmul.mubr.f32.gmra.mrb[0].mxu0 %v4191
    %v4193 = vpop.f32.mrb[0].mxu0
    %v4194 = vadd.f32 %v4113, %v4193
    %v4195 = vpop.f32.mrb[0].mxu0
    %4196 = vdwg.mxu0
    %4197 = vmatprep.subr.mxu0 0.0
    %v4198 = vand.u32 %v3809, 4294901760
    %v4199 = vsub.f32 %v3809, %v4198
    %v4200 = vand.u32 %v4199, 4294901760
    %4201 = vmatpush1.msra.mxu0 %v4200
    %4202 = vmatprep.subr.mxu0 0.0
    %v4203 = vand.u32 %v3810, 4294901760
    %v4204 = vsub.f32 %v3810, %v4203
    %v4205 = vand.u32 %v4204, 4294901760
    %4206 = vmatpush1.msra.mxu0 %v4205
    %4207 = vmatprep.subr.mxu0 0.0
    %v4208 = vand.u32 %v3811, 4294901760
    %v4209 = vsub.f32 %v3811, %v4208
    %v4210 = vand.u32 %v4209, 4294901760
    %4211 = vmatpush1.msra.mxu0 %v4210
    %4212 = vmatprep.subr.mxu0 0.0
    %v4213 = vand.u32 %v3812, 4294901760
    %v4214 = vsub.f32 %v3812, %v4213
    %v4215 = vand.u32 %v4214, 4294901760
    %4216 = vmatpush1.msra.mxu0 %v4215
    %4217 = vmatprep.subr.mxu0 0.0
    %v4218 = vand.u32 %v3813, 4294901760
    %v4219 = vsub.f32 %v3813, %v4218
    %v4220 = vand.u32 %v4219, 4294901760
    %4221 = vmatpush1.msra.mxu0 %v4220
    %4222 = vmatprep.subr.mxu0 0.0
    %v4223 = vand.u32 %v3814, 4294901760
    %v4224 = vsub.f32 %v3814, %v4223
    %v4225 = vand.u32 %v4224, 4294901760
    %4226 = vmatpush1.msra.mxu0 %v4225
    %4227 = vmatprep.subr.mxu0 0.0
    %v4228 = vand.u32 %v3815, 4294901760
    %v4229 = vsub.f32 %v3815, %v4228
    %v4230 = vand.u32 %v4229, 4294901760
    %4231 = vmatpush1.msra.mxu0 %v4230
    %4232 = vmatprep.subr.mxu0 0.0
    %v4233 = vand.u32 %v3816, 4294901760
    %v4234 = vsub.f32 %v3816, %v4233
    %v4235 = vand.u32 %v4234, 4294901760
    %4236 = vmatpush1.msra.mxu0 %v4235
    %4237 = vmatprep.subr.mxu0 0.0
    %4238 = vmatpush1.msra.mxu0 0.0
    %4239 = vmatprep.subr.mxu0 0.0
    %4240 = vmatpush1.msra.mxu0 0.0
    %4241 = vmatprep.subr.mxu0 0.0
    %4242 = vmatpush1.msra.mxu0 0.0
    %4243 = vmatprep.subr.mxu0 0.0
    %4244 = vmatpush1.msra.mxu0 0.0
    %4245 = vmatprep.subr.mxu0 0.0
    %4246 = vmatpush1.msra.mxu0 0.0
    %4247 = vmatprep.subr.mxu0 0.0
    %4248 = vmatpush1.msra.mxu0 0.0
    %4249 = vmatprep.subr.mxu0 0.0
    %4250 = vmatpush1.msra.mxu0 0.0
    %4251 = vmatprep.subr.mxu0 0.0
    %4252 = vmatpush1.msra.mxu0 0.0
    %4253 = vmatprep.subr.mxu0 0.0
    %4254 = vmatpush1.msra.mxu0 0.0
    %4255 = vmatprep.subr.mxu0 0.0
    %4256 = vmatpush1.msra.mxu0 0.0
    %4257 = vmatprep.subr.mxu0 0.0
    %4258 = vmatpush1.msra.mxu0 0.0
    %4259 = vmatprep.subr.mxu0 0.0
    %4260 = vmatpush1.msra.mxu0 0.0
    %4261 = vmatprep.subr.mxu0 0.0
    %4262 = vmatpush1.msra.mxu0 0.0
    %4263 = vmatprep.subr.mxu0 0.0
    %4264 = vmatpush1.msra.mxu0 0.0
    %4265 = vmatprep.subr.mxu0 0.0
    %4266 = vmatpush1.msra.mxu0 0.0
    %4267 = vmatprep.subr.mxu0 0.0
    %4268 = vmatpush1.msra.mxu0 0.0
    %4269 = vmatprep.subr.mxu0 0.0
    %4270 = vmatpush1.msra.mxu0 0.0
    %4271 = vmatprep.subr.mxu0 0.0
    %4272 = vmatpush1.msra.mxu0 0.0
    %4273 = vmatprep.subr.mxu0 0.0
    %4274 = vmatpush1.msra.mxu0 0.0
    %4275 = vmatprep.subr.mxu0 0.0
    %4276 = vmatpush1.msra.mxu0 0.0
    %4277 = vmatprep.subr.mxu0 0.0
    %4278 = vmatpush1.msra.mxu0 0.0
    %4279 = vmatprep.subr.mxu0 0.0
    %4280 = vmatpush1.msra.mxu0 0.0
    %4281 = vmatprep.subr.mxu0 0.0
    %4282 = vmatpush1.msra.mxu0 0.0
    %4283 = vmatprep.subr.mxu0 0.0
    %4284 = vmatpush1.msra.mxu0 0.0
    %4285 = vmatprep.mubr.f32.mxu0 0.0
    %v4286 = vand.u32 %v3832, 4294901760
    %4287 = vmatmul.mubr.f32.gmra.mrb[0].mxu0 %v4286
    %v4288 = vpop.f32.mrb[0].mxu0
    %v4289 = vadd.f32 %v4194, %v4288
    %v4290 = vpop.f32.mrb[0].mxu0
    %4291 = vdwg.mxu0
    %4292 = vmatprep.subr.mxu0 0.0
    %v4293 = vand.u32 %v3809, 4294901760
    %4294 = vmatpush1.msra.mxu0 %v4293
    %4295 = vmatprep.subr.mxu0 0.0
    %v4296 = vand.u32 %v3810, 4294901760
    %4297 = vmatpush1.msra.mxu0 %v4296
    %4298 = vmatprep.subr.mxu0 0.0
    %v4299 = vand.u32 %v3811, 4294901760
    %4300 = vmatpush1.msra.mxu0 %v4299
    %4301 = vmatprep.subr.mxu0 0.0
    %v4302 = vand.u32 %v3812, 4294901760
    %4303 = vmatpush1.msra.mxu0 %v4302
    %4304 = vmatprep.subr.mxu0 0.0
    %v4305 = vand.u32 %v3813, 4294901760
    %4306 = vmatpush1.msra.mxu0 %v4305
    %4307 = vmatprep.subr.mxu0 0.0
    %v4308 = vand.u32 %v3814, 4294901760
    %4309 = vmatpush1.msra.mxu0 %v4308
    %4310 = vmatprep.subr.mxu0 0.0
    %v4311 = vand.u32 %v3815, 4294901760
    %4312 = vmatpush1.msra.mxu0 %v4311
    %4313 = vmatprep.subr.mxu0 0.0
    %v4314 = vand.u32 %v3816, 4294901760
    %4315 = vmatpush1.msra.mxu0 %v4314
    %4316 = vmatprep.subr.mxu0 0.0
    %4317 = vmatpush1.msra.mxu0 0.0
    %4318 = vmatprep.subr.mxu0 0.0
    %4319 = vmatpush1.msra.mxu0 0.0
    %4320 = vmatprep.subr.mxu0 0.0
    %4321 = vmatpush1.msra.mxu0 0.0
    %4322 = vmatprep.subr.mxu0 0.0
    %4323 = vmatpush1.msra.mxu0 0.0
    %4324 = vmatprep.subr.mxu0 0.0
    %4325 = vmatpush1.msra.mxu0 0.0
    %4326 = vmatprep.subr.mxu0 0.0
    %4327 = vmatpush1.msra.mxu0 0.0
    %4328 = vmatprep.subr.mxu0 0.0
    %4329 = vmatpush1.msra.mxu0 0.0
    %4330 = vmatprep.subr.mxu0 0.0
    %4331 = vmatpush1.msra.mxu0 0.0
    %4332 = vmatprep.subr.mxu0 0.0
    %4333 = vmatpush1.msra.mxu0 0.0
    %4334 = vmatprep.subr.mxu0 0.0
    %4335 = vmatpush1.msra.mxu0 0.0
    %4336 = vmatprep.subr.mxu0 0.0
    %4337 = vmatpush1.msra.mxu0 0.0
    %4338 = vmatprep.subr.mxu0 0.0
    %4339 = vmatpush1.msra.mxu0 0.0
    %4340 = vmatprep.subr.mxu0 0.0
    %4341 = vmatpush1.msra.mxu0 0.0
    %4342 = vmatprep.subr.mxu0 0.0
    %4343 = vmatpush1.msra.mxu0 0.0
    %4344 = vmatprep.subr.mxu0 0.0
    %4345 = vmatpush1.msra.mxu0 0.0
    %4346 = vmatprep.subr.mxu0 0.0
    %4347 = vmatpush1.msra.mxu0 0.0
    %4348 = vmatprep.subr.mxu0 0.0
    %4349 = vmatpush1.msra.mxu0 0.0
    %4350 = vmatprep.subr.mxu0 0.0
    %4351 = vmatpush1.msra.mxu0 0.0
    %4352 = vmatprep.subr.mxu0 0.0
    %4353 = vmatpush1.msra.mxu0 0.0
    %4354 = vmatprep.subr.mxu0 0.0
    %4355 = vmatpush1.msra.mxu0 0.0
    %4356 = vmatprep.subr.mxu0 0.0
    %4357 = vmatpush1.msra.mxu0 0.0
    %4358 = vmatprep.subr.mxu0 0.0
    %4359 = vmatpush1.msra.mxu0 0.0
    %4360 = vmatprep.subr.mxu0 0.0
    %4361 = vmatpush1.msra.mxu0 0.0
    %4362 = vmatprep.subr.mxu0 0.0
    %4363 = vmatpush1.msra.mxu0 0.0
    %4364 = vmatprep.mubr.f32.mxu0 0.0
    %v4365 = vand.u32 %v3832, 4294901760
    %4366 = vmatmul.mubr.f32.gmra.mrb[0].mxu0 %v4365
    %v4367 = vpop.f32.mrb[0].mxu0
    %v4368 = vadd.f32 %v4289, %v4367
    %v4369 = vpop.f32.mrb[0].mxu0
    %4370 = vdwg.mxu0
    %v4371 = vmax.f32 %v4368, 0.0
    %v4372 = vlaneseq
    %v4373 = vshrl.u32 %v4372, 7
    %v4374 = vsub.s32 0, %v4373
    %v4375 = vrot.slane %v3826, %v4374
    %v4377 = vsel %vm563, %v4371, 0
    %4379 = vmatprep.subr.mxu0 0.0
    %v4380 = vand.u32 %v3818, 4294901760
    %4381 = vmatpush1.msra.mxu0 %v4380
    %4382 = vmatprep.subr.mxu0 0.0
    %v4383 = vand.u32 %v3819, 4294901760
    %4384 = vmatpush1.msra.mxu0 %v4383
    %4385 = vmatprep.subr.mxu0 0.0
    %v4386 = vand.u32 %v3820, 4294901760
    %4387 = vmatpush1.msra.mxu0 %v4386
    %4388 = vmatprep.subr.mxu0 0.0
    %v4389 = vand.u32 %v3821, 4294901760
    %4390 = vmatpush1.msra.mxu0 %v4389
    %4391 = vmatprep.subr.mxu0 0.0
    %v4392 = vand.u32 %v3822, 4294901760
    %4393 = vmatpush1.msra.mxu0 %v4392
    %4394 = vmatprep.subr.mxu0 0.0
    %v4395 = vand.u32 %v3823, 4294901760
    %4396 = vmatpush1.msra.mxu0 %v4395
    %4397 = vmatprep.subr.mxu0 0.0
    %v4398 = vand.u32 %v3824, 4294901760
    %4399 = vmatpush1.msra.mxu0 %v4398
    %4400 = vmatprep.subr.mxu0 0.0
    %v4401 = vand.u32 %v3825, 4294901760
    %4402 = vmatpush1.msra.mxu0 %v4401
    %4403 = vmatprep.subr.mxu0 0.0
    %4404 = vmatpush1.msra.mxu0 0.0
    %4405 = vmatprep.subr.mxu0 0.0
    %4406 = vmatpush1.msra.mxu0 0.0
    %4407 = vmatprep.subr.mxu0 0.0
    %4408 = vmatpush1.msra.mxu0 0.0
    %4409 = vmatprep.subr.mxu0 0.0
    %4410 = vmatpush1.msra.mxu0 0.0
    %4411 = vmatprep.subr.mxu0 0.0
    %4412 = vmatpush1.msra.mxu0 0.0
    %4413 = vmatprep.subr.mxu0 0.0
    %4414 = vmatpush1.msra.mxu0 0.0
    %4415 = vmatprep.subr.mxu0 0.0
    %4416 = vmatpush1.msra.mxu0 0.0
    %4417 = vmatprep.subr.mxu0 0.0
    %4418 = vmatpush1.msra.mxu0 0.0
    %4419 = vmatprep.subr.mxu0 0.0
    %4420 = vmatpush1.msra.mxu0 0.0
    %4421 = vmatprep.subr.mxu0 0.0
    %4422 = vmatpush1.msra.mxu0 0.0
    %4423 = vmatprep.subr.mxu0 0.0
    %4424 = vmatpush1.msra.mxu0 0.0
    %4425 = vmatprep.subr.mxu0 0.0
    %4426 = vmatpush1.msra.mxu0 0.0
    %4427 = vmatprep.subr.mxu0 0.0
    %4428 = vmatpush1.msra.mxu0 0.0
    %4429 = vmatprep.subr.mxu0 0.0
    %4430 = vmatpush1.msra.mxu0 0.0
    %4431 = vmatprep.subr.mxu0 0.0
    %4432 = vmatpush1.msra.mxu0 0.0
    %4433 = vmatprep.subr.mxu0 0.0
    %4434 = vmatpush1.msra.mxu0 0.0
    %4435 = vmatprep.subr.mxu0 0.0
    %4436 = vmatpush1.msra.mxu0 0.0
    %4437 = vmatprep.subr.mxu0 0.0
    %4438 = vmatpush1.msra.mxu0 0.0
    %4439 = vmatprep.subr.mxu0 0.0
    %4440 = vmatpush1.msra.mxu0 0.0
    %4441 = vmatprep.subr.mxu0 0.0
    %4442 = vmatpush1.msra.mxu0 0.0
    %4443 = vmatprep.subr.mxu0 0.0
    %4444 = vmatpush1.msra.mxu0 0.0
    %4445 = vmatprep.subr.mxu0 0.0
    %4446 = vmatpush1.msra.mxu0 0.0
    %4447 = vmatprep.subr.mxu0 0.0
    %4448 = vmatpush1.msra.mxu0 0.0
    %4449 = vmatprep.subr.mxu0 0.0
    %4450 = vmatpush1.msra.mxu0 0.0
    %4451 = vmatprep.mubr.f32.mxu0 0.0
    %v4452 = vand.u32 %v4377, 4294901760
    %v4453 = vsub.f32 %v4377, %v4452
    %v4454 = vand.u32 %v4453, 4294901760
    %v4455 = vsub.f32 %v4453, %v4454
    %v4456 = vand.u32 %v4455, 4294901760
    %4457 = vmatmul.mubr.f32.gmra.mrb[0].mxu0 %v4456
    %v4458 = vpop.f32.mrb[0].mxu0
    %v4459 = vadd.f32 %v4375, %v4458
    %v4460 = vpop.f32.mrb[0].mxu0
    %4461 = vdwg.mxu0
    %4462 = vmatprep.subr.mxu0 0.0
    %v4463 = vand.u32 %v3818, 4294901760
    %v4464 = vsub.f32 %v3818, %v4463
    %v4465 = vand.u32 %v4464, 4294901760
    %v4466 = vsub.f32 %v4464, %v4465
    %v4467 = vand.u32 %v4466, 4294901760
    %4468 = vmatpush1.msra.mxu0 %v4467
    %4469 = vmatprep.subr.mxu0 0.0
    %v4470 = vand.u32 %v3819, 4294901760
    %v4471 = vsub.f32 %v3819, %v4470
    %v4472 = vand.u32 %v4471, 4294901760
    %v4473 = vsub.f32 %v4471, %v4472
    %v4474 = vand.u32 %v4473, 4294901760
    %4475 = vmatpush1.msra.mxu0 %v4474
    %4476 = vmatprep.subr.mxu0 0.0
    %v4477 = vand.u32 %v3820, 4294901760
    %v4478 = vsub.f32 %v3820, %v4477
    %v4479 = vand.u32 %v4478, 4294901760
    %v4480 = vsub.f32 %v4478, %v4479
    %v4481 = vand.u32 %v4480, 4294901760
    %4482 = vmatpush1.msra.mxu0 %v4481
    %4483 = vmatprep.subr.mxu0 0.0
    %v4484 = vand.u32 %v3821, 4294901760
    %v4485 = vsub.f32 %v3821, %v4484
    %v4486 = vand.u32 %v4485, 4294901760
    %v4487 = vsub.f32 %v4485, %v4486
    %v4488 = vand.u32 %v4487, 4294901760
    %4489 = vmatpush1.msra.mxu0 %v4488
    %4490 = vmatprep.subr.mxu0 0.0
    %v4491 = vand.u32 %v3822, 4294901760
    %v4492 = vsub.f32 %v3822, %v4491
    %v4493 = vand.u32 %v4492, 4294901760
    %v4494 = vsub.f32 %v4492, %v4493
    %v4495 = vand.u32 %v4494, 4294901760
    %4496 = vmatpush1.msra.mxu0 %v4495
    %4497 = vmatprep.subr.mxu0 0.0
    %v4498 = vand.u32 %v3823, 4294901760
    %v4499 = vsub.f32 %v3823, %v4498
    %v4500 = vand.u32 %v4499, 4294901760
    %v4501 = vsub.f32 %v4499, %v4500
    %v4502 = vand.u32 %v4501, 4294901760
    %4503 = vmatpush1.msra.mxu0 %v4502
    %4504 = vmatprep.subr.mxu0 0.0
    %v4505 = vand.u32 %v3824, 4294901760
    %v4506 = vsub.f32 %v3824, %v4505
    %v4507 = vand.u32 %v4506, 4294901760
    %v4508 = vsub.f32 %v4506, %v4507
    %v4509 = vand.u32 %v4508, 4294901760
    %4510 = vmatpush1.msra.mxu0 %v4509
    %4511 = vmatprep.subr.mxu0 0.0
    %v4512 = vand.u32 %v3825, 4294901760
    %v4513 = vsub.f32 %v3825, %v4512
    %v4514 = vand.u32 %v4513, 4294901760
    %v4515 = vsub.f32 %v4513, %v4514
    %v4516 = vand.u32 %v4515, 4294901760
    %4517 = vmatpush1.msra.mxu0 %v4516
    %4518 = vmatprep.subr.mxu0 0.0
    %4519 = vmatpush1.msra.mxu0 0.0
    %4520 = vmatprep.subr.mxu0 0.0
    %4521 = vmatpush1.msra.mxu0 0.0
    %4522 = vmatprep.subr.mxu0 0.0
    %4523 = vmatpush1.msra.mxu0 0.0
    %4524 = vmatprep.subr.mxu0 0.0
    %4525 = vmatpush1.msra.mxu0 0.0
    %4526 = vmatprep.subr.mxu0 0.0
    %4527 = vmatpush1.msra.mxu0 0.0
    %4528 = vmatprep.subr.mxu0 0.0
    %4529 = vmatpush1.msra.mxu0 0.0
    %4530 = vmatprep.subr.mxu0 0.0
    %4531 = vmatpush1.msra.mxu0 0.0
    %4532 = vmatprep.subr.mxu0 0.0
    %4533 = vmatpush1.msra.mxu0 0.0
    %4534 = vmatprep.subr.mxu0 0.0
    %4535 = vmatpush1.msra.mxu0 0.0
    %4536 = vmatprep.subr.mxu0 0.0
    %4537 = vmatpush1.msra.mxu0 0.0
    %4538 = vmatprep.subr.mxu0 0.0
    %4539 = vmatpush1.msra.mxu0 0.0
    %4540 = vmatprep.subr.mxu0 0.0
    %4541 = vmatpush1.msra.mxu0 0.0
    %4542 = vmatprep.subr.mxu0 0.0
    %4543 = vmatpush1.msra.mxu0 0.0
    %4544 = vmatprep.subr.mxu0 0.0
    %4545 = vmatpush1.msra.mxu0 0.0
    %4546 = vmatprep.subr.mxu0 0.0
    %4547 = vmatpush1.msra.mxu0 0.0
    %4548 = vmatprep.subr.mxu0 0.0
    %4549 = vmatpush1.msra.mxu0 0.0
    %4550 = vmatprep.subr.mxu0 0.0
    %4551 = vmatpush1.msra.mxu0 0.0
    %4552 = vmatprep.subr.mxu0 0.0
    %4553 = vmatpush1.msra.mxu0 0.0
    %4554 = vmatprep.subr.mxu0 0.0
    %4555 = vmatpush1.msra.mxu0 0.0
    %4556 = vmatprep.subr.mxu0 0.0
    %4557 = vmatpush1.msra.mxu0 0.0
    %4558 = vmatprep.subr.mxu0 0.0
    %4559 = vmatpush1.msra.mxu0 0.0
    %4560 = vmatprep.subr.mxu0 0.0
    %4561 = vmatpush1.msra.mxu0 0.0
    %4562 = vmatprep.subr.mxu0 0.0
    %4563 = vmatpush1.msra.mxu0 0.0
    %4564 = vmatprep.subr.mxu0 0.0
    %4565 = vmatpush1.msra.mxu0 0.0
    %4566 = vmatprep.mubr.f32.mxu0 0.0
    %v4567 = vand.u32 %v4377, 4294901760
    %4568 = vmatmul.mubr.f32.gmra.mrb[0].mxu0 %v4567
    %v4569 = vpop.f32.mrb[0].mxu0
    %v4570 = vadd.f32 %v4459, %v4569
    %v4571 = vpop.f32.mrb[0].mxu0
    %4572 = vdwg.mxu0
    %4573 = vmatprep.subr.mxu0 0.0
    %v4574 = vand.u32 %v3818, 4294901760
    %v4575 = vsub.f32 %v3818, %v4574
    %4576 = vmatpush1.msra.mxu0 %v4575
    %4577 = vmatprep.subr.mxu0 0.0
    %v4578 = vand.u32 %v3819, 4294901760
    %v4579 = vsub.f32 %v3819, %v4578
    %4580 = vmatpush1.msra.mxu0 %v4579
    %4581 = vmatprep.subr.mxu0 0.0
    %v4582 = vand.u32 %v3820, 4294901760
    %v4583 = vsub.f32 %v3820, %v4582
    %4584 = vmatpush1.msra.mxu0 %v4583
    %4585 = vmatprep.subr.mxu0 0.0
    %v4586 = vand.u32 %v3821, 4294901760
    %v4587 = vsub.f32 %v3821, %v4586
    %4588 = vmatpush1.msra.mxu0 %v4587
    %4589 = vmatprep.subr.mxu0 0.0
    %v4590 = vand.u32 %v3822, 4294901760
    %v4591 = vsub.f32 %v3822, %v4590
    %4592 = vmatpush1.msra.mxu0 %v4591
    %4593 = vmatprep.subr.mxu0 0.0
    %v4594 = vand.u32 %v3823, 4294901760
    %v4595 = vsub.f32 %v3823, %v4594
    %4596 = vmatpush1.msra.mxu0 %v4595
    %4597 = vmatprep.subr.mxu0 0.0
    %v4598 = vand.u32 %v3824, 4294901760
    %v4599 = vsub.f32 %v3824, %v4598
    %4600 = vmatpush1.msra.mxu0 %v4599
    %4601 = vmatprep.subr.mxu0 0.0
    %v4602 = vand.u32 %v3825, 4294901760
    %v4603 = vsub.f32 %v3825, %v4602
    %4604 = vmatpush1.msra.mxu0 %v4603
    %4605 = vmatprep.subr.mxu0 0.0
    %4606 = vmatpush1.msra.mxu0 0.0
    %4607 = vmatprep.subr.mxu0 0.0
    %4608 = vmatpush1.msra.mxu0 0.0
    %4609 = vmatprep.subr.mxu0 0.0
    %4610 = vmatpush1.msra.mxu0 0.0
    %4611 = vmatprep.subr.mxu0 0.0
    %4612 = vmatpush1.msra.mxu0 0.0
    %4613 = vmatprep.subr.mxu0 0.0
    %4614 = vmatpush1.msra.mxu0 0.0
    %4615 = vmatprep.subr.mxu0 0.0
    %4616 = vmatpush1.msra.mxu0 0.0
    %4617 = vmatprep.subr.mxu0 0.0
    %4618 = vmatpush1.msra.mxu0 0.0
    %4619 = vmatprep.subr.mxu0 0.0
    %4620 = vmatpush1.msra.mxu0 0.0
    %4621 = vmatprep.subr.mxu0 0.0
    %4622 = vmatpush1.msra.mxu0 0.0
    %4623 = vmatprep.subr.mxu0 0.0
    %4624 = vmatpush1.msra.mxu0 0.0
    %4625 = vmatprep.subr.mxu0 0.0
    %4626 = vmatpush1.msra.mxu0 0.0
    %4627 = vmatprep.subr.mxu0 0.0
    %4628 = vmatpush1.msra.mxu0 0.0
    %4629 = vmatprep.subr.mxu0 0.0
    %4630 = vmatpush1.msra.mxu0 0.0
    %4631 = vmatprep.subr.mxu0 0.0
    %4632 = vmatpush1.msra.mxu0 0.0
    %4633 = vmatprep.subr.mxu0 0.0
    %4634 = vmatpush1.msra.mxu0 0.0
    %4635 = vmatprep.subr.mxu0 0.0
    %4636 = vmatpush1.msra.mxu0 0.0
    %4637 = vmatprep.subr.mxu0 0.0
    %4638 = vmatpush1.msra.mxu0 0.0
    %4639 = vmatprep.subr.mxu0 0.0
    %4640 = vmatpush1.msra.mxu0 0.0
    %4641 = vmatprep.subr.mxu0 0.0
    %4642 = vmatpush1.msra.mxu0 0.0
    %4643 = vmatprep.subr.mxu0 0.0
    %4644 = vmatpush1.msra.mxu0 0.0
    %4645 = vmatprep.subr.mxu0 0.0
    %4646 = vmatpush1.msra.mxu0 0.0
    %4647 = vmatprep.subr.mxu0 0.0
    %4648 = vmatpush1.msra.mxu0 0.0
    %4649 = vmatprep.subr.mxu0 0.0
    %4650 = vmatpush1.msra.mxu0 0.0
    %4651 = vmatprep.subr.mxu0 0.0
    %4652 = vmatpush1.msra.mxu0 0.0
    %4653 = vmatprep.mubr.f32.mxu0 0.0
    %v4654 = vand.u32 %v4377, 4294901760
    %v4655 = vsub.f32 %v4377, %v4654
    %4656 = vmatmul.mubr.f32.gmra.mrb[0].mxu0 %v4655
    %v4657 = vpop.f32.mrb[0].mxu0
    %v4658 = vadd.f32 %v4570, %v4657
    %v4659 = vpop.f32.mrb[0].mxu0
    %4660 = vdwg.mxu0
    %4661 = vmatprep.subr.mxu0 0.0
    %v4662 = vand.u32 %v3818, 4294901760
    %4663 = vmatpush1.msra.mxu0 %v4662
    %4664 = vmatprep.subr.mxu0 0.0
    %v4665 = vand.u32 %v3819, 4294901760
    %4666 = vmatpush1.msra.mxu0 %v4665
    %4667 = vmatprep.subr.mxu0 0.0
    %v4668 = vand.u32 %v3820, 4294901760
    %4669 = vmatpush1.msra.mxu0 %v4668
    %4670 = vmatprep.subr.mxu0 0.0
    %v4671 = vand.u32 %v3821, 4294901760
    %4672 = vmatpush1.msra.mxu0 %v4671
    %4673 = vmatprep.subr.mxu0 0.0
    %v4674 = vand.u32 %v3822, 4294901760
    %4675 = vmatpush1.msra.mxu0 %v4674
    %4676 = vmatprep.subr.mxu0 0.0
    %v4677 = vand.u32 %v3823, 4294901760
    %4678 = vmatpush1.msra.mxu0 %v4677
    %4679 = vmatprep.subr.mxu0 0.0
    %v4680 = vand.u32 %v3824, 4294901760
    %4681 = vmatpush1.msra.mxu0 %v4680
    %4682 = vmatprep.subr.mxu0 0.0
    %v4683 = vand.u32 %v3825, 4294901760
    %4684 = vmatpush1.msra.mxu0 %v4683
    %4685 = vmatprep.subr.mxu0 0.0
    %4686 = vmatpush1.msra.mxu0 0.0
    %4687 = vmatprep.subr.mxu0 0.0
    %4688 = vmatpush1.msra.mxu0 0.0
    %4689 = vmatprep.subr.mxu0 0.0
    %4690 = vmatpush1.msra.mxu0 0.0
    %4691 = vmatprep.subr.mxu0 0.0
    %4692 = vmatpush1.msra.mxu0 0.0
    %4693 = vmatprep.subr.mxu0 0.0
    %4694 = vmatpush1.msra.mxu0 0.0
    %4695 = vmatprep.subr.mxu0 0.0
    %4696 = vmatpush1.msra.mxu0 0.0
    %4697 = vmatprep.subr.mxu0 0.0
    %4698 = vmatpush1.msra.mxu0 0.0
    %4699 = vmatprep.subr.mxu0 0.0
    %4700 = vmatpush1.msra.mxu0 0.0
    %4701 = vmatprep.subr.mxu0 0.0
    %4702 = vmatpush1.msra.mxu0 0.0
    %4703 = vmatprep.subr.mxu0 0.0
    %4704 = vmatpush1.msra.mxu0 0.0
    %4705 = vmatprep.subr.mxu0 0.0
    %4706 = vmatpush1.msra.mxu0 0.0
    %4707 = vmatprep.subr.mxu0 0.0
    %4708 = vmatpush1.msra.mxu0 0.0
    %4709 = vmatprep.subr.mxu0 0.0
    %4710 = vmatpush1.msra.mxu0 0.0
    %4711 = vmatprep.subr.mxu0 0.0
    %4712 = vmatpush1.msra.mxu0 0.0
    %4713 = vmatprep.subr.mxu0 0.0
    %4714 = vmatpush1.msra.mxu0 0.0
    %4715 = vmatprep.subr.mxu0 0.0
    %4716 = vmatpush1.msra.mxu0 0.0
    %4717 = vmatprep.subr.mxu0 0.0
    %4718 = vmatpush1.msra.mxu0 0.0
    %4719 = vmatprep.subr.mxu0 0.0
    %4720 = vmatpush1.msra.mxu0 0.0
    %4721 = vmatprep.subr.mxu0 0.0
    %4722 = vmatpush1.msra.mxu0 0.0
    %4723 = vmatprep.subr.mxu0 0.0
    %4724 = vmatpush1.msra.mxu0 0.0
    %4725 = vmatprep.subr.mxu0 0.0
    %4726 = vmatpush1.msra.mxu0 0.0
    %4727 = vmatprep.subr.mxu0 0.0
    %4728 = vmatpush1.msra.mxu0 0.0
    %4729 = vmatprep.subr.mxu0 0.0
    %4730 = vmatpush1.msra.mxu0 0.0
    %4731 = vmatprep.subr.mxu0 0.0
    %4732 = vmatpush1.msra.mxu0 0.0
    %4733 = vmatprep.mubr.f32.mxu0 0.0
    %v4734 = vand.u32 %v4377, 4294901760
    %v4735 = vsub.f32 %v4377, %v4734
    %v4736 = vand.u32 %v4735, 4294901760
    %4737 = vmatmul.mubr.f32.gmra.mrb[0].mxu0 %v4736
    %v4738 = vpop.f32.mrb[0].mxu0
    %v4739 = vadd.f32 %v4658, %v4738
    %v4740 = vpop.f32.mrb[0].mxu0
    %4741 = vdwg.mxu0
    %4742 = vmatprep.subr.mxu0 0.0
    %v4743 = vand.u32 %v3818, 4294901760
    %v4744 = vsub.f32 %v3818, %v4743
    %v4745 = vand.u32 %v4744, 4294901760
    %4746 = vmatpush1.msra.mxu0 %v4745
    %4747 = vmatprep.subr.mxu0 0.0
    %v4748 = vand.u32 %v3819, 4294901760
    %v4749 = vsub.f32 %v3819, %v4748
    %v4750 = vand.u32 %v4749, 4294901760
    %4751 = vmatpush1.msra.mxu0 %v4750
    %4752 = vmatprep.subr.mxu0 0.0
    %v4753 = vand.u32 %v3820, 4294901760
    %v4754 = vsub.f32 %v3820, %v4753
    %v4755 = vand.u32 %v4754, 4294901760
    %4756 = vmatpush1.msra.mxu0 %v4755
    %4757 = vmatprep.subr.mxu0 0.0
    %v4758 = vand.u32 %v3821, 4294901760
    %v4759 = vsub.f32 %v3821, %v4758
    %v4760 = vand.u32 %v4759, 4294901760
    %4761 = vmatpush1.msra.mxu0 %v4760
    %4762 = vmatprep.subr.mxu0 0.0
    %v4763 = vand.u32 %v3822, 4294901760
    %v4764 = vsub.f32 %v3822, %v4763
    %v4765 = vand.u32 %v4764, 4294901760
    %4766 = vmatpush1.msra.mxu0 %v4765
    %4767 = vmatprep.subr.mxu0 0.0
    %v4768 = vand.u32 %v3823, 4294901760
    %v4769 = vsub.f32 %v3823, %v4768
    %v4770 = vand.u32 %v4769, 4294901760
    %4771 = vmatpush1.msra.mxu0 %v4770
    %4772 = vmatprep.subr.mxu0 0.0
    %v4773 = vand.u32 %v3824, 4294901760
    %v4774 = vsub.f32 %v3824, %v4773
    %v4775 = vand.u32 %v4774, 4294901760
    %4776 = vmatpush1.msra.mxu0 %v4775
    %4777 = vmatprep.subr.mxu0 0.0
    %v4778 = vand.u32 %v3825, 4294901760
    %v4779 = vsub.f32 %v3825, %v4778
    %v4780 = vand.u32 %v4779, 4294901760
    %4781 = vmatpush1.msra.mxu0 %v4780
    %4782 = vmatprep.subr.mxu0 0.0
    %4783 = vmatpush1.msra.mxu0 0.0
    %4784 = vmatprep.subr.mxu0 0.0
    %4785 = vmatpush1.msra.mxu0 0.0
    %4786 = vmatprep.subr.mxu0 0.0
    %4787 = vmatpush1.msra.mxu0 0.0
    %4788 = vmatprep.subr.mxu0 0.0
    %4789 = vmatpush1.msra.mxu0 0.0
    %4790 = vmatprep.subr.mxu0 0.0
    %4791 = vmatpush1.msra.mxu0 0.0
    %4792 = vmatprep.subr.mxu0 0.0
    %4793 = vmatpush1.msra.mxu0 0.0
    %4794 = vmatprep.subr.mxu0 0.0
    %4795 = vmatpush1.msra.mxu0 0.0
    %4796 = vmatprep.subr.mxu0 0.0
    %4797 = vmatpush1.msra.mxu0 0.0
    %4798 = vmatprep.subr.mxu0 0.0
    %4799 = vmatpush1.msra.mxu0 0.0
    %4800 = vmatprep.subr.mxu0 0.0
    %4801 = vmatpush1.msra.mxu0 0.0
    %4802 = vmatprep.subr.mxu0 0.0
    %4803 = vmatpush1.msra.mxu0 0.0
    %4804 = vmatprep.subr.mxu0 0.0
    %4805 = vmatpush1.msra.mxu0 0.0
    %4806 = vmatprep.subr.mxu0 0.0
    %4807 = vmatpush1.msra.mxu0 0.0
    %4808 = vmatprep.subr.mxu0 0.0
    %4809 = vmatpush1.msra.mxu0 0.0
    %4810 = vmatprep.subr.mxu0 0.0
    %4811 = vmatpush1.msra.mxu0 0.0
    %4812 = vmatprep.subr.mxu0 0.0
    %4813 = vmatpush1.msra.mxu0 0.0
    %4814 = vmatprep.subr.mxu0 0.0
    %4815 = vmatpush1.msra.mxu0 0.0
    %4816 = vmatprep.subr.mxu0 0.0
    %4817 = vmatpush1.msra.mxu0 0.0
    %4818 = vmatprep.subr.mxu0 0.0
    %4819 = vmatpush1.msra.mxu0 0.0
    %4820 = vmatprep.subr.mxu0 0.0
    %4821 = vmatpush1.msra.mxu0 0.0
    %4822 = vmatprep.subr.mxu0 0.0
    %4823 = vmatpush1.msra.mxu0 0.0
    %4824 = vmatprep.subr.mxu0 0.0
    %4825 = vmatpush1.msra.mxu0 0.0
    %4826 = vmatprep.subr.mxu0 0.0
    %4827 = vmatpush1.msra.mxu0 0.0
    %4828 = vmatprep.subr.mxu0 0.0
    %4829 = vmatpush1.msra.mxu0 0.0
    %4830 = vmatprep.mubr.f32.mxu0 0.0
    %v4831 = vand.u32 %v4377, 4294901760
    %4832 = vmatmul.mubr.f32.gmra.mrb[0].mxu0 %v4831
    %v4833 = vpop.f32.mrb[0].mxu0
    %v4834 = vadd.f32 %v4739, %v4833
    %v4835 = vpop.f32.mrb[0].mxu0
    %4836 = vdwg.mxu0
    %4837 = vmatprep.subr.mxu0 0.0
    %v4838 = vand.u32 %v3818, 4294901760
    %4839 = vmatpush1.msra.mxu0 %v4838
    %4840 = vmatprep.subr.mxu0 0.0
    %v4841 = vand.u32 %v3819, 4294901760
    %4842 = vmatpush1.msra.mxu0 %v4841
    %4843 = vmatprep.subr.mxu0 0.0
    %v4844 = vand.u32 %v3820, 4294901760
    %4845 = vmatpush1.msra.mxu0 %v4844
    %4846 = vmatprep.subr.mxu0 0.0
    %v4847 = vand.u32 %v3821, 4294901760
    %4848 = vmatpush1.msra.mxu0 %v4847
    %4849 = vmatprep.subr.mxu0 0.0
    %v4850 = vand.u32 %v3822, 4294901760
    %4851 = vmatpush1.msra.mxu0 %v4850
    %4852 = vmatprep.subr.mxu0 0.0
    %v4853 = vand.u32 %v3823, 4294901760
    %4854 = vmatpush1.msra.mxu0 %v4853
    %4855 = vmatprep.subr.mxu0 0.0
    %v4856 = vand.u32 %v3824, 4294901760
    %4857 = vmatpush1.msra.mxu0 %v4856
    %4858 = vmatprep.subr.mxu0 0.0
    %v4859 = vand.u32 %v3825, 4294901760
    %4860 = vmatpush1.msra.mxu0 %v4859
    %4861 = vmatprep.subr.mxu0 0.0
    %4862 = vmatpush1.msra.mxu0 0.0
    %4863 = vmatprep.subr.mxu0 0.0
    %4864 = vmatpush1.msra.mxu0 0.0
    %4865 = vmatprep.subr.mxu0 0.0
    %4866 = vmatpush1.msra.mxu0 0.0
    %4867 = vmatprep.subr.mxu0 0.0
    %4868 = vmatpush1.msra.mxu0 0.0
    %4869 = vmatprep.subr.mxu0 0.0
    %4870 = vmatpush1.msra.mxu0 0.0
    %4871 = vmatprep.subr.mxu0 0.0
    %4872 = vmatpush1.msra.mxu0 0.0
    %4873 = vmatprep.subr.mxu0 0.0
    %4874 = vmatpush1.msra.mxu0 0.0
    %4875 = vmatprep.subr.mxu0 0.0
    %4876 = vmatpush1.msra.mxu0 0.0
    %4877 = vmatprep.subr.mxu0 0.0
    %4878 = vmatpush1.msra.mxu0 0.0
    %4879 = vmatprep.subr.mxu0 0.0
    %4880 = vmatpush1.msra.mxu0 0.0
    %4881 = vmatprep.subr.mxu0 0.0
    %4882 = vmatpush1.msra.mxu0 0.0
    %4883 = vmatprep.subr.mxu0 0.0
    %4884 = vmatpush1.msra.mxu0 0.0
    %4885 = vmatprep.subr.mxu0 0.0
    %4886 = vmatpush1.msra.mxu0 0.0
    %4887 = vmatprep.subr.mxu0 0.0
    %4888 = vmatpush1.msra.mxu0 0.0
    %4889 = vmatprep.subr.mxu0 0.0
    %4890 = vmatpush1.msra.mxu0 0.0
    %4891 = vmatprep.subr.mxu0 0.0
    %4892 = vmatpush1.msra.mxu0 0.0
    %4893 = vmatprep.subr.mxu0 0.0
    %4894 = vmatpush1.msra.mxu0 0.0
    %4895 = vmatprep.subr.mxu0 0.0
    %4896 = vmatpush1.msra.mxu0 0.0
    %4897 = vmatprep.subr.mxu0 0.0
    %4898 = vmatpush1.msra.mxu0 0.0
    %4899 = vmatprep.subr.mxu0 0.0
    %4900 = vmatpush1.msra.mxu0 0.0
    %4901 = vmatprep.subr.mxu0 0.0
    %4902 = vmatpush1.msra.mxu0 0.0
    %4903 = vmatprep.subr.mxu0 0.0
    %4904 = vmatpush1.msra.mxu0 0.0
    %4905 = vmatprep.subr.mxu0 0.0
    %4906 = vmatpush1.msra.mxu0 0.0
    %4907 = vmatprep.subr.mxu0 0.0
    %4908 = vmatpush1.msra.mxu0 0.0
    %4909 = vmatprep.mubr.f32.mxu0 0.0
    %v4910 = vand.u32 %v4377, 4294901760
    %4911 = vmatmul.mubr.f32.gmra.mrb[0].mxu0 %v4910
    %v4912 = vpop.f32.mrb[0].mxu0
    %v4913 = vadd.f32 %v4834, %v4912
    %v4914 = vpop.f32.mrb[0].mxu0
    %4915 = vdwg.mxu0
    %v4916 = vmax.f32 %v4913, 0.0
    %v4917 = vadd.f32 %v3806, %v4916
    %v4918 = vld [vmem:[#allocation4 + $0x100] sm:$0x1]
    %v4919 = vld [vmem:[#allocation4 + $0x108] sm:$0x1]
    %v4920 = vlaneseq
    %v4921 = vshrl.u32 %v4920, 7
    %v4922 = vsub.s32 0, %v4921
    %v4923 = vrot.slane %v4918, %v4922
    %v4924 = vmul.f32 %v536, %v4923
    %v4925 = vmul.f32 %v1104, %v4923
    %v4926 = vmul.f32 %v1645, %v4923
    %v4927 = vmul.f32 %v2187, %v4923
    %v4928 = vmul.f32 %v2728, %v4923
    %v4929 = vsel %vm563, %v4924, 0.0
    %4930 = vadd.xlane.f32.xlu0 %v4929
    %v4931 = vpop.xlane.xlu0 %4930
    %v4932 = vsel %vm563, %v4925, 0.0
    %4933 = vadd.xlane.f32.xlu0 %v4932
    %v4934 = vpop.xlane.xlu0 %4933
    %v4935 = vsel %vm563, %v4926, 0.0
    %4936 = vadd.xlane.f32.xlu0 %v4935
    %v4937 = vpop.xlane.xlu0 %4936
    %v4938 = vsel %vm563, %v4927, 0.0
    %4939 = vadd.xlane.f32.xlu0 %v4938
    %v4940 = vpop.xlane.xlu0 %4939
    %v4941 = vsel %vm563, %v4928, 0.0
    %4942 = vadd.xlane.f32.xlu0 %v4941
    %v4943 = vpop.xlane.xlu0 %4942
    %v4944 = vlaneseq
    %v4945 = vshrl.u32 %v4944, 7
    %v4946 = vsub.s32 0, %v4945
    %v4947 = vrot.slane %v4919, %v4946
    %v4948 = vadd.f32 %v4931, %v4947
    %v4949 = vadd.f32 %v4934, %v4947
    %v4950 = vadd.f32 %v4937, %v4947
    %v4951 = vadd.f32 %v4940, %v4947
    %v4952 = vadd.f32 %v4943, %v4947
    %v4953 = vsub.f32 %v536, %v4917
    %v4954 = vsub.f32 %v1104, %v4917
    %v4955 = vsub.f32 %v1645, %v4917
    %v4956 = vsub.f32 %v2187, %v4917
    %v4957 = vsub.f32 %v2728, %v4917
    %v4958 = vmul.f32 %v4953, %v4953
    %v4959 = vmul.f32 %v4954, %v4954
    %v4960 = vmul.f32 %v4955, %v4955
    %v4961 = vmul.f32 %v4956, %v4956
    %v4962 = vmul.f32 %v4957, %v4957
    %v4963 = vsel %vm563, %v4958, 0.0
    %4964 = vadd.xlane.f32.xlu0 %v4963
    %v4965 = vpop.xlane.xlu0 %4964
    %v4966 = vsel %vm563, %v4959, 0.0
    %4967 = vadd.xlane.f32.xlu0 %v4966
    %v4968 = vpop.xlane.xlu0 %4967
    %v4969 = vsel %vm563, %v4960, 0.0
    %4970 = vadd.xlane.f32.xlu0 %v4969
    %v4971 = vpop.xlane.xlu0 %4970
    %v4972 = vsel %vm563, %v4961, 0.0
    %4973 = vadd.xlane.f32.xlu0 %v4972
    %v4974 = vpop.xlane.xlu0 %4973
    %v4975 = vsel %vm563, %v4962, 0.0
    %4976 = vadd.xlane.f32.xlu0 %v4975
    %v4977 = vpop.xlane.xlu0 %4976
    %v4978 = vrot.slane %v4965, 4
    %v4979 = vadd.f32 %v4965, %v4978
    %v4980 = vrot.slane %v4979, 2
    %v4981 = vadd.f32 %v4979, %v4980
    %v4982 = vrot.slane %v4981, 1
    %v4983 = vadd.f32 %v4981, %v4982
    %v4984 = vrot.slane %v4968, 4
    %v4985 = vadd.f32 %v4968, %v4984
    %v4986 = vrot.slane %v4985, 2
    %v4987 = vadd.f32 %v4985, %v4986
    %v4988 = vrot.slane %v4987, 1
    %v4989 = vadd.f32 %v4987, %v4988
    %v4990 = vrot.slane %v4971, 4
    %v4991 = vadd.f32 %v4971, %v4990
    %v4992 = vrot.slane %v4991, 2
    %v4993 = vadd.f32 %v4991, %v4992
    %v4994 = vrot.slane %v4993, 1
    %v4995 = vadd.f32 %v4993, %v4994
    %v4996 = vrot.slane %v4974, 4
    %v4997 = vadd.f32 %v4974, %v4996
    %v4998 = vrot.slane %v4997, 2
    %v4999 = vadd.f32 %v4997, %v4998
    %v5000 = vrot.slane %v4999, 1
    %v5001 = vadd.f32 %v4999, %v5000
    %v5002 = vrot.slane %v4977, 4
    %v5003 = vadd.f32 %v4977, %v5002
    %v5004 = vrot.slane %v5003, 2
    %v5005 = vadd.f32 %v5003, %v5004
    %v5006 = vrot.slane %v5005, 1
    %v5007 = vadd.f32 %v5005, %v5006
    %v5008 = vrsqrt.pop %v4983
    %v5009 = vmul.f32 %v4983, %v5008
    %vm5010 = vcmp.eq.f32.partialorder %v4983, inf
    %v5011 = vsel %vm5010, %v4983, %v5009
    %vm5012 = vcmp.eq.f32.partialorder %v4983, 0.0
    %v5013 = vand.u32 %v4983, 2147483648
    %v5014 = vsel %vm5012, %v5013, %v5011
    %v5015 = vrsqrt.pop %v4989
    %v5016 = vmul.f32 %v4989, %v5015
    %vm5017 = vcmp.eq.f32.partialorder %v4989, inf
    %v5018 = vsel %vm5017, %v4989, %v5016
    %vm5019 = vcmp.eq.f32.partialorder %v4989, 0.0
    %v5020 = vand.u32 %v4989, 2147483648
    %v5021 = vsel %vm5019, %v5020, %v5018
    %v5022 = vrsqrt.pop %v4995
    %v5023 = vmul.f32 %v4995, %v5022
    %vm5024 = vcmp.eq.f32.partialorder %v4995, inf
    %v5025 = vsel %vm5024, %v4995, %v5023
    %vm5026 = vcmp.eq.f32.partialorder %v4995, 0.0
    %v5027 = vand.u32 %v4995, 2147483648
    %v5028 = vsel %vm5026, %v5027, %v5025
    %v5029 = vrsqrt.pop %v5001
    %v5030 = vmul.f32 %v5001, %v5029
    %vm5031 = vcmp.eq.f32.partialorder %v5001, inf
    %v5032 = vsel %vm5031, %v5001, %v5030
    %vm5033 = vcmp.eq.f32.partialorder %v5001, 0.0
    %v5034 = vand.u32 %v5001, 2147483648
    %v5035 = vsel %vm5033, %v5034, %v5032
    %v5036 = vrsqrt.pop %v5007
    %v5037 = vmul.f32 %v5007, %v5036
    %vm5038 = vcmp.eq.f32.partialorder %v5007, inf
    %v5039 = vsel %vm5038, %v5007, %v5037
    %vm5040 = vcmp.eq.f32.partialorder %v5007, 0.0
    %v5041 = vand.u32 %v5007, 2147483648
    %v5042 = vsel %vm5040, %v5041, %v5039
    %v5043 = vmul.f32 %v4948, %v5014
    %v5044 = vmul.f32 %v4949, %v5021
    %v5045 = vmul.f32 %v4950, %v5028
    %v5046 = vmul.f32 %v4951, %v5035
    %v5047 = vmul.f32 %v4952, %v5042
    %v5048 = vsub.f32 0.0, %v5043
    %v5049 = vsub.f32 0.0, %v5044
    %v5050 = vsub.f32 0.0, %v5045
    %v5051 = vsub.f32 0.0, %v5046
    %v5052 = vsub.f32 0.0, %v5047
    %v5053 = vmul.f32 %v5048, 1.442695
    %v5054 = vpow.pop %v5053
    %v5055 = vmul.f32 %v5049, 1.442695
    %v5056 = vpow.pop %v5055
    %v5057 = vmul.f32 %v5050, 1.442695
    %v5058 = vpow.pop %v5057
    %v5059 = vmul.f32 %v5051, 1.442695
    %v5060 = vpow.pop %v5059
    %v5061 = vmul.f32 %v5052, 1.442695
    %v5062 = vpow.pop %v5061
    %v5063 = vadd.f32 %v5054, 1.0
    %v5064 = vadd.f32 %v5056, 1.0
    %v5065 = vadd.f32 %v5058, 1.0
    %v5066 = vadd.f32 %v5060, 1.0
    %v5067 = vadd.f32 %v5062, 1.0
    %v5068 = vrcp.pop %v5063
    %v5069 = vmul.f32 1.0, %v5068
    %v5070 = vrcp.pop %v5064
    %v5071 = vmul.f32 1.0, %v5070
    %v5072 = vrcp.pop %v5065
    %v5073 = vmul.f32 1.0, %v5072
    %v5074 = vrcp.pop %v5066
    %v5075 = vmul.f32 1.0, %v5074
    %v5076 = vrcp.pop %v5067
    %v5077 = vmul.f32 1.0, %v5076
    %v5078 = vsub.f32 1.0, %v5069
    %v5079 = vsub.f32 1.0, %v5071
    %v5080 = vsub.f32 1.0, %v5073
    %v5081 = vsub.f32 1.0, %v5075
    %v5082 = vsub.f32 1.0, %v5077
    %5084 = vset.pattern.permute.xlu0 0
    %5085 = vperm.xlu0 %5084, %v5078
    %v5086 = vpop.permute.xlu0 %5085
    %5089 = vset.pattern.permute.xlu0 0
    %5090 = vperm.xlu0 %5089, %v5079
    %v5091 = vpop.permute.xlu0 %5090
    %5094 = vset.pattern.permute.xlu0 0
    %5095 = vperm.xlu0 %5094, %v5080
    %v5096 = vpop.permute.xlu0 %5095
    %5099 = vset.pattern.permute.xlu0 0
    %5100 = vperm.xlu0 %5099, %v5081
    %v5101 = vpop.permute.xlu0 %5100
    %5104 = vset.pattern.permute.xlu0 0
    %5105 = vperm.xlu0 %5104, %v5082
    %v5106 = vpop.permute.xlu0 %5105
    %v5108 = vmul.f32 %v5086, %v536
    %v5109 = vmul.f32 %v5091, %v1104
    %v5110 = vmul.f32 %v5096, %v1645
    %v5111 = vmul.f32 %v5101, %v2187
    %v5112 = vmul.f32 %v5106, %v2728
    %v5113 = vadd.f32 %v5108, %v5109
    %v5114 = vadd.f32 %v5113, %v5110
    %v5115 = vadd.f32 %v5114, %v5111
    %v5116 = vadd.f32 %v5115, %v5112
    %v5117 = vadd.f32 %v4917, %v5116
    %v5119 = vsel %vm563, %v5117, 0
    %5121 = vmatprep.subr.mxu0 0.0
    %v5122 = vand.u32 %v2730, 4294901760
    %5123 = vmatpush1.msra.mxu0 %v5122
    %5124 = vmatprep.subr.mxu0 0.0
    %v5125 = vand.u32 %v2731, 4294901760
    %5126 = vmatpush1.msra.mxu0 %v5125
    %5127 = vmatprep.subr.mxu0 0.0
    %v5128 = vand.u32 %v2732, 4294901760
    %5129 = vmatpush1.msra.mxu0 %v5128
    %5130 = vmatprep.subr.mxu0 0.0
    %v5131 = vand.u32 %v2733, 4294901760
    %5132 = vmatpush1.msra.mxu0 %v5131
    %5133 = vmatprep.subr.mxu0 0.0
    %v5134 = vand.u32 %v2734, 4294901760
    %5135 = vmatpush1.msra.mxu0 %v5134
    %5136 = vmatprep.subr.mxu0 0.0
    %v5137 = vand.u32 %v2735, 4294901760
    %5138 = vmatpush1.msra.mxu0 %v5137
    %5139 = vmatprep.subr.mxu0 0.0
    %v5140 = vand.u32 %v2736, 4294901760
    %5141 = vmatpush1.msra.mxu0 %v5140
    %5142 = vmatprep.subr.mxu0 0.0
    %v5143 = vand.u32 %v2737, 4294901760
    %5144 = vmatpush1.msra.mxu0 %v5143
    %5145 = vmatprep.subr.mxu0 0.0
    %5146 = vmatpush1.msra.mxu0 0.0
    %5147 = vmatprep.subr.mxu0 0.0
    %5148 = vmatpush1.msra.mxu0 0.0
    %5149 = vmatprep.subr.mxu0 0.0
    %5150 = vmatpush1.msra.mxu0 0.0
    %5151 = vmatprep.subr.mxu0 0.0
    %5152 = vmatpush1.msra.mxu0 0.0
    %5153 = vmatprep.subr.mxu0 0.0
    %5154 = vmatpush1.msra.mxu0 0.0
    %5155 = vmatprep.subr.mxu0 0.0
    %5156 = vmatpush1.msra.mxu0 0.0
    %5157 = vmatprep.subr.mxu0 0.0
    %5158 = vmatpush1.msra.mxu0 0.0
    %5159 = vmatprep.subr.mxu0 0.0
    %5160 = vmatpush1.msra.mxu0 0.0
    %5161 = vmatprep.subr.mxu0 0.0
    %5162 = vmatpush1.msra.mxu0 0.0
    %5163 = vmatprep.subr.mxu0 0.0
    %5164 = vmatpush1.msra.mxu0 0.0
    %5165 = vmatprep.subr.mxu0 0.0
    %5166 = vmatpush1.msra.mxu0 0.0
    %5167 = vmatprep.subr.mxu0 0.0
    %5168 = vmatpush1.msra.mxu0 0.0
    %5169 = vmatprep.subr.mxu0 0.0
    %5170 = vmatpush1.msra.mxu0 0.0
    %5171 = vmatprep.subr.mxu0 0.0
    %5172 = vmatpush1.msra.mxu0 0.0
    %5173 = vmatprep.subr.mxu0 0.0
    %5174 = vmatpush1.msra.mxu0 0.0
    %5175 = vmatprep.subr.mxu0 0.0
    %5176 = vmatpush1.msra.mxu0 0.0
    %5177 = vmatprep.subr.mxu0 0.0
    %5178 = vmatpush1.msra.mxu0 0.0
    %5179 = vmatprep.subr.mxu0 0.0
    %5180 = vmatpush1.msra.mxu0 0.0
    %5181 = vmatprep.subr.mxu0 0.0
    %5182 = vmatpush1.msra.mxu0 0.0
    %5183 = vmatprep.subr.mxu0 0.0
    %5184 = vmatpush1.msra.mxu0 0.0
    %5185 = vmatprep.subr.mxu0 0.0
    %5186 = vmatpush1.msra.mxu0 0.0
    %5187 = vmatprep.subr.mxu0 0.0
    %5188 = vmatpush1.msra.mxu0 0.0
    %5189 = vmatprep.subr.mxu0 0.0
    %5190 = vmatpush1.msra.mxu0 0.0
    %5191 = vmatprep.subr.mxu0 0.0
    %5192 = vmatpush1.msra.mxu0 0.0
    %5193 = vmatprep.mubr.f32.mxu0 0.0
    %v5194 = vand.u32 %v5119, 4294901760
    %v5195 = vsub.f32 %v5119, %v5194
    %v5196 = vand.u32 %v5195, 4294901760
    %v5197 = vsub.f32 %v5195, %v5196
    %v5198 = vand.u32 %v5197, 4294901760
    %5199 = vmatmul.mubr.f32.gmra.mrb[0].mxu0 %v5198
    %v5200 = vpop.f32.mrb[0].mxu0
    %v5201 = vadd.f32 %v2742, %v5200
    %v5202 = vpop.f32.mrb[0].mxu0
    %5203 = vdwg.mxu0
    %5204 = vmatprep.subr.mxu0 0.0
    %v5205 = vand.u32 %v2730, 4294901760
    %v5206 = vsub.f32 %v2730, %v5205
    %v5207 = vand.u32 %v5206, 4294901760
    %v5208 = vsub.f32 %v5206, %v5207
    %v5209 = vand.u32 %v5208, 4294901760
    %5210 = vmatpush1.msra.mxu0 %v5209
    %5211 = vmatprep.subr.mxu0 0.0
    %v5212 = vand.u32 %v2731, 4294901760
    %v5213 = vsub.f32 %v2731, %v5212
    %v5214 = vand.u32 %v5213, 4294901760
    %v5215 = vsub.f32 %v5213, %v5214
    %v5216 = vand.u32 %v5215, 4294901760
    %5217 = vmatpush1.msra.mxu0 %v5216
    %5218 = vmatprep.subr.mxu0 0.0
    %v5219 = vand.u32 %v2732, 4294901760
    %v5220 = vsub.f32 %v2732, %v5219
    %v5221 = vand.u32 %v5220, 4294901760
    %v5222 = vsub.f32 %v5220, %v5221
    %v5223 = vand.u32 %v5222, 4294901760
    %5224 = vmatpush1.msra.mxu0 %v5223
    %5225 = vmatprep.subr.mxu0 0.0
    %v5226 = vand.u32 %v2733, 4294901760
    %v5227 = vsub.f32 %v2733, %v5226
    %v5228 = vand.u32 %v5227, 4294901760
    %v5229 = vsub.f32 %v5227, %v5228
    %v5230 = vand.u32 %v5229, 4294901760
    %5231 = vmatpush1.msra.mxu0 %v5230
    %5232 = vmatprep.subr.mxu0 0.0
    %v5233 = vand.u32 %v2734, 4294901760
    %v5234 = vsub.f32 %v2734, %v5233
    %v5235 = vand.u32 %v5234, 4294901760
    %v5236 = vsub.f32 %v5234, %v5235
    %v5237 = vand.u32 %v5236, 4294901760
    %5238 = vmatpush1.msra.mxu0 %v5237
    %5239 = vmatprep.subr.mxu0 0.0
    %v5240 = vand.u32 %v2735, 4294901760
    %v5241 = vsub.f32 %v2735, %v5240
    %v5242 = vand.u32 %v5241, 4294901760
    %v5243 = vsub.f32 %v5241, %v5242
    %v5244 = vand.u32 %v5243, 4294901760
    %5245 = vmatpush1.msra.mxu0 %v5244
    %5246 = vmatprep.subr.mxu0 0.0
    %v5247 = vand.u32 %v2736, 4294901760
    %v5248 = vsub.f32 %v2736, %v5247
    %v5249 = vand.u32 %v5248, 4294901760
    %v5250 = vsub.f32 %v5248, %v5249
    %v5251 = vand.u32 %v5250, 4294901760
    %5252 = vmatpush1.msra.mxu0 %v5251
    %5253 = vmatprep.subr.mxu0 0.0
    %v5254 = vand.u32 %v2737, 4294901760
    %v5255 = vsub.f32 %v2737, %v5254
    %v5256 = vand.u32 %v5255, 4294901760
    %v5257 = vsub.f32 %v5255, %v5256
    %v5258 = vand.u32 %v5257, 4294901760
    %5259 = vmatpush1.msra.mxu0 %v5258
    %5260 = vmatprep.subr.mxu0 0.0
    %5261 = vmatpush1.msra.mxu0 0.0
    %5262 = vmatprep.subr.mxu0 0.0
    %5263 = vmatpush1.msra.mxu0 0.0
    %5264 = vmatprep.subr.mxu0 0.0
    %5265 = vmatpush1.msra.mxu0 0.0
    %5266 = vmatprep.subr.mxu0 0.0
    %5267 = vmatpush1.msra.mxu0 0.0
    %5268 = vmatprep.subr.mxu0 0.0
    %5269 = vmatpush1.msra.mxu0 0.0
    %5270 = vmatprep.subr.mxu0 0.0
    %5271 = vmatpush1.msra.mxu0 0.0
    %5272 = vmatprep.subr.mxu0 0.0
    %5273 = vmatpush1.msra.mxu0 0.0
    %5274 = vmatprep.subr.mxu0 0.0
    %5275 = vmatpush1.msra.mxu0 0.0
    %5276 = vmatprep.subr.mxu0 0.0
    %5277 = vmatpush1.msra.mxu0 0.0
    %5278 = vmatprep.subr.mxu0 0.0
    %5279 = vmatpush1.msra.mxu0 0.0
    %5280 = vmatprep.subr.mxu0 0.0
    %5281 = vmatpush1.msra.mxu0 0.0
    %5282 = vmatprep.subr.mxu0 0.0
    %5283 = vmatpush1.msra.mxu0 0.0
    %5284 = vmatprep.subr.mxu0 0.0
    %5285 = vmatpush1.msra.mxu0 0.0
    %5286 = vmatprep.subr.mxu0 0.0
    %5287 = vmatpush1.msra.mxu0 0.0
    %5288 = vmatprep.subr.mxu0 0.0
    %5289 = vmatpush1.msra.mxu0 0.0
    %5290 = vmatprep.subr.mxu0 0.0
    %5291 = vmatpush1.msra.mxu0 0.0
    %5292 = vmatprep.subr.mxu0 0.0
    %5293 = vmatpush1.msra.mxu0 0.0
    %5294 = vmatprep.subr.mxu0 0.0
    %5295 = vmatpush1.msra.mxu0 0.0
    %5296 = vmatprep.subr.mxu0 0.0
    %5297 = vmatpush1.msra.mxu0 0.0
    %5298 = vmatprep.subr.mxu0 0.0
    %5299 = vmatpush1.msra.mxu0 0.0
    %5300 = vmatprep.subr.mxu0 0.0
    %5301 = vmatpush1.msra.mxu0 0.0
    %5302 = vmatprep.subr.mxu0 0.0
    %5303 = vmatpush1.msra.mxu0 0.0
    %5304 = vmatprep.subr.mxu0 0.0
    %5305 = vmatpush1.msra.mxu0 0.0
    %5306 = vmatprep.subr.mxu0 0.0
    %5307 = vmatpush1.msra.mxu0 0.0
    %5308 = vmatprep.mubr.f32.mxu0 0.0
    %v5309 = vand.u32 %v5119, 4294901760
    %5310 = vmatmul.mubr.f32.gmra.mrb[0].mxu0 %v5309
    %v5311 = vpop.f32.mrb[0].mxu0
    %v5312 = vadd.f32 %v5201, %v5311
    %v5313 = vpop.f32.mrb[0].mxu0
    %5314 = vdwg.mxu0
    %5315 = vmatprep.subr.mxu0 0.0
    %v5316 = vand.u32 %v2730, 4294901760
    %v5317 = vsub.f32 %v2730, %v5316
    %5318 = vmatpush1.msra.mxu0 %v5317
    %5319 = vmatprep.subr.mxu0 0.0
    %v5320 = vand.u32 %v2731, 4294901760
    %v5321 = vsub.f32 %v2731, %v5320
    %5322 = vmatpush1.msra.mxu0 %v5321
    %5323 = vmatprep.subr.mxu0 0.0
    %v5324 = vand.u32 %v2732, 4294901760
    %v5325 = vsub.f32 %v2732, %v5324
    %5326 = vmatpush1.msra.mxu0 %v5325
    %5327 = vmatprep.subr.mxu0 0.0
    %v5328 = vand.u32 %v2733, 4294901760
    %v5329 = vsub.f32 %v2733, %v5328
    %5330 = vmatpush1.msra.mxu0 %v5329
    %5331 = vmatprep.subr.mxu0 0.0
    %v5332 = vand.u32 %v2734, 4294901760
    %v5333 = vsub.f32 %v2734, %v5332
    %5334 = vmatpush1.msra.mxu0 %v5333
    %5335 = vmatprep.subr.mxu0 0.0
    %v5336 = vand.u32 %v2735, 4294901760
    %v5337 = vsub.f32 %v2735, %v5336
    %5338 = vmatpush1.msra.mxu0 %v5337
    %5339 = vmatprep.subr.mxu0 0.0
    %v5340 = vand.u32 %v2736, 4294901760
    %v5341 = vsub.f32 %v2736, %v5340
    %5342 = vmatpush1.msra.mxu0 %v5341
    %5343 = vmatprep.subr.mxu0 0.0
    %v5344 = vand.u32 %v2737, 4294901760
    %v5345 = vsub.f32 %v2737, %v5344
    %5346 = vmatpush1.msra.mxu0 %v5345
    %5347 = vmatprep.subr.mxu0 0.0
    %5348 = vmatpush1.msra.mxu0 0.0
    %5349 = vmatprep.subr.mxu0 0.0
    %5350 = vmatpush1.msra.mxu0 0.0
    %5351 = vmatprep.subr.mxu0 0.0
    %5352 = vmatpush1.msra.mxu0 0.0
    %5353 = vmatprep.subr.mxu0 0.0
    %5354 = vmatpush1.msra.mxu0 0.0
    %5355 = vmatprep.subr.mxu0 0.0
    %5356 = vmatpush1.msra.mxu0 0.0
    %5357 = vmatprep.subr.mxu0 0.0
    %5358 = vmatpush1.msra.mxu0 0.0
    %5359 = vmatprep.subr.mxu0 0.0
    %5360 = vmatpush1.msra.mxu0 0.0
    %5361 = vmatprep.subr.mxu0 0.0
    %5362 = vmatpush1.msra.mxu0 0.0
    %5363 = vmatprep.subr.mxu0 0.0
    %5364 = vmatpush1.msra.mxu0 0.0
    %5365 = vmatprep.subr.mxu0 0.0
    %5366 = vmatpush1.msra.mxu0 0.0
    %5367 = vmatprep.subr.mxu0 0.0
    %5368 = vmatpush1.msra.mxu0 0.0
    %5369 = vmatprep.subr.mxu0 0.0
    %5370 = vmatpush1.msra.mxu0 0.0
    %5371 = vmatprep.subr.mxu0 0.0
    %5372 = vmatpush1.msra.mxu0 0.0
    %5373 = vmatprep.subr.mxu0 0.0
    %5374 = vmatpush1.msra.mxu0 0.0
    %5375 = vmatprep.subr.mxu0 0.0
    %5376 = vmatpush1.msra.mxu0 0.0
    %5377 = vmatprep.subr.mxu0 0.0
    %5378 = vmatpush1.msra.mxu0 0.0
    %5379 = vmatprep.subr.mxu0 0.0
    %5380 = vmatpush1.msra.mxu0 0.0
    %5381 = vmatprep.subr.mxu0 0.0
    %5382 = vmatpush1.msra.mxu0 0.0
    %5383 = vmatprep.subr.mxu0 0.0
    %5384 = vmatpush1.msra.mxu0 0.0
    %5385 = vmatprep.subr.mxu0 0.0
    %5386 = vmatpush1.msra.mxu0 0.0
    %5387 = vmatprep.subr.mxu0 0.0
    %5388 = vmatpush1.msra.mxu0 0.0
    %5389 = vmatprep.subr.mxu0 0.0
    %5390 = vmatpush1.msra.mxu0 0.0
    %5391 = vmatprep.subr.mxu0 0.0
    %5392 = vmatpush1.msra.mxu0 0.0
    %5393 = vmatprep.subr.mxu0 0.0
    %5394 = vmatpush1.msra.mxu0 0.0
    %5395 = vmatprep.mubr.f32.mxu0 0.0
    %v5396 = vand.u32 %v5119, 4294901760
    %v5397 = vsub.f32 %v5119, %v5396
    %5398 = vmatmul.mubr.f32.gmra.mrb[0].mxu0 %v5397
    %v5399 = vpop.f32.mrb[0].mxu0
    %v5400 = vadd.f32 %v5312, %v5399
    %v5401 = vpop.f32.mrb[0].mxu0
    %5402 = vdwg.mxu0
    %5403 = vmatprep.subr.mxu0 0.0
    %v5404 = vand.u32 %v2730, 4294901760
    %5405 = vmatpush1.msra.mxu0 %v5404
    %5406 = vmatprep.subr.mxu0 0.0
    %v5407 = vand.u32 %v2731, 4294901760
    %5408 = vmatpush1.msra.mxu0 %v5407
    %5409 = vmatprep.subr.mxu0 0.0
    %v5410 = vand.u32 %v2732, 4294901760
    %5411 = vmatpush1.msra.mxu0 %v5410
    %5412 = vmatprep.subr.mxu0 0.0
    %v5413 = vand.u32 %v2733, 4294901760
    %5414 = vmatpush1.msra.mxu0 %v5413
    %5415 = vmatprep.subr.mxu0 0.0
    %v5416 = vand.u32 %v2734, 4294901760
    %5417 = vmatpush1.msra.mxu0 %v5416
    %5418 = vmatprep.subr.mxu0 0.0
    %v5419 = vand.u32 %v2735, 4294901760
    %5420 = vmatpush1.msra.mxu0 %v5419
    %5421 = vmatprep.subr.mxu0 0.0
    %v5422 = vand.u32 %v2736, 4294901760
    %5423 = vmatpush1.msra.mxu0 %v5422
    %5424 = vmatprep.subr.mxu0 0.0
    %v5425 = vand.u32 %v2737, 4294901760
    %5426 = vmatpush1.msra.mxu0 %v5425
    %5427 = vmatprep.subr.mxu0 0.0
    %5428 = vmatpush1.msra.mxu0 0.0
    %5429 = vmatprep.subr.mxu0 0.0
    %5430 = vmatpush1.msra.mxu0 0.0
    %5431 = vmatprep.subr.mxu0 0.0
    %5432 = vmatpush1.msra.mxu0 0.0
    %5433 = vmatprep.subr.mxu0 0.0
    %5434 = vmatpush1.msra.mxu0 0.0
    %5435 = vmatprep.subr.mxu0 0.0
    %5436 = vmatpush1.msra.mxu0 0.0
    %5437 = vmatprep.subr.mxu0 0.0
    %5438 = vmatpush1.msra.mxu0 0.0
    %5439 = vmatprep.subr.mxu0 0.0
    %5440 = vmatpush1.msra.mxu0 0.0
    %5441 = vmatprep.subr.mxu0 0.0
    %5442 = vmatpush1.msra.mxu0 0.0
    %5443 = vmatprep.subr.mxu0 0.0
    %5444 = vmatpush1.msra.mxu0 0.0
    %5445 = vmatprep.subr.mxu0 0.0
    %5446 = vmatpush1.msra.mxu0 0.0
    %5447 = vmatprep.subr.mxu0 0.0
    %5448 = vmatpush1.msra.mxu0 0.0
    %5449 = vmatprep.subr.mxu0 0.0
    %5450 = vmatpush1.msra.mxu0 0.0
    %5451 = vmatprep.subr.mxu0 0.0
    %5452 = vmatpush1.msra.mxu0 0.0
    %5453 = vmatprep.subr.mxu0 0.0
    %5454 = vmatpush1.msra.mxu0 0.0
    %5455 = vmatprep.subr.mxu0 0.0
    %5456 = vmatpush1.msra.mxu0 0.0
    %5457 = vmatprep.subr.mxu0 0.0
    %5458 = vmatpush1.msra.mxu0 0.0
    %5459 = vmatprep.subr.mxu0 0.0
    %5460 = vmatpush1.msra.mxu0 0.0
    %5461 = vmatprep.subr.mxu0 0.0
    %5462 = vmatpush1.msra.mxu0 0.0
    %5463 = vmatprep.subr.mxu0 0.0
    %5464 = vmatpush1.msra.mxu0 0.0
    %5465 = vmatprep.subr.mxu0 0.0
    %5466 = vmatpush1.msra.mxu0 0.0
    %5467 = vmatprep.subr.mxu0 0.0
    %5468 = vmatpush1.msra.mxu0 0.0
    %5469 = vmatprep.subr.mxu0 0.0
    %5470 = vmatpush1.msra.mxu0 0.0
    %5471 = vmatprep.subr.mxu0 0.0
    %5472 = vmatpush1.msra.mxu0 0.0
    %5473 = vmatprep.subr.mxu0 0.0
    %5474 = vmatpush1.msra.mxu0 0.0
    %5475 = vmatprep.mubr.f32.mxu0 0.0
    %v5476 = vand.u32 %v5119, 4294901760
    %v5477 = vsub.f32 %v5119, %v5476
    %v5478 = vand.u32 %v5477, 4294901760
    %5479 = vmatmul.mubr.f32.gmra.mrb[0].mxu0 %v5478
    %v5480 = vpop.f32.mrb[0].mxu0
    %v5481 = vadd.f32 %v5400, %v5480
    %v5482 = vpop.f32.mrb[0].mxu0
    %5483 = vdwg.mxu0
    %5484 = vmatprep.subr.mxu0 0.0
    %v5485 = vand.u32 %v2730, 4294901760
    %v5486 = vsub.f32 %v2730, %v5485
    %v5487 = vand.u32 %v5486, 4294901760
    %5488 = vmatpush1.msra.mxu0 %v5487
    %5489 = vmatprep.subr.mxu0 0.0
    %v5490 = vand.u32 %v2731, 4294901760
    %v5491 = vsub.f32 %v2731, %v5490
    %v5492 = vand.u32 %v5491, 4294901760
    %5493 = vmatpush1.msra.mxu0 %v5492
    %5494 = vmatprep.subr.mxu0 0.0
    %v5495 = vand.u32 %v2732, 4294901760
    %v5496 = vsub.f32 %v2732, %v5495
    %v5497 = vand.u32 %v5496, 4294901760
    %5498 = vmatpush1.msra.mxu0 %v5497
    %5499 = vmatprep.subr.mxu0 0.0
    %v5500 = vand.u32 %v2733, 4294901760
    %v5501 = vsub.f32 %v2733, %v5500
    %v5502 = vand.u32 %v5501, 4294901760
    %5503 = vmatpush1.msra.mxu0 %v5502
    %5504 = vmatprep.subr.mxu0 0.0
    %v5505 = vand.u32 %v2734, 4294901760
    %v5506 = vsub.f32 %v2734, %v5505
    %v5507 = vand.u32 %v5506, 4294901760
    %5508 = vmatpush1.msra.mxu0 %v5507
    %5509 = vmatprep.subr.mxu0 0.0
    %v5510 = vand.u32 %v2735, 4294901760
    %v5511 = vsub.f32 %v2735, %v5510
    %v5512 = vand.u32 %v5511, 4294901760
    %5513 = vmatpush1.msra.mxu0 %v5512
    %5514 = vmatprep.subr.mxu0 0.0
    %v5515 = vand.u32 %v2736, 4294901760
    %v5516 = vsub.f32 %v2736, %v5515
    %v5517 = vand.u32 %v5516, 4294901760
    %5518 = vmatpush1.msra.mxu0 %v5517
    %5519 = vmatprep.subr.mxu0 0.0
    %v5520 = vand.u32 %v2737, 4294901760
    %v5521 = vsub.f32 %v2737, %v5520
    %v5522 = vand.u32 %v5521, 4294901760
    %5523 = vmatpush1.msra.mxu0 %v5522
    %5524 = vmatprep.subr.mxu0 0.0
    %5525 = vmatpush1.msra.mxu0 0.0
    %5526 = vmatprep.subr.mxu0 0.0
    %5527 = vmatpush1.msra.mxu0 0.0
    %5528 = vmatprep.subr.mxu0 0.0
    %5529 = vmatpush1.msra.mxu0 0.0
    %5530 = vmatprep.subr.mxu0 0.0
    %5531 = vmatpush1.msra.mxu0 0.0
    %5532 = vmatprep.subr.mxu0 0.0
    %5533 = vmatpush1.msra.mxu0 0.0
    %5534 = vmatprep.subr.mxu0 0.0
    %5535 = vmatpush1.msra.mxu0 0.0
    %5536 = vmatprep.subr.mxu0 0.0
    %5537 = vmatpush1.msra.mxu0 0.0
    %5538 = vmatprep.subr.mxu0 0.0
    %5539 = vmatpush1.msra.mxu0 0.0
    %5540 = vmatprep.subr.mxu0 0.0
    %5541 = vmatpush1.msra.mxu0 0.0
    %5542 = vmatprep.subr.mxu0 0.0
    %5543 = vmatpush1.msra.mxu0 0.0
    %5544 = vmatprep.subr.mxu0 0.0
    %5545 = vmatpush1.msra.mxu0 0.0
    %5546 = vmatprep.subr.mxu0 0.0
    %5547 = vmatpush1.msra.mxu0 0.0
    %5548 = vmatprep.subr.mxu0 0.0
    %5549 = vmatpush1.msra.mxu0 0.0
    %5550 = vmatprep.subr.mxu0 0.0
    %5551 = vmatpush1.msra.mxu0 0.0
    %5552 = vmatprep.subr.mxu0 0.0
    %5553 = vmatpush1.msra.mxu0 0.0
    %5554 = vmatprep.subr.mxu0 0.0
    %5555 = vmatpush1.msra.mxu0 0.0
    %5556 = vmatprep.subr.mxu0 0.0
    %5557 = vmatpush1.msra.mxu0 0.0
    %5558 = vmatprep.subr.mxu0 0.0
    %5559 = vmatpush1.msra.mxu0 0.0
    %5560 = vmatprep.subr.mxu0 0.0
    %5561 = vmatpush1.msra.mxu0 0.0
    %5562 = vmatprep.subr.mxu0 0.0
    %5563 = vmatpush1.msra.mxu0 0.0
    %5564 = vmatprep.subr.mxu0 0.0
    %5565 = vmatpush1.msra.mxu0 0.0
    %5566 = vmatprep.subr.mxu0 0.0
    %5567 = vmatpush1.msra.mxu0 0.0
    %5568 = vmatprep.subr.mxu0 0.0
    %5569 = vmatpush1.msra.mxu0 0.0
    %5570 = vmatprep.subr.mxu0 0.0
    %5571 = vmatpush1.msra.mxu0 0.0
    %5572 = vmatprep.mubr.f32.mxu0 0.0
    %v5573 = vand.u32 %v5119, 4294901760
    %5574 = vmatmul.mubr.f32.gmra.mrb[0].mxu0 %v5573
    %v5575 = vpop.f32.mrb[0].mxu0
    %v5576 = vadd.f32 %v5481, %v5575
    %v5577 = vpop.f32.mrb[0].mxu0
    %5578 = vdwg.mxu0
    %5579 = vmatprep.subr.mxu0 0.0
    %v5580 = vand.u32 %v2730, 4294901760
    %5581 = vmatpush1.msra.mxu0 %v5580
    %5582 = vmatprep.subr.mxu0 0.0
    %v5583 = vand.u32 %v2731, 4294901760
    %5584 = vmatpush1.msra.mxu0 %v5583
    %5585 = vmatprep.subr.mxu0 0.0
    %v5586 = vand.u32 %v2732, 4294901760
    %5587 = vmatpush1.msra.mxu0 %v5586
    %5588 = vmatprep.subr.mxu0 0.0
    %v5589 = vand.u32 %v2733, 4294901760
    %5590 = vmatpush1.msra.mxu0 %v5589
    %5591 = vmatprep.subr.mxu0 0.0
    %v5592 = vand.u32 %v2734, 4294901760
    %5593 = vmatpush1.msra.mxu0 %v5592
    %5594 = vmatprep.subr.mxu0 0.0
    %v5595 = vand.u32 %v2735, 4294901760
    %5596 = vmatpush1.msra.mxu0 %v5595
    %5597 = vmatprep.subr.mxu0 0.0
    %v5598 = vand.u32 %v2736, 4294901760
    %5599 = vmatpush1.msra.mxu0 %v5598
    %5600 = vmatprep.subr.mxu0 0.0
    %v5601 = vand.u32 %v2737, 4294901760
    %5602 = vmatpush1.msra.mxu0 %v5601
    %5603 = vmatprep.subr.mxu0 0.0
    %5604 = vmatpush1.msra.mxu0 0.0
    %5605 = vmatprep.subr.mxu0 0.0
    %5606 = vmatpush1.msra.mxu0 0.0
    %5607 = vmatprep.subr.mxu0 0.0
    %5608 = vmatpush1.msra.mxu0 0.0
    %5609 = vmatprep.subr.mxu0 0.0
    %5610 = vmatpush1.msra.mxu0 0.0
    %5611 = vmatprep.subr.mxu0 0.0
    %5612 = vmatpush1.msra.mxu0 0.0
    %5613 = vmatprep.subr.mxu0 0.0
    %5614 = vmatpush1.msra.mxu0 0.0
    %5615 = vmatprep.subr.mxu0 0.0
    %5616 = vmatpush1.msra.mxu0 0.0
    %5617 = vmatprep.subr.mxu0 0.0
    %5618 = vmatpush1.msra.mxu0 0.0
    %5619 = vmatprep.subr.mxu0 0.0
    %5620 = vmatpush1.msra.mxu0 0.0
    %5621 = vmatprep.subr.mxu0 0.0
    %5622 = vmatpush1.msra.mxu0 0.0
    %5623 = vmatprep.subr.mxu0 0.0
    %5624 = vmatpush1.msra.mxu0 0.0
    %5625 = vmatprep.subr.mxu0 0.0
    %5626 = vmatpush1.msra.mxu0 0.0
    %5627 = vmatprep.subr.mxu0 0.0
    %5628 = vmatpush1.msra.mxu0 0.0
    %5629 = vmatprep.subr.mxu0 0.0
    %5630 = vmatpush1.msra.mxu0 0.0
    %5631 = vmatprep.subr.mxu0 0.0
    %5632 = vmatpush1.msra.mxu0 0.0
    %5633 = vmatprep.subr.mxu0 0.0
    %5634 = vmatpush1.msra.mxu0 0.0
    %5635 = vmatprep.subr.mxu0 0.0
    %5636 = vmatpush1.msra.mxu0 0.0
    %5637 = vmatprep.subr.mxu0 0.0
    %5638 = vmatpush1.msra.mxu0 0.0
    %5639 = vmatprep.subr.mxu0 0.0
    %5640 = vmatpush1.msra.mxu0 0.0
    %5641 = vmatprep.subr.mxu0 0.0
    %5642 = vmatpush1.msra.mxu0 0.0
    %5643 = vmatprep.subr.mxu0 0.0
    %5644 = vmatpush1.msra.mxu0 0.0
    %5645 = vmatprep.subr.mxu0 0.0
    %5646 = vmatpush1.msra.mxu0 0.0
    %5647 = vmatprep.subr.mxu0 0.0
    %5648 = vmatpush1.msra.mxu0 0.0
    %5649 = vmatprep.subr.mxu0 0.0
    %5650 = vmatpush1.msra.mxu0 0.0
    %5651 = vmatprep.mubr.f32.mxu0 0.0
    %v5652 = vand.u32 %v5119, 4294901760
    %5653 = vmatmul.mubr.f32.gmra.mrb[0].mxu0 %v5652
    %v5654 = vpop.f32.mrb[0].mxu0
    %v5655 = vadd.f32 %v5576, %v5654
    %v5656 = vpop.f32.mrb[0].mxu0
    %5657 = vdwg.mxu0
    %v5658 = vld [vmem:[#allocation4 + $0x148] sm:$0x1]
    %v5659 = vlaneseq
    %v5660 = vshrl.u32 %v5659, 7
    %v5661 = vsub.s32 0, %v5660
    %v5662 = vrot.slane %v5658, %v5661
    %v5663 = vmul.f32 %v5655, %v5662
    %v5664 = vsub.f32 0.0, %v5655
    %v5665 = vmul.f32 %v5664, 1.442695
    %v5666 = vpow.pop %v5665
    %v5667 = vadd.f32 %v5666, 1.0
    %v5668 = vrcp.pop %v5667
    %v5669 = vmul.f32 1.0, %v5668
    %v5670 = vmul.f32 %v5669, 2.0
    %5671 = vst [vmem:[%s2] sm:$0xff] 0.0
    %5672 = vst [vmem:[%s2 + $0x8] sm:$0xff] 0.0
    %5673 = vst [vmem:[%s2 + $0x10] sm:$0xff] 0.0
    %5674 = vst.msk [vmem:[%s2] sm:$0xff] %vm3294, %v5663
    %s5675 = scalar_lea.vmem %s2, 8
    %5676 = vst.msk [vmem:[%s5675] sm:$0xff] %vm3294, %v3280
    %5678 = vrot.lane.b32.xlu0 %v5670, 80
    %v5679 = vpop.permute.xlu0 %5678
    %s5681 = scalar_lea.vmem %s2, 16
    %vm5682 = vcmask 7168
    %5683 = vst.msk [vmem:[%s5681] sm:$0xff] %vm5682, %v5679
    // Predicated region
    $region18: #{forward.1} parent=1 // pred_check
      _
    $region19: #{forward.1} parent=1 // pred_check_branch
      %5685 = sbr.rel (0) target = $region21
    $region20: #{forward.1} parent=1 // pred_region
      _
    $region21: #{forward.1} parent=1 // pred_fallthru
      _
    // Predicated region
    $region22: #{forward.1} parent=1 // pred_check
      _
    $region23: #{forward.1} parent=1 // pred_check_branch
      %5687 = sbr.rel (0) target = $region25
    $region24: #{forward.1} parent=1 // pred_region
      _
    $region25: #{forward.1} parent=1 // pred_fallthru
      _
    %5688 = vsyncpa [#allocation3], 1
    %5689 = vsyncpa [#allocation5], 1

</llo_original>
